<compile_context>
chip_gen: v7x
topology: tpu7x:2x2x1
jax: 0.10.0
libtpu: 0.0.40
codegen_flags: <defaults>
</compile_context>

<pallas_src>
import jax
import jax.numpy as jnp
from jax.experimental import pallas as pl
from jax.experimental.pallas import tpu as pltpu


def _sigmoid(x):
    # Numerically stable logistic: exp only ever sees non-positive arguments,
    # so no inf/NaN for large |x|.  exp and the approx reciprocal both issue on
    # the EUP slot (free next to the MXU/VPU work).
    e = jnp.exp(-jnp.abs(x))
    p = pl.reciprocal(1.0 + e, approx=True)
    return jnp.where(x >= 0.0, p, 1.0 - p)


def ae_kernel(x_ref,
              w1_ref, b1_ref,
              w2_ref, b2_ref,
              w3_ref, b3_ref,
              w4_ref, b4_ref,
              o_ref):
    # x arrives f32 from HBM; cast the tile in-kernel (cheap, hides under MXU).
    x = x_ref[...].astype(jnp.bfloat16)                          # (TB, D)

    # encoder: relu(fc1) -> sigmoid(fc2)
    h1 = jnp.dot(x, w1_ref[...], preferred_element_type=jnp.float32) + b1_ref[...]
    h1 = jnp.maximum(h1, 0.0).astype(jnp.bfloat16)
    z = jnp.dot(h1, w2_ref[...], preferred_element_type=jnp.float32) + b2_ref[...]
    z = _sigmoid(z).astype(jnp.bfloat16)

    # decoder: relu(fc1) -> sigmoid(fc2)
    h2 = jnp.dot(z, w3_ref[...], preferred_element_type=jnp.float32) + b3_ref[...]
    h2 = jnp.maximum(h2, 0.0).astype(jnp.bfloat16)
    y = jnp.dot(h2, w4_ref[...], preferred_element_type=jnp.float32) + b4_ref[...]
    o_ref[...] = _sigmoid(y).astype(o_ref.dtype)


def _choose_batch_tile(batch):
    """Batch tile: multiple of 8, <=128, prefers an exact divisor of `batch`
    (no pad/slice), and aims for >=4 grid steps (>=2 per v7x TensorCore)."""
    if batch <= 8:
        return 8                                   # tiny batches pad to one sublane tile
    target = max(8, min(128, (batch // 4) // 8 * 8))
    for tb in range(target, 7, -8):                # largest divisor <= target
        if batch % tb == 0:
            return tb
    return target                                  # ragged batch: last tile is padded


def _weight_spec(shape, single_buffer):
    if single_buffer:
        # Constant index_map -> DMA'd once; a single buffer halves resident
        # weight VMEM (headroom for larger D on v7x's 64 MiB VMEM).
        return pl.BlockSpec(shape, lambda i: (0, 0), pipeline_mode=pl.Buffered(1))
    return pl.BlockSpec(shape, lambda i: (0, 0))


def _ae_pallas_call(x2d, params, out_dtype, tb, single_buffer_weights):
    b_pad, d = x2d.shape
    (w1, b1), (w2, b2), (w3, b3), (w4, b4) = params
    d4, d8 = w1.shape[1], w2.shape[1]
    n_tiles = b_pad // tb

    x_spec = pl.BlockSpec((tb, d), lambda i: (i, 0))
    out_spec = pl.BlockSpec((tb, d), lambda i: (i, 0))
    in_specs = [
        x_spec,
        _weight_spec((d, d4), single_buffer_weights),
        _weight_spec((1, d4), single_buffer_weights),
        _weight_spec((d4, d8), single_buffer_weights),
        _weight_spec((1, d8), single_buffer_weights),
        _weight_spec((d8, d4), single_buffer_weights),
        _weight_spec((1, d4), single_buffer_weights),
        _weight_spec((d4, d), single_buffer_weights),
        _weight_spec((1, d), single_buffer_weights),
    ]

    # --- VMEM budget (estimate + margin, self-consistent with buffering). ---
    out_size = jnp.dtype(out_dtype).itemsize
    w_bytes = 2 * (d * d4 + d4 * d8 + d8 * d4 + d4 * d)          # bf16 weights
    bias_bytes = 4 * (d4 + d8 + d4 + d)                          # f32 biases
    wb_bufs = 1 if single_buffer_weights else 2
    io_bytes = 2 * tb * d * (4 + out_size)                       # 2-deep x(f32)+out tiles
    act_bytes = tb * (d4 + d8 + d4 + d) * 4 + tb * (d + d4 + d8 + d4) * 2
    est = wb_bufs * (w_bytes + bias_bytes) + io_bytes + act_bytes
    vmem_limit = int(min(96 * 1024 * 1024, est + est // 2 + (4 << 20)))

    flops = 2 * b_pad * (d * d4 + d4 * d8 + d8 * d4 + d4 * d)
    transcendentals = b_pad * (d8 + d)                           # the two sigmoids
    hbm_bytes = b_pad * d * 4 + w_bytes + bias_bytes + b_pad * d * out_size

    return pl.pallas_call(
        ae_kernel,
        out_shape=jax.ShapeDtypeStruct((b_pad, d), out_dtype),
        grid=(n_tiles,),
        in_specs=in_specs,
        out_specs=out_spec,
        compiler_params=pltpu.CompilerParams(
            dimension_semantics=("parallel",),
            vmem_limit_bytes=vmem_limit,
        ),
        cost_estimate=pl.CostEstimate(
            flops=flops,
            transcendentals=transcendentals,
            bytes_accessed=hbm_bytes,
        ),
    )(x2d, w1, b1, w2, b2, w3, b3, w4, b4)


def ae_forward(x_nchw, params, out_dtype=jnp.float32):
    """AE forward.  x_nchw: (B, C, H, W) f32 -> (B, C*H*W) in `out_dtype`.

    out_dtype=jnp.bfloat16 halves the largest HBM term (recommended for
    inference; sigmoid outputs lie in (0,1) so bf16 abs error is ~4e-3)."""
    b = x_nchw.shape[0]
    d = x_nchw.shape[1] * x_nchw.shape[2] * x_nchw.shape[3]
    x2d = x_nchw.reshape(b, d)       # contiguous view == x.view(-1, D); stays f32

    tb = _choose_batch_tile(b)
    n_tiles = pl.cdiv(b, tb)
    b_pad = n_tiles * tb
    if b_pad != b:
        # Only hit for ragged/tiny batches (tile selection prefers divisors of B).
        x2d = jnp.pad(x2d, ((0, b_pad - b), (0, 0)))

    try:
        out = _ae_pallas_call(x2d, params, out_dtype, tb, single_buffer_weights=True)
    except Exception:
        # Graceful fallback if this jax build rejects pipeline_mode=pl.Buffered(1)
        # on constant-index operands (only costs extra resident weight VMEM).
        out = _ae_pallas_call(x2d, params, out_dtype, tb, single_buffer_weights=False)

    return out if b_pad == b else out[:b]


def init_params(key, raw_data_dim):
    """PyTorch nn.Linear-style init.  Weights stored (in, out) and converted to
    bf16 ONCE here (no per-call wrapper casts); biases stay f32 (1, out) since
    they add onto the f32 MXU accumulator."""
    n_hidden_big = raw_data_dim // 4
    n_hidden = raw_data_dim // 8
    dims = [
        (raw_data_dim, n_hidden_big),   # enc_fc1
        (n_hidden_big, n_hidden),       # enc_fc2
        (n_hidden, n_hidden_big),       # dec_fc1
        (n_hidden_big, raw_data_dim),   # dec_fc2
    ]
    params = []
    keys = jax.random.split(key, len(dims) * 2)
    for i, (fan_in, fan_out) in enumerate(dims):
        bound = 1.0 / float(fan_in) ** 0.5
        w = jax.random.uniform(keys[2 * i], (fan_in, fan_out),
                               minval=-bound, maxval=bound, dtype=jnp.float32)
        bvec = jax.random.uniform(keys[2 * i + 1], (1, fan_out),
                                  minval=-bound, maxval=bound, dtype=jnp.float32)
        params.append((w.astype(jnp.bfloat16), bvec))
    return params


def ae_forward_ref(x_nchw, params):
    """Pure-JAX f32 reference (same bf16 weights, f32 math) for checking."""
    b = x_nchw.shape[0]
    x = x_nchw.reshape(b, -1)
    (w1, b1), (w2, b2), (w3, b3), (w4, b4) = params
    f32 = lambda a: a.astype(jnp.float32)
    x = jnp.maximum(x @ f32(w1) + b1, 0.0)
    x = jax.nn.sigmoid(x @ f32(w2) + b2)
    x = jnp.maximum(x @ f32(w3) + b3, 0.0)
    x = jax.nn.sigmoid(x @ f32(w4) + b4)
    return x


if __name__ == "__main__":
    key = jax.random.PRNGKey(0)
    k_x, k_p, k_x2 = jax.random.split(key, 3)

    # Small shape implied by the module: batch=2, channels=4, L=16 -> D=1024,
    # hidden dims 256 / 128.
    B, C, L = 2, 4, 16
    raw_data_dim = C * L * L
    params = init_params(k_p, raw_data_dim)

    x_small = jax.random.uniform(k_x, (B, C, L, L), dtype=jnp.float32)
    out_small = jax.block_until_ready(ae_forward(x_small, params))
    ref_small = ae_forward_ref(x_small, params)
    assert out_small.shape == (B, raw_data_dim), out_small.shape
    err = float(jnp.max(jnp.abs(out_small.astype(jnp.float32) - ref_small)))
    assert err < 2e-2, f"small-batch mismatch vs reference: max abs err {err}"

    # Larger batch exercises the multi-step "parallel" batch grid (TB=128,
    # 4 steps -> 2 per v7x TensorCore) and the bf16-output path.
    B2 = 512
    x_big = jax.random.uniform(k_x2, (B2, C, L, L), dtype=jnp.float32)
    out_big = jax.block_until_ready(
        ae_forward(x_big, params, out_dtype=jnp.bfloat16))
    ref_big = ae_forward_ref(x_big, params)
    assert out_big.shape == (B2, raw_data_dim), out_big.shape
    err2 = float(jnp.max(jnp.abs(out_big.astype(jnp.float32) - ref_big)))
    assert err2 < 2e-2, f"big-batch mismatch vs reference: max abs err {err2}"

    print("KERNEL_OK")
</pallas_src>

<mosaic_0001>
module attributes {stable_mosaic.version = 11 : i64} {
  func.func @ae_kernel(%arg0: i32, %arg1: memref<8x1024xf32, #tpu.memory_space<vmem>>, %arg2: memref<1024x256xbf16, #tpu.memory_space<vmem>>, %arg3: memref<1x256xf32, #tpu.memory_space<vmem>>, %arg4: memref<256x128xbf16, #tpu.memory_space<vmem>>, %arg5: memref<1x128xf32, #tpu.memory_space<vmem>>, %arg6: memref<128x256xbf16, #tpu.memory_space<vmem>>, %arg7: memref<1x256xf32, #tpu.memory_space<vmem>>, %arg8: memref<256x1024xbf16, #tpu.memory_space<vmem>>, %arg9: memref<1x1024xf32, #tpu.memory_space<vmem>>, %arg10: memref<8x1024xf32, #tpu.memory_space<vmem>>) attributes {dimension_semantics = [#tpu.dimension_semantics<parallel>], iteration_bounds = array<i64: 1>, scalar_prefetch = 0 : i64, scratch_operands = 0 : i64, tpu.core_type = #tpu.core_type<tc>, window_params = [{transform_indices = @transform_0, window_bounds = array<i64: 8, 1024>}, {pipeline_mode = #tpu.pipeline_mode<synchronous>, transform_indices = @transform_1, window_bounds = array<i64: 1024, 256>}, {pipeline_mode = #tpu.pipeline_mode<synchronous>, transform_indices = @transform_2, window_bounds = array<i64: 1, 256>}, {pipeline_mode = #tpu.pipeline_mode<synchronous>, transform_indices = @transform_3, window_bounds = array<i64: 256, 128>}, {pipeline_mode = #tpu.pipeline_mode<synchronous>, transform_indices = @transform_4, window_bounds = array<i64: 1, 128>}, {pipeline_mode = #tpu.pipeline_mode<synchronous>, transform_indices = @transform_5, window_bounds = array<i64: 128, 256>}, {pipeline_mode = #tpu.pipeline_mode<synchronous>, transform_indices = @transform_6, window_bounds = array<i64: 1, 256>}, {pipeline_mode = #tpu.pipeline_mode<synchronous>, transform_indices = @transform_7, window_bounds = array<i64: 256, 1024>}, {pipeline_mode = #tpu.pipeline_mode<synchronous>, transform_indices = @transform_8, window_bounds = array<i64: 1, 1024>}, {transform_indices = @transform_9, window_bounds = array<i64: 8, 1024>}]} {
    %c0 = arith.constant 0 : index
    %c0_0 = arith.constant 0 : index
    %0 = vector.load %arg1[%c0, %c0_0] : memref<8x1024xf32, #tpu.memory_space<vmem>>, vector<8x1024xf32>
    %1 = arith.truncf %0 : vector<8x1024xf32> to vector<8x1024xbf16>
    %c0_1 = arith.constant 0 : index
    %c0_2 = arith.constant 0 : index
    %2 = vector.load %arg2[%c0_1, %c0_2] : memref<1024x256xbf16, #tpu.memory_space<vmem>>, vector<1024x256xbf16>
    %cst = arith.constant dense<0.000000e+00> : vector<8x256xf32>
    %3 = tpu.matmul %1, %2, %cst {dimension_numbers = #tpu.dot_dimension_numbers<[1], [0], [0], [1], [0, 0, 1, 1], [], []>} : vector<8x1024xbf16>, vector<1024x256xbf16>, vector<8x256xf32> -> vector<8x256xf32>
    %c0_3 = arith.constant 0 : index
    %c0_4 = arith.constant 0 : index
    %4 = vector.load %arg3[%c0_3, %c0_4] : memref<1x256xf32, #tpu.memory_space<vmem>>, vector<1x256xf32>
    %5 = vector.broadcast %4 : vector<1x256xf32> to vector<8x256xf32>
    %6 = arith.addf %3, %5 : vector<8x256xf32>
    %cst_5 = arith.constant 0.000000e+00 : f32
    %7 = vector.broadcast %cst_5 : f32 to vector<8x256xf32>
    %8 = arith.maximumf %6, %7 : vector<8x256xf32>
    %9 = arith.truncf %8 : vector<8x256xf32> to vector<8x256xbf16>
    %c0_6 = arith.constant 0 : index
    %c0_7 = arith.constant 0 : index
    %10 = vector.load %arg4[%c0_6, %c0_7] : memref<256x128xbf16, #tpu.memory_space<vmem>>, vector<256x128xbf16>
    %cst_8 = arith.constant dense<0.000000e+00> : vector<8x128xf32>
    %11 = tpu.matmul %9, %10, %cst_8 {dimension_numbers = #tpu.dot_dimension_numbers<[1], [0], [0], [1], [0, 0, 1, 1], [], []>} : vector<8x256xbf16>, vector<256x128xbf16>, vector<8x128xf32> -> vector<8x128xf32>
    %c0_9 = arith.constant 0 : index
    %c0_10 = arith.constant 0 : index
    %12 = vector.load %arg5[%c0_9, %c0_10] : memref<1x128xf32, #tpu.memory_space<vmem>>, vector<1x128xf32>
    %13 = vector.broadcast %12 : vector<1x128xf32> to vector<8x128xf32>
    %14 = arith.addf %11, %13 : vector<8x128xf32>
    %15 = math.absf %14 : vector<8x128xf32>
    %cst_11 = arith.constant 0.000000e+00 : f32
    %16 = vector.broadcast %cst_11 : f32 to vector<8x128xf32>
    %17 = arith.subf %16, %15 : vector<8x128xf32>
    %18 = math.exp %17 : vector<8x128xf32>
    %cst_12 = arith.constant 1.000000e+00 : f32
    %19 = vector.broadcast %cst_12 : f32 to vector<8x128xf32>
    %20 = arith.addf %19, %18 : vector<8x128xf32>
    %21 = tpu.reciprocal %20 {approx = true} : vector<8x128xf32> -> vector<8x128xf32>
    %cst_13 = arith.constant 0.000000e+00 : f32
    %22 = vector.broadcast %cst_13 : f32 to vector<8x128xf32>
    %23 = arith.cmpf oge, %14, %22 : vector<8x128xf32>
    %cst_14 = arith.constant 1.000000e+00 : f32
    %24 = vector.broadcast %cst_14 : f32 to vector<8x128xf32>
    %25 = arith.subf %24, %21 : vector<8x128xf32>
    %26 = arith.select %23, %21, %25 : vector<8x128xi1>, vector<8x128xf32>
    %27 = arith.truncf %26 : vector<8x128xf32> to vector<8x128xbf16>
    %c0_15 = arith.constant 0 : index
    %c0_16 = arith.constant 0 : index
    %28 = vector.load %arg6[%c0_15, %c0_16] : memref<128x256xbf16, #tpu.memory_space<vmem>>, vector<128x256xbf16>
    %cst_17 = arith.constant dense<0.000000e+00> : vector<8x256xf32>
    %29 = tpu.matmul %27, %28, %cst_17 {dimension_numbers = #tpu.dot_dimension_numbers<[1], [0], [0], [1], [0, 0, 1, 1], [], []>} : vector<8x128xbf16>, vector<128x256xbf16>, vector<8x256xf32> -> vector<8x256xf32>
    %c0_18 = arith.constant 0 : index
    %c0_19 = arith.constant 0 : index
    %30 = vector.load %arg7[%c0_18, %c0_19] : memref<1x256xf32, #tpu.memory_space<vmem>>, vector<1x256xf32>
    %31 = vector.broadcast %30 : vector<1x256xf32> to vector<8x256xf32>
    %32 = arith.addf %29, %31 : vector<8x256xf32>
    %cst_20 = arith.constant 0.000000e+00 : f32
    %33 = vector.broadcast %cst_20 : f32 to vector<8x256xf32>
    %34 = arith.maximumf %32, %33 : vector<8x256xf32>
    %35 = arith.truncf %34 : vector<8x256xf32> to vector<8x256xbf16>
    %c0_21 = arith.constant 0 : index
    %c0_22 = arith.constant 0 : index
    %36 = vector.load %arg8[%c0_21, %c0_22] : memref<256x1024xbf16, #tpu.memory_space<vmem>>, vector<256x1024xbf16>
    %cst_23 = arith.constant dense<0.000000e+00> : vector<8x1024xf32>
    %37 = tpu.matmul %35, %36, %cst_23 {dimension_numbers = #tpu.dot_dimension_numbers<[1], [0], [0], [1], [0, 0, 1, 1], [], []>} : vector<8x256xbf16>, vector<256x1024xbf16>, vector<8x1024xf32> -> vector<8x1024xf32>
    %c0_24 = arith.constant 0 : index
    %c0_25 = arith.constant 0 : index
    %38 = vector.load %arg9[%c0_24, %c0_25] : memref<1x1024xf32, #tpu.memory_space<vmem>>, vector<1x1024xf32>
    %39 = vector.broadcast %38 : vector<1x1024xf32> to vector<8x1024xf32>
    %40 = arith.addf %37, %39 : vector<8x1024xf32>
    %41 = math.absf %40 : vector<8x1024xf32>
    %cst_26 = arith.constant 0.000000e+00 : f32
    %42 = vector.broadcast %cst_26 : f32 to vector<8x1024xf32>
    %43 = arith.subf %42, %41 : vector<8x1024xf32>
    %44 = math.exp %43 : vector<8x1024xf32>
    %cst_27 = arith.constant 1.000000e+00 : f32
    %45 = vector.broadcast %cst_27 : f32 to vector<8x1024xf32>
    %46 = arith.addf %45, %44 : vector<8x1024xf32>
    %47 = tpu.reciprocal %46 {approx = true} : vector<8x1024xf32> -> vector<8x1024xf32>
    %cst_28 = arith.constant 0.000000e+00 : f32
    %48 = vector.broadcast %cst_28 : f32 to vector<8x1024xf32>
    %49 = arith.cmpf oge, %40, %48 : vector<8x1024xf32>
    %cst_29 = arith.constant 1.000000e+00 : f32
    %50 = vector.broadcast %cst_29 : f32 to vector<8x1024xf32>
    %51 = arith.subf %50, %47 : vector<8x1024xf32>
    %52 = arith.select %49, %47, %51 : vector<8x1024xi1>, vector<8x1024xf32>
    %c0_30 = arith.constant 0 : index
    %c0_31 = arith.constant 0 : index
    %53 = vector.load %arg10[%c0_30, %c0_31] : memref<8x1024xf32, #tpu.memory_space<vmem>>, vector<8x1024xf32>
    tpu.vector_store %arg10[%c0_30, %c0_31], %52 {strides = array<i32>} : memref<8x1024xf32, #tpu.memory_space<vmem>>, vector<8x1024xf32>,
    return
  }
  func.func @transform_0(%arg0: i32) -> (i32, i32) {
    %c0_i32 = arith.constant 0 : i32
    %c0_i32_0 = arith.constant 0 : i32
    return %arg0, %c0_i32 : i32, i32
  }
  func.func @transform_1(%arg0: i32) -> (i32, i32) {
    %c0_i32 = arith.constant 0 : i32
    %c0_i32_0 = arith.constant 0 : i32
    %c0_i32_1 = arith.constant 0 : i32
    return %c0_i32, %c0_i32_0 : i32, i32
  }
  func.func @transform_2(%arg0: i32) -> (i32, i32) {
    %c0_i32 = arith.constant 0 : i32
    %c0_i32_0 = arith.constant 0 : i32
    %c0_i32_1 = arith.constant 0 : i32
    return %c0_i32, %c0_i32_0 : i32, i32
  }
  func.func @transform_3(%arg0: i32) -> (i32, i32) {
    %c0_i32 = arith.constant 0 : i32
    %c0_i32_0 = arith.constant 0 : i32
    %c0_i32_1 = arith.constant 0 : i32
    return %c0_i32, %c0_i32_0 : i32, i32
  }
  func.func @transform_4(%arg0: i32) -> (i32, i32) {
    %c0_i32 = arith.constant 0 : i32
    %c0_i32_0 = arith.constant 0 : i32
    %c0_i32_1 = arith.constant 0 : i32
    return %c0_i32, %c0_i32_0 : i32, i32
  }
  func.func @transform_5(%arg0: i32) -> (i32, i32) {
    %c0_i32 = arith.constant 0 : i32
    %c0_i32_0 = arith.constant 0 : i32
    %c0_i32_1 = arith.constant 0 : i32
    return %c0_i32, %c0_i32_0 : i32, i32
  }
  func.func @transform_6(%arg0: i32) -> (i32, i32) {
    %c0_i32 = arith.constant 0 : i32
    %c0_i32_0 = arith.constant 0 : i32
    %c0_i32_1 = arith.constant 0 : i32
    return %c0_i32, %c0_i32_0 : i32, i32
  }
  func.func @transform_7(%arg0: i32) -> (i32, i32) {
    %c0_i32 = arith.constant 0 : i32
    %c0_i32_0 = arith.constant 0 : i32
    %c0_i32_1 = arith.constant 0 : i32
    return %c0_i32, %c0_i32_0 : i32, i32
  }
  func.func @transform_8(%arg0: i32) -> (i32, i32) {
    %c0_i32 = arith.constant 0 : i32
    %c0_i32_0 = arith.constant 0 : i32
    %c0_i32_1 = arith.constant 0 : i32
    return %c0_i32, %c0_i32_0 : i32, i32
  }
  func.func @transform_9(%arg0: i32) -> (i32, i32) {
    %c0_i32 = arith.constant 0 : i32
    %c0_i32_0 = arith.constant 0 : i32
    return %arg0, %c0_i32 : i32, i32
  }
}

module attributes {stable_mosaic.version = 11 : i64} {
  func.func @ae_kernel(%arg0: i32, %arg1: memref<8x1024xf32, #tpu.memory_space<vmem>>, %arg2: memref<1024x256xbf16, #tpu.memory_space<vmem>>, %arg3: memref<1x256xf32, #tpu.memory_space<vmem>>, %arg4: memref<256x128xbf16, #tpu.memory_space<vmem>>, %arg5: memref<1x128xf32, #tpu.memory_space<vmem>>, %arg6: memref<128x256xbf16, #tpu.memory_space<vmem>>, %arg7: memref<1x256xf32, #tpu.memory_space<vmem>>, %arg8: memref<256x1024xbf16, #tpu.memory_space<vmem>>, %arg9: memref<1x1024xf32, #tpu.memory_space<vmem>>, %arg10: memref<8x1024xf32, #tpu.memory_space<vmem>>) attributes {dimension_semantics = [#tpu.dimension_semantics<parallel>], iteration_bounds = array<i64: 1>, scalar_prefetch = 0 : i64, scratch_operands = 0 : i64, tpu.core_type = #tpu.core_type<tc>, window_params = [{transform_indices = @transform_0, window_bounds = array<i64: 8, 1024>}, {pipeline_mode = #tpu.pipeline_mode<synchronous>, transform_indices = @transform_1, window_bounds = array<i64: 1024, 256>}, {pipeline_mode = #tpu.pipeline_mode<synchronous>, transform_indices = @transform_2, window_bounds = array<i64: 1, 256>}, {pipeline_mode = #tpu.pipeline_mode<synchronous>, transform_indices = @transform_3, window_bounds = array<i64: 256, 128>}, {pipeline_mode = #tpu.pipeline_mode<synchronous>, transform_indices = @transform_4, window_bounds = array<i64: 1, 128>}, {pipeline_mode = #tpu.pipeline_mode<synchronous>, transform_indices = @transform_5, window_bounds = array<i64: 128, 256>}, {pipeline_mode = #tpu.pipeline_mode<synchronous>, transform_indices = @transform_6, window_bounds = array<i64: 1, 256>}, {pipeline_mode = #tpu.pipeline_mode<synchronous>, transform_indices = @transform_7, window_bounds = array<i64: 256, 1024>}, {pipeline_mode = #tpu.pipeline_mode<synchronous>, transform_indices = @transform_8, window_bounds = array<i64: 1, 1024>}, {transform_indices = @transform_9, window_bounds = array<i64: 8, 1024>}]} {
    %c0 = arith.constant 0 : index
    %c0_0 = arith.constant 0 : index
    %0 = vector.load %arg1[%c0, %c0_0] : memref<8x1024xf32, #tpu.memory_space<vmem>>, vector<8x1024xf32>
    %1 = arith.truncf %0 : vector<8x1024xf32> to vector<8x1024xbf16>
    %c0_1 = arith.constant 0 : index
    %c0_2 = arith.constant 0 : index
    %2 = vector.load %arg2[%c0_1, %c0_2] : memref<1024x256xbf16, #tpu.memory_space<vmem>>, vector<1024x256xbf16>
    %cst = arith.constant dense<0.000000e+00> : vector<8x256xf32>
    %3 = tpu.matmul %1, %2, %cst {dimension_numbers = #tpu.dot_dimension_numbers<[1], [0], [0], [1], [0, 0, 1, 1], [], []>} : vector<8x1024xbf16>, vector<1024x256xbf16>, vector<8x256xf32> -> vector<8x256xf32>
    %c0_3 = arith.constant 0 : index
    %c0_4 = arith.constant 0 : index
    %4 = vector.load %arg3[%c0_3, %c0_4] : memref<1x256xf32, #tpu.memory_space<vmem>>, vector<1x256xf32>
    %5 = vector.broadcast %4 : vector<1x256xf32> to vector<8x256xf32>
    %6 = arith.addf %3, %5 : vector<8x256xf32>
    %cst_5 = arith.constant 0.000000e+00 : f32
    %7 = vector.broadcast %cst_5 : f32 to vector<8x256xf32>
    %8 = arith.maximumf %6, %7 : vector<8x256xf32>
    %9 = arith.truncf %8 : vector<8x256xf32> to vector<8x256xbf16>
    %c0_6 = arith.constant 0 : index
    %c0_7 = arith.constant 0 : index
    %10 = vector.load %arg4[%c0_6, %c0_7] : memref<256x128xbf16, #tpu.memory_space<vmem>>, vector<256x128xbf16>
    %cst_8 = arith.constant dense<0.000000e+00> : vector<8x128xf32>
    %11 = tpu.matmul %9, %10, %cst_8 {dimension_numbers = #tpu.dot_dimension_numbers<[1], [0], [0], [1], [0, 0, 1, 1], [], []>} : vector<8x256xbf16>, vector<256x128xbf16>, vector<8x128xf32> -> vector<8x128xf32>
    %c0_9 = arith.constant 0 : index
    %c0_10 = arith.constant 0 : index
    %12 = vector.load %arg5[%c0_9, %c0_10] : memref<1x128xf32, #tpu.memory_space<vmem>>, vector<1x128xf32>
    %13 = vector.broadcast %12 : vector<1x128xf32> to vector<8x128xf32>
    %14 = arith.addf %11, %13 : vector<8x128xf32>
    %15 = math.absf %14 : vector<8x128xf32>
    %cst_11 = arith.constant 0.000000e+00 : f32
    %16 = vector.broadcast %cst_11 : f32 to vector<8x128xf32>
    %17 = arith.subf %16, %15 : vector<8x128xf32>
    %18 = math.exp %17 : vector<8x128xf32>
    %cst_12 = arith.constant 1.000000e+00 : f32
    %19 = vector.broadcast %cst_12 : f32 to vector<8x128xf32>
    %20 = arith.addf %19, %18 : vector<8x128xf32>
    %21 = tpu.reciprocal %20 {approx = true} : vector<8x128xf32> -> vector<8x128xf32>
    %cst_13 = arith.constant 0.000000e+00 : f32
    %22 = vector.broadcast %cst_13 : f32 to vector<8x128xf32>
    %23 = arith.cmpf oge, %14, %22 : vector<8x128xf32>
    %cst_14 = arith.constant 1.000000e+00 : f32
    %24 = vector.broadcast %cst_14 : f32 to vector<8x128xf32>
    %25 = arith.subf %24, %21 : vector<8x128xf32>
    %26 = arith.select %23, %21, %25 : vector<8x128xi1>, vector<8x128xf32>
    %27 = arith.truncf %26 : vector<8x128xf32> to vector<8x128xbf16>
    %c0_15 = arith.constant 0 : index
    %c0_16 = arith.constant 0 : index
    %28 = vector.load %arg6[%c0_15, %c0_16] : memref<128x256xbf16, #tpu.memory_space<vmem>>, vector<128x256xbf16>
    %cst_17 = arith.constant dense<0.000000e+00> : vector<8x256xf32>
    %29 = tpu.matmul %27, %28, %cst_17 {dimension_numbers = #tpu.dot_dimension_numbers<[1], [0], [0], [1], [0, 0, 1, 1], [], []>} : vector<8x128xbf16>, vector<128x256xbf16>, vector<8x256xf32> -> vector<8x256xf32>
    %c0_18 = arith.constant 0 : index
    %c0_19 = arith.constant 0 : index
    %30 = vector.load %arg7[%c0_18, %c0_19] : memref<1x256xf32, #tpu.memory_space<vmem>>, vector<1x256xf32>
    %31 = vector.broadcast %30 : vector<1x256xf32> to vector<8x256xf32>
    %32 = arith.addf %29, %31 : vector<8x256xf32>
    %cst_20 = arith.constant 0.000000e+00 : f32
    %33 = vector.broadcast %cst_20 : f32 to vector<8x256xf32>
    %34 = arith.maximumf %32, %33 : vector<8x256xf32>
    %35 = arith.truncf %34 : vector<8x256xf32> to vector<8x256xbf16>
    %c0_21 = arith.constant 0 : index
    %c0_22 = arith.constant 0 : index
    %36 = vector.load %arg8[%c0_21, %c0_22] : memref<256x1024xbf16, #tpu.memory_space<vmem>>, vector<256x1024xbf16>
    %cst_23 = arith.constant dense<0.000000e+00> : vector<8x1024xf32>
    %37 = tpu.matmul %35, %36, %cst_23 {dimension_numbers = #tpu.dot_dimension_numbers<[1], [0], [0], [1], [0, 0, 1, 1], [], []>} : vector<8x256xbf16>, vector<256x1024xbf16>, vector<8x1024xf32> -> vector<8x1024xf32>
    %c0_24 = arith.constant 0 : index
    %c0_25 = arith.constant 0 : index
    %38 = vector.load %arg9[%c0_24, %c0_25] : memref<1x1024xf32, #tpu.memory_space<vmem>>, vector<1x1024xf32>
    %39 = vector.broadcast %38 : vector<1x1024xf32> to vector<8x1024xf32>
    %40 = arith.addf %37, %39 : vector<8x1024xf32>
    %41 = math.absf %40 : vector<8x1024xf32>
    %cst_26 = arith.constant 0.000000e+00 : f32
    %42 = vector.broadcast %cst_26 : f32 to vector<8x1024xf32>
    %43 = arith.subf %42, %41 : vector<8x1024xf32>
    %44 = math.exp %43 : vector<8x1024xf32>
    %cst_27 = arith.constant 1.000000e+00 : f32
    %45 = vector.broadcast %cst_27 : f32 to vector<8x1024xf32>
    %46 = arith.addf %45, %44 : vector<8x1024xf32>
    %47 = tpu.reciprocal %46 {approx = true} : vector<8x1024xf32> -> vector<8x1024xf32>
    %cst_28 = arith.constant 0.000000e+00 : f32
    %48 = vector.broadcast %cst_28 : f32 to vector<8x1024xf32>
    %49 = arith.cmpf oge, %40, %48 : vector<8x1024xf32>
    %cst_29 = arith.constant 1.000000e+00 : f32
    %50 = vector.broadcast %cst_29 : f32 to vector<8x1024xf32>
    %51 = arith.subf %50, %47 : vector<8x1024xf32>
    %52 = arith.select %49, %47, %51 : vector<8x1024xi1>, vector<8x1024xf32>
    %c0_30 = arith.constant 0 : index
    %c0_31 = arith.constant 0 : index
    %53 = vector.load %arg10[%c0_30, %c0_31] : memref<8x1024xf32, #tpu.memory_space<vmem>>, vector<8x1024xf32>
    tpu.vector_store %arg10[%c0_30, %c0_31], %52 {strides = array<i32>} : memref<8x1024xf32, #tpu.memory_space<vmem>>, vector<8x1024xf32>,
    return
  }
  func.func @transform_0(%arg0: i32) -> (i32, i32) {
    %c0_i32 = arith.constant 0 : i32
    %c0_i32_0 = arith.constant 0 : i32
    return %arg0, %c0_i32 : i32, i32
  }
  func.func @transform_1(%arg0: i32) -> (i32, i32) {
    %c0_i32 = arith.constant 0 : i32
    %c0_i32_0 = arith.constant 0 : i32
    %c0_i32_1 = arith.constant 0 : i32
    return %c0_i32, %c0_i32_0 : i32, i32
  }
  func.func @transform_2(%arg0: i32) -> (i32, i32) {
    %c0_i32 = arith.constant 0 : i32
    %c0_i32_0 = arith.constant 0 : i32
    %c0_i32_1 = arith.constant 0 : i32
    return %c0_i32, %c0_i32_0 : i32, i32
  }
  func.func @transform_3(%arg0: i32) -> (i32, i32) {
    %c0_i32 = arith.constant 0 : i32
    %c0_i32_0 = arith.constant 0 : i32
    %c0_i32_1 = arith.constant 0 : i32
    return %c0_i32, %c0_i32_0 : i32, i32
  }
  func.func @transform_4(%arg0: i32) -> (i32, i32) {
    %c0_i32 = arith.constant 0 : i32
    %c0_i32_0 = arith.constant 0 : i32
    %c0_i32_1 = arith.constant 0 : i32
    return %c0_i32, %c0_i32_0 : i32, i32
  }
  func.func @transform_5(%arg0: i32) -> (i32, i32) {
    %c0_i32 = arith.constant 0 : i32
    %c0_i32_0 = arith.constant 0 : i32
    %c0_i32_1 = arith.constant 0 : i32
    return %c0_i32, %c0_i32_0 : i32, i32
  }
  func.func @transform_6(%arg0: i32) -> (i32, i32) {
    %c0_i32 = arith.constant 0 : i32
    %c0_i32_0 = arith.constant 0 : i32
    %c0_i32_1 = arith.constant 0 : i32
    return %c0_i32, %c0_i32_0 : i32, i32
  }
  func.func @transform_7(%arg0: i32) -> (i32, i32) {
    %c0_i32 = arith.constant 0 : i32
    %c0_i32_0 = arith.constant 0 : i32
    %c0_i32_1 = arith.constant 0 : i32
    return %c0_i32, %c0_i32_0 : i32, i32
  }
  func.func @transform_8(%arg0: i32) -> (i32, i32) {
    %c0_i32 = arith.constant 0 : i32
    %c0_i32_0 = arith.constant 0 : i32
    %c0_i32_1 = arith.constant 0 : i32
    return %c0_i32, %c0_i32_0 : i32, i32
  }
  func.func @transform_9(%arg0: i32) -> (i32, i32) {
    %c0_i32 = arith.constant 0 : i32
    %c0_i32_0 = arith.constant 0 : i32
    return %arg0, %c0_i32 : i32, i32
  }
}

</mosaic_0001>

<llo_original>
// kernel: tpu_custom_call.1
$region0: #{tpu_custom_call.1}
  #allocation0 [shape = 'u32[]', space=smem, size = 0x4, offset = 0x4, fixed_abs, tag = 'smem constant byte address 0x4 - core index']
  #allocation1 [shape = 'u32[144,128]{1,0:T(1,128)}', space=vmem, size = 0x12000, scoped, tag = 'internal scratch']
  %s0 = inlined_call_operand.hbm [shape: f32[8,1024], index: 0, kind: input, shape index: {}]
  %s1 = inlined_call_operand.hbm [shape: bf16[1024,256], index: 1, kind: input, shape index: {}]
  %s2 = inlined_call_operand.vmem [shape: f32[1,256], index: 2, kind: input, shape index: {}]
  %s3 = inlined_call_operand.hbm [shape: bf16[256,128], index: 3, kind: input, shape index: {}]
  %s4 = inlined_call_operand.vmem [shape: f32[1,128], index: 4, kind: input, shape index: {}]
  %s5 = inlined_call_operand.hbm [shape: bf16[128,256], index: 5, kind: input, shape index: {}]
  %s6 = inlined_call_operand.vmem [shape: f32[1,256], index: 6, kind: input, shape index: {}]
  %s7 = inlined_call_operand.hbm [shape: bf16[256,1024], index: 7, kind: input, shape index: {}]
  %s8 = inlined_call_operand.vmem [shape: f32[1,1024], index: 8, kind: input, shape index: {}]
  %s9 = inlined_call_operand.hbm [shape: f32[8,1024], index: 9, kind: output, shape index: {}]
  %s10 = sld [smem:[#allocation0]]
  $region66: #{tpu_custom_call.1} parent=0
    _
  %s12 = ssub.s32 1, %s10
  %s13 = scalar_select 0, %s12, %s10
  $region1: #{tpu_custom_call.1} parent=0
    #allocation2 [shape = 'u8[32768]{0}', space=vmem, size = 0x8000, scoped, tag = 'input window, operand 0, single buffered']
    #allocation3 [shape = 's32[1]{0}', space=sflag, size = 0x4, scoped, tag = 'scoped memory for tpu_custom_call.1']
    #allocation4 [shape = 's32[1]{0}', space=sflag, size = 0x4, scoped, tag = 'scoped memory for tpu_custom_call.1']
    #allocation5 [shape = 'u8[524288]{0}', space=vmem, size = 0x80000, scoped, tag = 'input window, operand 1, single buffered']
    #allocation6 [shape = 's32[1]{0}', space=sflag, size = 0x4, scoped, tag = 'scoped memory for tpu_custom_call.1']
    #allocation7 [shape = 'u8[65536]{0}', space=vmem, size = 0x10000, scoped, tag = 'input window, operand 3, single buffered']
    #allocation8 [shape = 'u8[65536]{0}', space=vmem, size = 0x10000, scoped, tag = 'input window, operand 5, single buffered']
    #allocation9 [shape = 's32[1]{0}', space=sflag, size = 0x4, scoped, tag = 'scoped memory for tpu_custom_call.1']
    #allocation10 [shape = 'u8[524288]{0}', space=vmem, size = 0x80000, scoped, tag = 'input window, operand 7, single buffered']
    #allocation11 [shape = 'u8[32768]{0}', space=vmem, size = 0x8000, scoped, tag = 'output window, operand 0, single buffered']
    %14 = vsyncpa [#allocation3], 0
    %15 = vsyncpa [#allocation6], 0
    %16 = vsyncpa [#allocation9], 0
    %17 = vsyncpa [#allocation4], 0
    // Predicated region
    $region2: #{tpu_custom_call.1} parent=1 // pred_check
      _
    $region3: #{tpu_custom_call.1} parent=1 // pred_check_branch
      %19 = sbr.rel (0) target = $region5
    $region4: #{tpu_custom_call.1} parent=1 // pred_region
      %s21 = ssub.s32 1024, 1024
      %22 = vsyncadd [#allocation3], %s21
      %s24 = sshll.u32 [#allocation2], 4
      %s25 = int_to_ptr.vmem [resolvable:$true] %s24
      %27 = dma.hbm_to_vmem [thread:$0]  %s0, 1024, %s25, [#allocation3]
    $region5: #{tpu_custom_call.1} parent=1 // pred_fallthru
      _
    // Predicated region
    $region6: #{tpu_custom_call.1} parent=1 // pred_check
      _
    $region7: #{tpu_custom_call.1} parent=1 // pred_check_branch
      %29 = sbr.rel (0) target = $region9
    $region8: #{tpu_custom_call.1} parent=1 // pred_region
      %s31 = ssub.s32 16384, 16384
      %32 = vsyncadd [#allocation6], %s31
      %s33 = sshll.u32 [#allocation5], 4
      %s34 = int_to_ptr.vmem [resolvable:$true] %s33
      %39 = dma.hbm_to_vmem [thread:$0]  %s1, 16384, %s34, [#allocation6], 128, 128, 8
    $region9: #{tpu_custom_call.1} parent=1 // pred_fallthru
      _
    // Predicated region
    $region10: #{tpu_custom_call.1} parent=1 // pred_check
      _
    $region11: #{tpu_custom_call.1} parent=1 // pred_check_branch
      %41 = sbr.rel (0) target = $region13
    $region12: #{tpu_custom_call.1} parent=1 // pred_region
      _
    $region13: #{tpu_custom_call.1} parent=1 // pred_fallthru
      _
    // Predicated region
    $region14: #{tpu_custom_call.1} parent=1 // pred_check
      _
    $region15: #{tpu_custom_call.1} parent=1 // pred_check_branch
      %43 = sbr.rel (0) target = $region17
    $region16: #{tpu_custom_call.1} parent=1 // pred_region
      %s45 = ssub.s32 2048, 2048
      %46 = vsyncadd [#allocation6], %s45
      %s47 = sshll.u32 [#allocation7], 4
      %s48 = int_to_ptr.vmem [resolvable:$true] %s47
      %53 = dma.hbm_to_vmem [thread:$0]  %s3, 2048, %s48, [#allocation6], 64, 64, 4
    $region17: #{tpu_custom_call.1} parent=1 // pred_fallthru
      _
    // Predicated region
    $region18: #{tpu_custom_call.1} parent=1 // pred_check
      _
    $region19: #{tpu_custom_call.1} parent=1 // pred_check_branch
      %55 = sbr.rel (0) target = $region21
    $region20: #{tpu_custom_call.1} parent=1 // pred_region
      _
    $region21: #{tpu_custom_call.1} parent=1 // pred_fallthru
      _
    // Predicated region
    $region22: #{tpu_custom_call.1} parent=1 // pred_check
      _
    $region23: #{tpu_custom_call.1} parent=1 // pred_check_branch
      %57 = sbr.rel (0) target = $region25
    $region24: #{tpu_custom_call.1} parent=1 // pred_region
      %s59 = ssub.s32 2048, 2048
      %60 = vsyncadd [#allocation9], %s59
      %s61 = sshll.u32 [#allocation8], 4
      %s62 = int_to_ptr.vmem [resolvable:$true] %s61
      %67 = dma.hbm_to_vmem [thread:$0]  %s5, 2048, %s62, [#allocation9], 128, 128, 8
    $region25: #{tpu_custom_call.1} parent=1 // pred_fallthru
      _
    // Predicated region
    $region26: #{tpu_custom_call.1} parent=1 // pred_check
      _
    $region27: #{tpu_custom_call.1} parent=1 // pred_check_branch
      %69 = sbr.rel (0) target = $region29
    $region28: #{tpu_custom_call.1} parent=1 // pred_region
      _
    $region29: #{tpu_custom_call.1} parent=1 // pred_fallthru
      _
    // Predicated region
    $region30: #{tpu_custom_call.1} parent=1 // pred_check
      _
    $region31: #{tpu_custom_call.1} parent=1 // pred_check_branch
      %71 = sbr.rel (0) target = $region33
    $region32: #{tpu_custom_call.1} parent=1 // pred_region
      %s73 = ssub.s32 16384, 16384
      %74 = vsyncadd [#allocation9], %s73
      %s75 = sshll.u32 [#allocation10], 4
      %s76 = int_to_ptr.vmem [resolvable:$true] %s75
      %81 = dma.hbm_to_vmem [thread:$0]  %s7, 16384, %s76, [#allocation9], 512, 512, 32
    $region33: #{tpu_custom_call.1} parent=1 // pred_fallthru
      _
    // Predicated region
    $region34: #{tpu_custom_call.1} parent=1 // pred_check
      _
    $region35: #{tpu_custom_call.1} parent=1 // pred_check_branch
      %83 = sbr.rel (0) target = $region37
    $region36: #{tpu_custom_call.1} parent=1 // pred_region
      _
    $region37: #{tpu_custom_call.1} parent=1 // pred_fallthru
      _
    // Predicated region
    $region38: #{tpu_custom_call.1} parent=1 // pred_check
      _
    $region39: #{tpu_custom_call.1} parent=1 // pred_check_branch
      %85 = sbr.rel (0) target = $region41
    $region40: #{tpu_custom_call.1} parent=1 // pred_region
      %86 = dma.done [#allocation3], 1024
    $region41: #{tpu_custom_call.1} parent=1 // pred_fallthru
      _
    // Predicated region
    $region42: #{tpu_custom_call.1} parent=1 // pred_check
      _
    $region43: #{tpu_custom_call.1} parent=1 // pred_check_branch
      %88 = sbr.rel (0) target = $region45
    $region44: #{tpu_custom_call.1} parent=1 // pred_region
      %89 = dma.done [#allocation6], 16384
    $region45: #{tpu_custom_call.1} parent=1 // pred_fallthru
      _
    // Predicated region
    $region46: #{tpu_custom_call.1} parent=1 // pred_check
      _
    $region47: #{tpu_custom_call.1} parent=1 // pred_check_branch
      %91 = sbr.rel (0) target = $region49
    $region48: #{tpu_custom_call.1} parent=1 // pred_region
      %92 = dma.done [#allocation6], 2048
    $region49: #{tpu_custom_call.1} parent=1 // pred_fallthru
      _
    // Predicated region
    $region50: #{tpu_custom_call.1} parent=1 // pred_check
      _
    $region51: #{tpu_custom_call.1} parent=1 // pred_check_branch
      %94 = sbr.rel (0) target = $region53
    $region52: #{tpu_custom_call.1} parent=1 // pred_region
      %95 = dma.done [#allocation9], 2048
    $region53: #{tpu_custom_call.1} parent=1 // pred_fallthru
      _
    // Predicated region
    $region54: #{tpu_custom_call.1} parent=1 // pred_check
      _
    $region55: #{tpu_custom_call.1} parent=1 // pred_check_branch
      %97 = sbr.rel (0) target = $region57
    $region56: #{tpu_custom_call.1} parent=1 // pred_region
      %98 = dma.done [#allocation9], 16384
    $region57: #{tpu_custom_call.1} parent=1 // pred_fallthru
      _
    %v100 = vld [vmem:[#allocation2] sm:$0xff]
    %v101 = vld [vmem:[#allocation2 + $0x8] sm:$0xff]
    %v102 = vld [vmem:[#allocation2 + $0x10] sm:$0xff]
    %v103 = vld [vmem:[#allocation2 + $0x18] sm:$0xff]
    %v104 = vld [vmem:[#allocation2 + $0x20] sm:$0xff]
    %v105 = vld [vmem:[#allocation2 + $0x28] sm:$0xff]
    %v106 = vld [vmem:[#allocation2 + $0x30] sm:$0xff]
    %v107 = vld [vmem:[#allocation2 + $0x38] sm:$0xff]
    %v108 = vpack.c.bf16 %v100, %v100
    %v109 = vpack.c.bf16 %v101, %v101
    %v110 = vpack.c.bf16 %v102, %v102
    %v111 = vpack.c.bf16 %v103, %v103
    %v112 = vpack.c.bf16 %v104, %v104
    %v113 = vpack.c.bf16 %v105, %v105
    %v114 = vpack.c.bf16 %v106, %v106
    %v115 = vpack.c.bf16 %v107, %v107
    %v116 = vld [vmem:[#allocation5] sm:$0xff]
    %v117 = vld [vmem:[#allocation5 + $0x8] sm:$0xff]
    %v118 = vld [vmem:[#allocation5 + $0x10] sm:$0xff]
    %v119 = vld [vmem:[#allocation5 + $0x18] sm:$0xff]
    %v120 = vld [vmem:[#allocation5 + $0x20] sm:$0xff]
    %v121 = vld [vmem:[#allocation5 + $0x28] sm:$0xff]
    %v122 = vld [vmem:[#allocation5 + $0x30] sm:$0xff]
    %v123 = vld [vmem:[#allocation5 + $0x38] sm:$0xff]
    %v124 = vld [vmem:[#allocation5 + $0x40] sm:$0xff]
    %v125 = vld [vmem:[#allocation5 + $0x48] sm:$0xff]
    %v126 = vld [vmem:[#allocation5 + $0x50] sm:$0xff]
    %v127 = vld [vmem:[#allocation5 + $0x58] sm:$0xff]
    %v128 = vld [vmem:[#allocation5 + $0x60] sm:$0xff]
    %v129 = vld [vmem:[#allocation5 + $0x68] sm:$0xff]
    %v130 = vld [vmem:[#allocation5 + $0x70] sm:$0xff]
    %v131 = vld [vmem:[#allocation5 + $0x78] sm:$0xff]
    %v132 = vld [vmem:[#allocation5 + $0x80] sm:$0xff]
    %v133 = vld [vmem:[#allocation5 + $0x88] sm:$0xff]
    %v134 = vld [vmem:[#allocation5 + $0x90] sm:$0xff]
    %v135 = vld [vmem:[#allocation5 + $0x98] sm:$0xff]
    %v136 = vld [vmem:[#allocation5 + $0xa0] sm:$0xff]
    %v137 = vld [vmem:[#allocation5 + $0xa8] sm:$0xff]
    %v138 = vld [vmem:[#allocation5 + $0xb0] sm:$0xff]
    %v139 = vld [vmem:[#allocation5 + $0xb8] sm:$0xff]
    %v140 = vld [vmem:[#allocation5 + $0xc0] sm:$0xff]
    %v141 = vld [vmem:[#allocation5 + $0xc8] sm:$0xff]
    %v142 = vld [vmem:[#allocation5 + $0xd0] sm:$0xff]
    %v143 = vld [vmem:[#allocation5 + $0xd8] sm:$0xff]
    %v144 = vld [vmem:[#allocation5 + $0xe0] sm:$0xff]
    %v145 = vld [vmem:[#allocation5 + $0xe8] sm:$0xff]
    %v146 = vld [vmem:[#allocation5 + $0xf0] sm:$0xff]
    %v147 = vld [vmem:[#allocation5 + $0xf8] sm:$0xff]
    %v148 = vld [vmem:[#allocation5 + $0x100] sm:$0xff]
    %v149 = vld [vmem:[#allocation5 + $0x108] sm:$0xff]
    %v150 = vld [vmem:[#allocation5 + $0x110] sm:$0xff]
    %v151 = vld [vmem:[#allocation5 + $0x118] sm:$0xff]
    %v152 = vld [vmem:[#allocation5 + $0x120] sm:$0xff]
    %v153 = vld [vmem:[#allocation5 + $0x128] sm:$0xff]
    %v154 = vld [vmem:[#allocation5 + $0x130] sm:$0xff]
    %v155 = vld [vmem:[#allocation5 + $0x138] sm:$0xff]
    %v156 = vld [vmem:[#allocation5 + $0x140] sm:$0xff]
    %v157 = vld [vmem:[#allocation5 + $0x148] sm:$0xff]
    %v158 = vld [vmem:[#allocation5 + $0x150] sm:$0xff]
    %v159 = vld [vmem:[#allocation5 + $0x158] sm:$0xff]
    %v160 = vld [vmem:[#allocation5 + $0x160] sm:$0xff]
    %v161 = vld [vmem:[#allocation5 + $0x168] sm:$0xff]
    %v162 = vld [vmem:[#allocation5 + $0x170] sm:$0xff]
    %v163 = vld [vmem:[#allocation5 + $0x178] sm:$0xff]
    %v164 = vld [vmem:[#allocation5 + $0x180] sm:$0xff]
    %v165 = vld [vmem:[#allocation5 + $0x188] sm:$0xff]
    %v166 = vld [vmem:[#allocation5 + $0x190] sm:$0xff]
    %v167 = vld [vmem:[#allocation5 + $0x198] sm:$0xff]
    %v168 = vld [vmem:[#allocation5 + $0x1a0] sm:$0xff]
    %v169 = vld [vmem:[#allocation5 + $0x1a8] sm:$0xff]
    %v170 = vld [vmem:[#allocation5 + $0x1b0] sm:$0xff]
    %v171 = vld [vmem:[#allocation5 + $0x1b8] sm:$0xff]
    %v172 = vld [vmem:[#allocation5 + $0x1c0] sm:$0xff]
    %v173 = vld [vmem:[#allocation5 + $0x1c8] sm:$0xff]
    %v174 = vld [vmem:[#allocation5 + $0x1d0] sm:$0xff]
    %v175 = vld [vmem:[#allocation5 + $0x1d8] sm:$0xff]
    %v176 = vld [vmem:[#allocation5 + $0x1e0] sm:$0xff]
    %v177 = vld [vmem:[#allocation5 + $0x1e8] sm:$0xff]
    %v178 = vld [vmem:[#allocation5 + $0x1f0] sm:$0xff]
    %v179 = vld [vmem:[#allocation5 + $0x1f8] sm:$0xff]
    %v180 = vld [vmem:[#allocation5 + $0x200] sm:$0xff]
    %v181 = vld [vmem:[#allocation5 + $0x208] sm:$0xff]
    %v182 = vld [vmem:[#allocation5 + $0x210] sm:$0xff]
    %v183 = vld [vmem:[#allocation5 + $0x218] sm:$0xff]
    %v184 = vld [vmem:[#allocation5 + $0x220] sm:$0xff]
    %v185 = vld [vmem:[#allocation5 + $0x228] sm:$0xff]
    %v186 = vld [vmem:[#allocation5 + $0x230] sm:$0xff]
    %v187 = vld [vmem:[#allocation5 + $0x238] sm:$0xff]
    %v188 = vld [vmem:[#allocation5 + $0x240] sm:$0xff]
    %v189 = vld [vmem:[#allocation5 + $0x248] sm:$0xff]
    %v190 = vld [vmem:[#allocation5 + $0x250] sm:$0xff]
    %v191 = vld [vmem:[#allocation5 + $0x258] sm:$0xff]
    %v192 = vld [vmem:[#allocation5 + $0x260] sm:$0xff]
    %v193 = vld [vmem:[#allocation5 + $0x268] sm:$0xff]
    %v194 = vld [vmem:[#allocation5 + $0x270] sm:$0xff]
    %v195 = vld [vmem:[#allocation5 + $0x278] sm:$0xff]
    %v196 = vld [vmem:[#allocation5 + $0x280] sm:$0xff]
    %v197 = vld [vmem:[#allocation5 + $0x288] sm:$0xff]
    %v198 = vld [vmem:[#allocation5 + $0x290] sm:$0xff]
    %v199 = vld [vmem:[#allocation5 + $0x298] sm:$0xff]
    %v200 = vld [vmem:[#allocation5 + $0x2a0] sm:$0xff]
    %v201 = vld [vmem:[#allocation5 + $0x2a8] sm:$0xff]
    %v202 = vld [vmem:[#allocation5 + $0x2b0] sm:$0xff]
    %v203 = vld [vmem:[#allocation5 + $0x2b8] sm:$0xff]
    %v204 = vld [vmem:[#allocation5 + $0x2c0] sm:$0xff]
    %v205 = vld [vmem:[#allocation5 + $0x2c8] sm:$0xff]
    %v206 = vld [vmem:[#allocation5 + $0x2d0] sm:$0xff]
    %v207 = vld [vmem:[#allocation5 + $0x2d8] sm:$0xff]
    %v208 = vld [vmem:[#allocation5 + $0x2e0] sm:$0xff]
    %v209 = vld [vmem:[#allocation5 + $0x2e8] sm:$0xff]
    %v210 = vld [vmem:[#allocation5 + $0x2f0] sm:$0xff]
    %v211 = vld [vmem:[#allocation5 + $0x2f8] sm:$0xff]
    %v212 = vld [vmem:[#allocation5 + $0x300] sm:$0xff]
    %v213 = vld [vmem:[#allocation5 + $0x308] sm:$0xff]
    %v214 = vld [vmem:[#allocation5 + $0x310] sm:$0xff]
    %v215 = vld [vmem:[#allocation5 + $0x318] sm:$0xff]
    %v216 = vld [vmem:[#allocation5 + $0x320] sm:$0xff]
    %v217 = vld [vmem:[#allocation5 + $0x328] sm:$0xff]
    %v218 = vld [vmem:[#allocation5 + $0x330] sm:$0xff]
    %v219 = vld [vmem:[#allocation5 + $0x338] sm:$0xff]
    %v220 = vld [vmem:[#allocation5 + $0x340] sm:$0xff]
    %v221 = vld [vmem:[#allocation5 + $0x348] sm:$0xff]
    %v222 = vld [vmem:[#allocation5 + $0x350] sm:$0xff]
    %v223 = vld [vmem:[#allocation5 + $0x358] sm:$0xff]
    %v224 = vld [vmem:[#allocation5 + $0x360] sm:$0xff]
    %v225 = vld [vmem:[#allocation5 + $0x368] sm:$0xff]
    %v226 = vld [vmem:[#allocation5 + $0x370] sm:$0xff]
    %v227 = vld [vmem:[#allocation5 + $0x378] sm:$0xff]
    %v228 = vld [vmem:[#allocation5 + $0x380] sm:$0xff]
    %v229 = vld [vmem:[#allocation5 + $0x388] sm:$0xff]
    %v230 = vld [vmem:[#allocation5 + $0x390] sm:$0xff]
    %v231 = vld [vmem:[#allocation5 + $0x398] sm:$0xff]
    %v232 = vld [vmem:[#allocation5 + $0x3a0] sm:$0xff]
    %v233 = vld [vmem:[#allocation5 + $0x3a8] sm:$0xff]
    %v234 = vld [vmem:[#allocation5 + $0x3b0] sm:$0xff]
    %v235 = vld [vmem:[#allocation5 + $0x3b8] sm:$0xff]
    %v236 = vld [vmem:[#allocation5 + $0x3c0] sm:$0xff]
    %v237 = vld [vmem:[#allocation5 + $0x3c8] sm:$0xff]
    %v238 = vld [vmem:[#allocation5 + $0x3d0] sm:$0xff]
    %v239 = vld [vmem:[#allocation5 + $0x3d8] sm:$0xff]
    %v240 = vld [vmem:[#allocation5 + $0x3e0] sm:$0xff]
    %v241 = vld [vmem:[#allocation5 + $0x3e8] sm:$0xff]
    %v242 = vld [vmem:[#allocation5 + $0x3f0] sm:$0xff]
    %v243 = vld [vmem:[#allocation5 + $0x3f8] sm:$0xff]
    %v244 = vld [vmem:[%s2] sm:$0x3]
    %v246 = vlaneseq
    %v247 = vshrl.u32 %v246, 7
    %v248 = vsub.s32 0, %v247
    %v249 = vrot.slane %v244, %v248
    %v250 = vlaneseq
    %v251 = vshrl.u32 %v250, 7
    %v252 = vsub.s32 1, %v251
    %v253 = vrot.slane %v244, %v252
    %v384 = vunpack.c.l.b16 %v116
    %v385 = vunpack.c.h.b16 %v116
    %v386 = vunpack.c.l.b16 %v117
    %v387 = vunpack.c.h.b16 %v117
    %v388 = vunpack.c.l.b16 %v118
    %v389 = vunpack.c.h.b16 %v118
    %v390 = vunpack.c.l.b16 %v119
    %v391 = vunpack.c.h.b16 %v119
    %v392 = vunpack.c.l.b16 %v120
    %v393 = vunpack.c.h.b16 %v120
    %v394 = vunpack.c.l.b16 %v121
    %v395 = vunpack.c.h.b16 %v121
    %v396 = vunpack.c.l.b16 %v122
    %v397 = vunpack.c.h.b16 %v122
    %v398 = vunpack.c.l.b16 %v123
    %v399 = vunpack.c.h.b16 %v123
    %v400 = vunpack.c.l.b16 %v124
    %v401 = vunpack.c.h.b16 %v124
    %v402 = vunpack.c.l.b16 %v125
    %v403 = vunpack.c.h.b16 %v125
    %v404 = vunpack.c.l.b16 %v126
    %v405 = vunpack.c.h.b16 %v126
    %v406 = vunpack.c.l.b16 %v127
    %v407 = vunpack.c.h.b16 %v127
    %v408 = vunpack.c.l.b16 %v128
    %v409 = vunpack.c.h.b16 %v128
    %v410 = vunpack.c.l.b16 %v129
    %v411 = vunpack.c.h.b16 %v129
    %v412 = vunpack.c.l.b16 %v130
    %v413 = vunpack.c.h.b16 %v130
    %v414 = vunpack.c.l.b16 %v131
    %v415 = vunpack.c.h.b16 %v131
    %v416 = vunpack.c.l.b16 %v132
    %v417 = vunpack.c.h.b16 %v132
    %v418 = vunpack.c.l.b16 %v133
    %v419 = vunpack.c.h.b16 %v133
    %v420 = vunpack.c.l.b16 %v134
    %v421 = vunpack.c.h.b16 %v134
    %v422 = vunpack.c.l.b16 %v135
    %v423 = vunpack.c.h.b16 %v135
    %v424 = vunpack.c.l.b16 %v136
    %v425 = vunpack.c.h.b16 %v136
    %v426 = vunpack.c.l.b16 %v137
    %v427 = vunpack.c.h.b16 %v137
    %v428 = vunpack.c.l.b16 %v138
    %v429 = vunpack.c.h.b16 %v138
    %v430 = vunpack.c.l.b16 %v139
    %v431 = vunpack.c.h.b16 %v139
    %v432 = vunpack.c.l.b16 %v140
    %v433 = vunpack.c.h.b16 %v140
    %v434 = vunpack.c.l.b16 %v141
    %v435 = vunpack.c.h.b16 %v141
    %v436 = vunpack.c.l.b16 %v142
    %v437 = vunpack.c.h.b16 %v142
    %v438 = vunpack.c.l.b16 %v143
    %v439 = vunpack.c.h.b16 %v143
    %v440 = vunpack.c.l.b16 %v144
    %v441 = vunpack.c.h.b16 %v144
    %v442 = vunpack.c.l.b16 %v145
    %v443 = vunpack.c.h.b16 %v145
    %v444 = vunpack.c.l.b16 %v146
    %v445 = vunpack.c.h.b16 %v146
    %v446 = vunpack.c.l.b16 %v147
    %v447 = vunpack.c.h.b16 %v147
    %v448 = vunpack.c.l.b16 %v148
    %v449 = vunpack.c.h.b16 %v148
    %v450 = vunpack.c.l.b16 %v149
    %v451 = vunpack.c.h.b16 %v149
    %v452 = vunpack.c.l.b16 %v150
    %v453 = vunpack.c.h.b16 %v150
    %v454 = vunpack.c.l.b16 %v151
    %v455 = vunpack.c.h.b16 %v151
    %v456 = vunpack.c.l.b16 %v152
    %v457 = vunpack.c.h.b16 %v152
    %v458 = vunpack.c.l.b16 %v153
    %v459 = vunpack.c.h.b16 %v153
    %v460 = vunpack.c.l.b16 %v154
    %v461 = vunpack.c.h.b16 %v154
    %v462 = vunpack.c.l.b16 %v155
    %v463 = vunpack.c.h.b16 %v155
    %v464 = vunpack.c.l.b16 %v156
    %v465 = vunpack.c.h.b16 %v156
    %v466 = vunpack.c.l.b16 %v157
    %v467 = vunpack.c.h.b16 %v157
    %v468 = vunpack.c.l.b16 %v158
    %v469 = vunpack.c.h.b16 %v158
    %v470 = vunpack.c.l.b16 %v159
    %v471 = vunpack.c.h.b16 %v159
    %v472 = vunpack.c.l.b16 %v160
    %v473 = vunpack.c.h.b16 %v160
    %v474 = vunpack.c.l.b16 %v161
    %v475 = vunpack.c.h.b16 %v161
    %v476 = vunpack.c.l.b16 %v162
    %v477 = vunpack.c.h.b16 %v162
    %v478 = vunpack.c.l.b16 %v163
    %v479 = vunpack.c.h.b16 %v163
    %v480 = vunpack.c.l.b16 %v164
    %v481 = vunpack.c.h.b16 %v164
    %v482 = vunpack.c.l.b16 %v165
    %v483 = vunpack.c.h.b16 %v165
    %v484 = vunpack.c.l.b16 %v166
    %v485 = vunpack.c.h.b16 %v166
    %v486 = vunpack.c.l.b16 %v167
    %v487 = vunpack.c.h.b16 %v167
    %v488 = vunpack.c.l.b16 %v168
    %v489 = vunpack.c.h.b16 %v168
    %v490 = vunpack.c.l.b16 %v169
    %v491 = vunpack.c.h.b16 %v169
    %v492 = vunpack.c.l.b16 %v170
    %v493 = vunpack.c.h.b16 %v170
    %v494 = vunpack.c.l.b16 %v171
    %v495 = vunpack.c.h.b16 %v171
    %v496 = vunpack.c.l.b16 %v172
    %v497 = vunpack.c.h.b16 %v172
    %v498 = vunpack.c.l.b16 %v173
    %v499 = vunpack.c.h.b16 %v173
    %v500 = vunpack.c.l.b16 %v174
    %v501 = vunpack.c.h.b16 %v174
    %v502 = vunpack.c.l.b16 %v175
    %v503 = vunpack.c.h.b16 %v175
    %v504 = vunpack.c.l.b16 %v176
    %v505 = vunpack.c.h.b16 %v176
    %v506 = vunpack.c.l.b16 %v177
    %v507 = vunpack.c.h.b16 %v177
    %v508 = vunpack.c.l.b16 %v178
    %v509 = vunpack.c.h.b16 %v178
    %v510 = vunpack.c.l.b16 %v179
    %v511 = vunpack.c.h.b16 %v179
    %v512 = vunpack.c.l.b16 %v180
    %v513 = vunpack.c.h.b16 %v180
    %v514 = vunpack.c.l.b16 %v181
    %v515 = vunpack.c.h.b16 %v181
    %v516 = vunpack.c.l.b16 %v182
    %v517 = vunpack.c.h.b16 %v182
    %v518 = vunpack.c.l.b16 %v183
    %v519 = vunpack.c.h.b16 %v183
    %v520 = vunpack.c.l.b16 %v184
    %v521 = vunpack.c.h.b16 %v184
    %v522 = vunpack.c.l.b16 %v185
    %v523 = vunpack.c.h.b16 %v185
    %v524 = vunpack.c.l.b16 %v186
    %v525 = vunpack.c.h.b16 %v186
    %v526 = vunpack.c.l.b16 %v187
    %v527 = vunpack.c.h.b16 %v187
    %v528 = vunpack.c.l.b16 %v188
    %v529 = vunpack.c.h.b16 %v188
    %v530 = vunpack.c.l.b16 %v189
    %v531 = vunpack.c.h.b16 %v189
    %v532 = vunpack.c.l.b16 %v190
    %v533 = vunpack.c.h.b16 %v190
    %v534 = vunpack.c.l.b16 %v191
    %v535 = vunpack.c.h.b16 %v191
    %v536 = vunpack.c.l.b16 %v192
    %v537 = vunpack.c.h.b16 %v192
    %v538 = vunpack.c.l.b16 %v193
    %v539 = vunpack.c.h.b16 %v193
    %v540 = vunpack.c.l.b16 %v194
    %v541 = vunpack.c.h.b16 %v194
    %v542 = vunpack.c.l.b16 %v195
    %v543 = vunpack.c.h.b16 %v195
    %v544 = vunpack.c.l.b16 %v196
    %v545 = vunpack.c.h.b16 %v196
    %v546 = vunpack.c.l.b16 %v197
    %v547 = vunpack.c.h.b16 %v197
    %v548 = vunpack.c.l.b16 %v198
    %v549 = vunpack.c.h.b16 %v198
    %v550 = vunpack.c.l.b16 %v199
    %v551 = vunpack.c.h.b16 %v199
    %v552 = vunpack.c.l.b16 %v200
    %v553 = vunpack.c.h.b16 %v200
    %v554 = vunpack.c.l.b16 %v201
    %v555 = vunpack.c.h.b16 %v201
    %v556 = vunpack.c.l.b16 %v202
    %v557 = vunpack.c.h.b16 %v202
    %v558 = vunpack.c.l.b16 %v203
    %v559 = vunpack.c.h.b16 %v203
    %v560 = vunpack.c.l.b16 %v204
    %v561 = vunpack.c.h.b16 %v204
    %v562 = vunpack.c.l.b16 %v205
    %v563 = vunpack.c.h.b16 %v205
    %v564 = vunpack.c.l.b16 %v206
    %v565 = vunpack.c.h.b16 %v206
    %v566 = vunpack.c.l.b16 %v207
    %v567 = vunpack.c.h.b16 %v207
    %v568 = vunpack.c.l.b16 %v208
    %v569 = vunpack.c.h.b16 %v208
    %v570 = vunpack.c.l.b16 %v209
    %v571 = vunpack.c.h.b16 %v209
    %v572 = vunpack.c.l.b16 %v210
    %v573 = vunpack.c.h.b16 %v210
    %v574 = vunpack.c.l.b16 %v211
    %v575 = vunpack.c.h.b16 %v211
    %v576 = vunpack.c.l.b16 %v212
    %v577 = vunpack.c.h.b16 %v212
    %v578 = vunpack.c.l.b16 %v213
    %v579 = vunpack.c.h.b16 %v213
    %v580 = vunpack.c.l.b16 %v214
    %v581 = vunpack.c.h.b16 %v214
    %v582 = vunpack.c.l.b16 %v215
    %v583 = vunpack.c.h.b16 %v215
    %v584 = vunpack.c.l.b16 %v216
    %v585 = vunpack.c.h.b16 %v216
    %v586 = vunpack.c.l.b16 %v217
    %v587 = vunpack.c.h.b16 %v217
    %v588 = vunpack.c.l.b16 %v218
    %v589 = vunpack.c.h.b16 %v218
    %v590 = vunpack.c.l.b16 %v219
    %v591 = vunpack.c.h.b16 %v219
    %v592 = vunpack.c.l.b16 %v220
    %v593 = vunpack.c.h.b16 %v220
    %v594 = vunpack.c.l.b16 %v221
    %v595 = vunpack.c.h.b16 %v221
    %v596 = vunpack.c.l.b16 %v222
    %v597 = vunpack.c.h.b16 %v222
    %v598 = vunpack.c.l.b16 %v223
    %v599 = vunpack.c.h.b16 %v223
    %v600 = vunpack.c.l.b16 %v224
    %v601 = vunpack.c.h.b16 %v224
    %v602 = vunpack.c.l.b16 %v225
    %v603 = vunpack.c.h.b16 %v225
    %v604 = vunpack.c.l.b16 %v226
    %v605 = vunpack.c.h.b16 %v226
    %v606 = vunpack.c.l.b16 %v227
    %v607 = vunpack.c.h.b16 %v227
    %v608 = vunpack.c.l.b16 %v228
    %v609 = vunpack.c.h.b16 %v228
    %v610 = vunpack.c.l.b16 %v229
    %v611 = vunpack.c.h.b16 %v229
    %v612 = vunpack.c.l.b16 %v230
    %v613 = vunpack.c.h.b16 %v230
    %v614 = vunpack.c.l.b16 %v231
    %v615 = vunpack.c.h.b16 %v231
    %v616 = vunpack.c.l.b16 %v232
    %v617 = vunpack.c.h.b16 %v232
    %v618 = vunpack.c.l.b16 %v233
    %v619 = vunpack.c.h.b16 %v233
    %v620 = vunpack.c.l.b16 %v234
    %v621 = vunpack.c.h.b16 %v234
    %v622 = vunpack.c.l.b16 %v235
    %v623 = vunpack.c.h.b16 %v235
    %v624 = vunpack.c.l.b16 %v236
    %v625 = vunpack.c.h.b16 %v236
    %v626 = vunpack.c.l.b16 %v237
    %v627 = vunpack.c.h.b16 %v237
    %v628 = vunpack.c.l.b16 %v238
    %v629 = vunpack.c.h.b16 %v238
    %v630 = vunpack.c.l.b16 %v239
    %v631 = vunpack.c.h.b16 %v239
    %v632 = vunpack.c.l.b16 %v240
    %v633 = vunpack.c.h.b16 %v240
    %v634 = vunpack.c.l.b16 %v241
    %v635 = vunpack.c.h.b16 %v241
    %v636 = vunpack.c.l.b16 %v242
    %v637 = vunpack.c.h.b16 %v242
    %v638 = vunpack.c.l.b16 %v243
    %v639 = vunpack.c.h.b16 %v243
    %v640 = vpack.c.b16 %v386, %v384
    %v641 = vpack.c.b16 %v387, %v385
    %v642 = vpack.c.b16 %v390, %v388
    %v643 = vpack.c.b16 %v391, %v389
    %v644 = vpack.c.b16 %v394, %v392
    %v645 = vpack.c.b16 %v395, %v393
    %v646 = vpack.c.b16 %v398, %v396
    %v647 = vpack.c.b16 %v399, %v397
    %v648 = vpack.c.b16 %v402, %v400
    %v649 = vpack.c.b16 %v403, %v401
    %v650 = vpack.c.b16 %v406, %v404
    %v651 = vpack.c.b16 %v407, %v405
    %v652 = vpack.c.b16 %v410, %v408
    %v653 = vpack.c.b16 %v411, %v409
    %v654 = vpack.c.b16 %v414, %v412
    %v655 = vpack.c.b16 %v415, %v413
    %v656 = vpack.c.b16 %v418, %v416
    %v657 = vpack.c.b16 %v419, %v417
    %v658 = vpack.c.b16 %v422, %v420
    %v659 = vpack.c.b16 %v423, %v421
    %v660 = vpack.c.b16 %v426, %v424
    %v661 = vpack.c.b16 %v427, %v425
    %v662 = vpack.c.b16 %v430, %v428
    %v663 = vpack.c.b16 %v431, %v429
    %v664 = vpack.c.b16 %v434, %v432
    %v665 = vpack.c.b16 %v435, %v433
    %v666 = vpack.c.b16 %v438, %v436
    %v667 = vpack.c.b16 %v439, %v437
    %v668 = vpack.c.b16 %v442, %v440
    %v669 = vpack.c.b16 %v443, %v441
    %v670 = vpack.c.b16 %v446, %v444
    %v671 = vpack.c.b16 %v447, %v445
    %v672 = vpack.c.b16 %v450, %v448
    %v673 = vpack.c.b16 %v451, %v449
    %v674 = vpack.c.b16 %v454, %v452
    %v675 = vpack.c.b16 %v455, %v453
    %v676 = vpack.c.b16 %v458, %v456
    %v677 = vpack.c.b16 %v459, %v457
    %v678 = vpack.c.b16 %v462, %v460
    %v679 = vpack.c.b16 %v463, %v461
    %v680 = vpack.c.b16 %v466, %v464
    %v681 = vpack.c.b16 %v467, %v465
    %v682 = vpack.c.b16 %v470, %v468
    %v683 = vpack.c.b16 %v471, %v469
    %v684 = vpack.c.b16 %v474, %v472
    %v685 = vpack.c.b16 %v475, %v473
    %v686 = vpack.c.b16 %v478, %v476
    %v687 = vpack.c.b16 %v479, %v477
    %v688 = vpack.c.b16 %v482, %v480
    %v689 = vpack.c.b16 %v483, %v481
    %v690 = vpack.c.b16 %v486, %v484
    %v691 = vpack.c.b16 %v487, %v485
    %v692 = vpack.c.b16 %v490, %v488
    %v693 = vpack.c.b16 %v491, %v489
    %v694 = vpack.c.b16 %v494, %v492
    %v695 = vpack.c.b16 %v495, %v493
    %v696 = vpack.c.b16 %v498, %v496
    %v697 = vpack.c.b16 %v499, %v497
    %v698 = vpack.c.b16 %v502, %v500
    %v699 = vpack.c.b16 %v503, %v501
    %v700 = vpack.c.b16 %v506, %v504
    %v701 = vpack.c.b16 %v507, %v505
    %v702 = vpack.c.b16 %v510, %v508
    %v703 = vpack.c.b16 %v511, %v509
    %v704 = vpack.c.b16 %v514, %v512
    %v705 = vpack.c.b16 %v515, %v513
    %v706 = vpack.c.b16 %v518, %v516
    %v707 = vpack.c.b16 %v519, %v517
    %v708 = vpack.c.b16 %v522, %v520
    %v709 = vpack.c.b16 %v523, %v521
    %v710 = vpack.c.b16 %v526, %v524
    %v711 = vpack.c.b16 %v527, %v525
    %v712 = vpack.c.b16 %v530, %v528
    %v713 = vpack.c.b16 %v531, %v529
    %v714 = vpack.c.b16 %v534, %v532
    %v715 = vpack.c.b16 %v535, %v533
    %v716 = vpack.c.b16 %v538, %v536
    %v717 = vpack.c.b16 %v539, %v537
    %v718 = vpack.c.b16 %v542, %v540
    %v719 = vpack.c.b16 %v543, %v541
    %v720 = vpack.c.b16 %v546, %v544
    %v721 = vpack.c.b16 %v547, %v545
    %v722 = vpack.c.b16 %v550, %v548
    %v723 = vpack.c.b16 %v551, %v549
    %v724 = vpack.c.b16 %v554, %v552
    %v725 = vpack.c.b16 %v555, %v553
    %v726 = vpack.c.b16 %v558, %v556
    %v727 = vpack.c.b16 %v559, %v557
    %v728 = vpack.c.b16 %v562, %v560
    %v729 = vpack.c.b16 %v563, %v561
    %v730 = vpack.c.b16 %v566, %v564
    %v731 = vpack.c.b16 %v567, %v565
    %v732 = vpack.c.b16 %v570, %v568
    %v733 = vpack.c.b16 %v571, %v569
    %v734 = vpack.c.b16 %v574, %v572
    %v735 = vpack.c.b16 %v575, %v573
    %v736 = vpack.c.b16 %v578, %v576
    %v737 = vpack.c.b16 %v579, %v577
    %v738 = vpack.c.b16 %v582, %v580
    %v739 = vpack.c.b16 %v583, %v581
    %v740 = vpack.c.b16 %v586, %v584
    %v741 = vpack.c.b16 %v587, %v585
    %v742 = vpack.c.b16 %v590, %v588
    %v743 = vpack.c.b16 %v591, %v589
    %v744 = vpack.c.b16 %v594, %v592
    %v745 = vpack.c.b16 %v595, %v593
    %v746 = vpack.c.b16 %v598, %v596
    %v747 = vpack.c.b16 %v599, %v597
    %v748 = vpack.c.b16 %v602, %v600
    %v749 = vpack.c.b16 %v603, %v601
    %v750 = vpack.c.b16 %v606, %v604
    %v751 = vpack.c.b16 %v607, %v605
    %v752 = vpack.c.b16 %v610, %v608
    %v753 = vpack.c.b16 %v611, %v609
    %v754 = vpack.c.b16 %v614, %v612
    %v755 = vpack.c.b16 %v615, %v613
    %v756 = vpack.c.b16 %v618, %v616
    %v757 = vpack.c.b16 %v619, %v617
    %v758 = vpack.c.b16 %v622, %v620
    %v759 = vpack.c.b16 %v623, %v621
    %v760 = vpack.c.b16 %v626, %v624
    %v761 = vpack.c.b16 %v627, %v625
    %v762 = vpack.c.b16 %v630, %v628
    %v763 = vpack.c.b16 %v631, %v629
    %v764 = vpack.c.b16 %v634, %v632
    %v765 = vpack.c.b16 %v635, %v633
    %v766 = vpack.c.b16 %v638, %v636
    %v767 = vpack.c.b16 %v639, %v637
    %896 = vmatprep.subr.bf16.mxu0 %v641
    %897 = vmatpush1.bf16.msra.mxu0 %v640
    %898 = vmatprep.subr.bf16.mxu0 %v643
    %899 = vmatpush1.bf16.msra.mxu0 %v642
    %900 = vmatprep.subr.bf16.mxu0 %v645
    %901 = vmatpush1.bf16.msra.mxu0 %v644
    %902 = vmatprep.subr.bf16.mxu0 %v647
    %903 = vmatpush1.bf16.msra.mxu0 %v646
    %904 = vmatprep.subr.bf16.mxu0 %v649
    %905 = vmatpush1.bf16.msra.mxu0 %v648
    %906 = vmatprep.subr.bf16.mxu0 %v651
    %907 = vmatpush1.bf16.msra.mxu0 %v650
    %908 = vmatprep.subr.bf16.mxu0 %v653
    %909 = vmatpush1.bf16.msra.mxu0 %v652
    %910 = vmatprep.subr.bf16.mxu0 %v655
    %911 = vmatpush1.bf16.msra.mxu0 %v654
    %912 = vmatprep.subr.bf16.mxu0 %v657
    %913 = vmatpush1.bf16.msra.mxu0 %v656
    %914 = vmatprep.subr.bf16.mxu0 %v659
    %915 = vmatpush1.bf16.msra.mxu0 %v658
    %916 = vmatprep.subr.bf16.mxu0 %v661
    %917 = vmatpush1.bf16.msra.mxu0 %v660
    %918 = vmatprep.subr.bf16.mxu0 %v663
    %919 = vmatpush1.bf16.msra.mxu0 %v662
    %920 = vmatprep.subr.bf16.mxu0 %v665
    %921 = vmatpush1.bf16.msra.mxu0 %v664
    %922 = vmatprep.subr.bf16.mxu0 %v667
    %923 = vmatpush1.bf16.msra.mxu0 %v666
    %924 = vmatprep.subr.bf16.mxu0 %v669
    %925 = vmatpush1.bf16.msra.mxu0 %v668
    %926 = vmatprep.subr.bf16.mxu0 %v671
    %927 = vmatpush1.bf16.msra.mxu0 %v670
    %928 = vmatprep.mubr.bf16.mxu0 %v109
    %929 = vmatmul.mubr.bf16.gmra.mrb[0].mxu0 %v108
    %v930 = vpop.f32.mrb[0].mxu0
    %v931 = vadd.f32 %v249, %v930
    %v932 = vpop.f32.mrb[0].mxu0
    %v933 = vadd.f32 %v253, %v932
    %v934 = vpop.f32.mrb[0].mxu0
    %v935 = vpop.f32.mrb[0].mxu0
    %936 = vdwg.mxu0
    %937 = vmatprep.subr.bf16.mxu0 %v673
    %938 = vmatpush1.bf16.msra.mxu0 %v672
    %939 = vmatprep.subr.bf16.mxu0 %v675
    %940 = vmatpush1.bf16.msra.mxu0 %v674
    %941 = vmatprep.subr.bf16.mxu0 %v677
    %942 = vmatpush1.bf16.msra.mxu0 %v676
    %943 = vmatprep.subr.bf16.mxu0 %v679
    %944 = vmatpush1.bf16.msra.mxu0 %v678
    %945 = vmatprep.subr.bf16.mxu0 %v681
    %946 = vmatpush1.bf16.msra.mxu0 %v680
    %947 = vmatprep.subr.bf16.mxu0 %v683
    %948 = vmatpush1.bf16.msra.mxu0 %v682
    %949 = vmatprep.subr.bf16.mxu0 %v685
    %950 = vmatpush1.bf16.msra.mxu0 %v684
    %951 = vmatprep.subr.bf16.mxu0 %v687
    %952 = vmatpush1.bf16.msra.mxu0 %v686
    %953 = vmatprep.subr.bf16.mxu0 %v689
    %954 = vmatpush1.bf16.msra.mxu0 %v688
    %955 = vmatprep.subr.bf16.mxu0 %v691
    %956 = vmatpush1.bf16.msra.mxu0 %v690
    %957 = vmatprep.subr.bf16.mxu0 %v693
    %958 = vmatpush1.bf16.msra.mxu0 %v692
    %959 = vmatprep.subr.bf16.mxu0 %v695
    %960 = vmatpush1.bf16.msra.mxu0 %v694
    %961 = vmatprep.subr.bf16.mxu0 %v697
    %962 = vmatpush1.bf16.msra.mxu0 %v696
    %963 = vmatprep.subr.bf16.mxu0 %v699
    %964 = vmatpush1.bf16.msra.mxu0 %v698
    %965 = vmatprep.subr.bf16.mxu0 %v701
    %966 = vmatpush1.bf16.msra.mxu0 %v700
    %967 = vmatprep.subr.bf16.mxu0 %v703
    %968 = vmatpush1.bf16.msra.mxu0 %v702
    %969 = vmatprep.mubr.bf16.mxu0 %v111
    %970 = vmatmul.mubr.bf16.gmra.mrb[0].mxu0 %v110
    %v971 = vpop.f32.mrb[0].mxu0
    %v972 = vadd.f32 %v931, %v971
    %v973 = vpop.f32.mrb[0].mxu0
    %v974 = vadd.f32 %v933, %v973
    %v975 = vpop.f32.mrb[0].mxu0
    %v976 = vpop.f32.mrb[0].mxu0
    %977 = vdwg.mxu0
    %978 = vmatprep.subr.bf16.mxu0 %v705
    %979 = vmatpush1.bf16.msra.mxu0 %v704
    %980 = vmatprep.subr.bf16.mxu0 %v707
    %981 = vmatpush1.bf16.msra.mxu0 %v706
    %982 = vmatprep.subr.bf16.mxu0 %v709
    %983 = vmatpush1.bf16.msra.mxu0 %v708
    %984 = vmatprep.subr.bf16.mxu0 %v711
    %985 = vmatpush1.bf16.msra.mxu0 %v710
    %986 = vmatprep.subr.bf16.mxu0 %v713
    %987 = vmatpush1.bf16.msra.mxu0 %v712
    %988 = vmatprep.subr.bf16.mxu0 %v715
    %989 = vmatpush1.bf16.msra.mxu0 %v714
    %990 = vmatprep.subr.bf16.mxu0 %v717
    %991 = vmatpush1.bf16.msra.mxu0 %v716
    %992 = vmatprep.subr.bf16.mxu0 %v719
    %993 = vmatpush1.bf16.msra.mxu0 %v718
    %994 = vmatprep.subr.bf16.mxu0 %v721
    %995 = vmatpush1.bf16.msra.mxu0 %v720
    %996 = vmatprep.subr.bf16.mxu0 %v723
    %997 = vmatpush1.bf16.msra.mxu0 %v722
    %998 = vmatprep.subr.bf16.mxu0 %v725
    %999 = vmatpush1.bf16.msra.mxu0 %v724
    %1000 = vmatprep.subr.bf16.mxu0 %v727
    %1001 = vmatpush1.bf16.msra.mxu0 %v726
    %1002 = vmatprep.subr.bf16.mxu0 %v729
    %1003 = vmatpush1.bf16.msra.mxu0 %v728
    %1004 = vmatprep.subr.bf16.mxu0 %v731
    %1005 = vmatpush1.bf16.msra.mxu0 %v730
    %1006 = vmatprep.subr.bf16.mxu0 %v733
    %1007 = vmatpush1.bf16.msra.mxu0 %v732
    %1008 = vmatprep.subr.bf16.mxu0 %v735
    %1009 = vmatpush1.bf16.msra.mxu0 %v734
    %1010 = vmatprep.mubr.bf16.mxu0 %v113
    %1011 = vmatmul.mubr.bf16.gmra.mrb[0].mxu0 %v112
    %v1012 = vpop.f32.mrb[0].mxu0
    %v1013 = vadd.f32 %v972, %v1012
    %v1014 = vpop.f32.mrb[0].mxu0
    %v1015 = vadd.f32 %v974, %v1014
    %v1016 = vpop.f32.mrb[0].mxu0
    %v1017 = vpop.f32.mrb[0].mxu0
    %1018 = vdwg.mxu0
    %1019 = vmatprep.subr.bf16.mxu0 %v737
    %1020 = vmatpush1.bf16.msra.mxu0 %v736
    %1021 = vmatprep.subr.bf16.mxu0 %v739
    %1022 = vmatpush1.bf16.msra.mxu0 %v738
    %1023 = vmatprep.subr.bf16.mxu0 %v741
    %1024 = vmatpush1.bf16.msra.mxu0 %v740
    %1025 = vmatprep.subr.bf16.mxu0 %v743
    %1026 = vmatpush1.bf16.msra.mxu0 %v742
    %1027 = vmatprep.subr.bf16.mxu0 %v745
    %1028 = vmatpush1.bf16.msra.mxu0 %v744
    %1029 = vmatprep.subr.bf16.mxu0 %v747
    %1030 = vmatpush1.bf16.msra.mxu0 %v746
    %1031 = vmatprep.subr.bf16.mxu0 %v749
    %1032 = vmatpush1.bf16.msra.mxu0 %v748
    %1033 = vmatprep.subr.bf16.mxu0 %v751
    %1034 = vmatpush1.bf16.msra.mxu0 %v750
    %1035 = vmatprep.subr.bf16.mxu0 %v753
    %1036 = vmatpush1.bf16.msra.mxu0 %v752
    %1037 = vmatprep.subr.bf16.mxu0 %v755
    %1038 = vmatpush1.bf16.msra.mxu0 %v754
    %1039 = vmatprep.subr.bf16.mxu0 %v757
    %1040 = vmatpush1.bf16.msra.mxu0 %v756
    %1041 = vmatprep.subr.bf16.mxu0 %v759
    %1042 = vmatpush1.bf16.msra.mxu0 %v758
    %1043 = vmatprep.subr.bf16.mxu0 %v761
    %1044 = vmatpush1.bf16.msra.mxu0 %v760
    %1045 = vmatprep.subr.bf16.mxu0 %v763
    %1046 = vmatpush1.bf16.msra.mxu0 %v762
    %1047 = vmatprep.subr.bf16.mxu0 %v765
    %1048 = vmatpush1.bf16.msra.mxu0 %v764
    %1049 = vmatprep.subr.bf16.mxu0 %v767
    %1050 = vmatpush1.bf16.msra.mxu0 %v766
    %1051 = vmatprep.mubr.bf16.mxu0 %v115
    %1052 = vmatmul.mubr.bf16.gmra.mrb[0].mxu0 %v114
    %v1053 = vpop.f32.mrb[0].mxu0
    %v1054 = vadd.f32 %v1013, %v1053
    %v1055 = vpop.f32.mrb[0].mxu0
    %v1056 = vadd.f32 %v1015, %v1055
    %v1057 = vpop.f32.mrb[0].mxu0
    %v1058 = vpop.f32.mrb[0].mxu0
    %1059 = vdwg.mxu0
    %v1060 = vmax.f32 %v1054, 0.0
    %v1061 = vmax.f32 %v1056, 0.0
    %v1062 = vpack.c.bf16 %v1060, %v1060
    %v1063 = vpack.c.bf16 %v1061, %v1061
    %v1064 = vld [vmem:[#allocation7] sm:$0xf]
    %v1065 = vld [vmem:[#allocation7 + $0x4] sm:$0xf]
    %v1066 = vld [vmem:[#allocation7 + $0x8] sm:$0xf]
    %v1067 = vld [vmem:[#allocation7 + $0xc] sm:$0xf]
    %v1068 = vld [vmem:[#allocation7 + $0x10] sm:$0xf]
    %v1069 = vld [vmem:[#allocation7 + $0x14] sm:$0xf]
    %v1070 = vld [vmem:[#allocation7 + $0x18] sm:$0xf]
    %v1071 = vld [vmem:[#allocation7 + $0x1c] sm:$0xf]
    %v1072 = vld [vmem:[#allocation7 + $0x20] sm:$0xf]
    %v1073 = vld [vmem:[#allocation7 + $0x24] sm:$0xf]
    %v1074 = vld [vmem:[#allocation7 + $0x28] sm:$0xf]
    %v1075 = vld [vmem:[#allocation7 + $0x2c] sm:$0xf]
    %v1076 = vld [vmem:[#allocation7 + $0x30] sm:$0xf]
    %v1077 = vld [vmem:[#allocation7 + $0x34] sm:$0xf]
    %v1078 = vld [vmem:[#allocation7 + $0x38] sm:$0xf]
    %v1079 = vld [vmem:[#allocation7 + $0x3c] sm:$0xf]
    %v1080 = vld [vmem:[#allocation7 + $0x40] sm:$0xf]
    %v1081 = vld [vmem:[#allocation7 + $0x44] sm:$0xf]
    %v1082 = vld [vmem:[#allocation7 + $0x48] sm:$0xf]
    %v1083 = vld [vmem:[#allocation7 + $0x4c] sm:$0xf]
    %v1084 = vld [vmem:[#allocation7 + $0x50] sm:$0xf]
    %v1085 = vld [vmem:[#allocation7 + $0x54] sm:$0xf]
    %v1086 = vld [vmem:[#allocation7 + $0x58] sm:$0xf]
    %v1087 = vld [vmem:[#allocation7 + $0x5c] sm:$0xf]
    %v1088 = vld [vmem:[#allocation7 + $0x60] sm:$0xf]
    %v1089 = vld [vmem:[#allocation7 + $0x64] sm:$0xf]
    %v1090 = vld [vmem:[#allocation7 + $0x68] sm:$0xf]
    %v1091 = vld [vmem:[#allocation7 + $0x6c] sm:$0xf]
    %v1092 = vld [vmem:[#allocation7 + $0x70] sm:$0xf]
    %v1093 = vld [vmem:[#allocation7 + $0x74] sm:$0xf]
    %v1094 = vld [vmem:[#allocation7 + $0x78] sm:$0xf]
    %v1095 = vld [vmem:[#allocation7 + $0x7c] sm:$0xf]
    %v1096 = vld [vmem:[%s4] sm:$0x1]
    %v1098 = vlaneseq
    %v1099 = vshrl.u32 %v1098, 7
    %v1100 = vsub.s32 0, %v1099
    %v1101 = vrot.slane %v1096, %v1100
    %v1135 = vunpack.c.l.b16 %v1064
    %v1136 = vunpack.c.l.b16 %v1065
    %v1137 = vunpack.c.l.b16 %v1066
    %v1138 = vunpack.c.l.b16 %v1067
    %v1139 = vunpack.c.l.b16 %v1068
    %v1140 = vunpack.c.l.b16 %v1069
    %v1141 = vunpack.c.l.b16 %v1070
    %v1142 = vunpack.c.l.b16 %v1071
    %v1143 = vunpack.c.l.b16 %v1072
    %v1144 = vunpack.c.l.b16 %v1073
    %v1145 = vunpack.c.l.b16 %v1074
    %v1146 = vunpack.c.l.b16 %v1075
    %v1147 = vunpack.c.l.b16 %v1076
    %v1148 = vunpack.c.l.b16 %v1077
    %v1149 = vunpack.c.l.b16 %v1078
    %v1150 = vunpack.c.l.b16 %v1079
    %v1151 = vunpack.c.l.b16 %v1080
    %v1152 = vunpack.c.l.b16 %v1081
    %v1153 = vunpack.c.l.b16 %v1082
    %v1154 = vunpack.c.l.b16 %v1083
    %v1155 = vunpack.c.l.b16 %v1084
    %v1156 = vunpack.c.l.b16 %v1085
    %v1157 = vunpack.c.l.b16 %v1086
    %v1158 = vunpack.c.l.b16 %v1087
    %v1159 = vunpack.c.l.b16 %v1088
    %v1160 = vunpack.c.l.b16 %v1089
    %v1161 = vunpack.c.l.b16 %v1090
    %v1162 = vunpack.c.l.b16 %v1091
    %v1163 = vunpack.c.l.b16 %v1092
    %v1164 = vunpack.c.l.b16 %v1093
    %v1165 = vunpack.c.l.b16 %v1094
    %v1166 = vunpack.c.l.b16 %v1095
    %v1167 = vpack.c.b16 %v1136, %v1135
    %v1168 = vpack.c.b16 %v1138, %v1137
    %v1169 = vpack.c.b16 %v1140, %v1139
    %v1170 = vpack.c.b16 %v1142, %v1141
    %v1171 = vpack.c.b16 %v1144, %v1143
    %v1172 = vpack.c.b16 %v1146, %v1145
    %v1173 = vpack.c.b16 %v1148, %v1147
    %v1174 = vpack.c.b16 %v1150, %v1149
    %v1175 = vpack.c.b16 %v1152, %v1151
    %v1176 = vpack.c.b16 %v1154, %v1153
    %v1177 = vpack.c.b16 %v1156, %v1155
    %v1178 = vpack.c.b16 %v1158, %v1157
    %v1179 = vpack.c.b16 %v1160, %v1159
    %v1180 = vpack.c.b16 %v1162, %v1161
    %v1181 = vpack.c.b16 %v1164, %v1163
    %v1182 = vpack.c.b16 %v1166, %v1165
    %1199 = vmatprep.subr.bf16.mxu0 0
    %1200 = vmatpush1.bf16.msra.mxu0 %v1167
    %1201 = vmatprep.subr.bf16.mxu0 0
    %1202 = vmatpush1.bf16.msra.mxu0 %v1168
    %1203 = vmatprep.subr.bf16.mxu0 0
    %1204 = vmatpush1.bf16.msra.mxu0 %v1169
    %1205 = vmatprep.subr.bf16.mxu0 0
    %1206 = vmatpush1.bf16.msra.mxu0 %v1170
    %1207 = vmatprep.subr.bf16.mxu0 0
    %1208 = vmatpush1.bf16.msra.mxu0 %v1171
    %1209 = vmatprep.subr.bf16.mxu0 0
    %1210 = vmatpush1.bf16.msra.mxu0 %v1172
    %1211 = vmatprep.subr.bf16.mxu0 0
    %1212 = vmatpush1.bf16.msra.mxu0 %v1173
    %1213 = vmatprep.subr.bf16.mxu0 0
    %1214 = vmatpush1.bf16.msra.mxu0 %v1174
    %1215 = vmatprep.subr.bf16.mxu0 0
    %1216 = vmatpush1.bf16.msra.mxu0 %v1175
    %1217 = vmatprep.subr.bf16.mxu0 0
    %1218 = vmatpush1.bf16.msra.mxu0 %v1176
    %1219 = vmatprep.subr.bf16.mxu0 0
    %1220 = vmatpush1.bf16.msra.mxu0 %v1177
    %1221 = vmatprep.subr.bf16.mxu0 0
    %1222 = vmatpush1.bf16.msra.mxu0 %v1178
    %1223 = vmatprep.subr.bf16.mxu0 0
    %1224 = vmatpush1.bf16.msra.mxu0 %v1179
    %1225 = vmatprep.subr.bf16.mxu0 0
    %1226 = vmatpush1.bf16.msra.mxu0 %v1180
    %1227 = vmatprep.subr.bf16.mxu0 0
    %1228 = vmatpush1.bf16.msra.mxu0 %v1181
    %1229 = vmatprep.subr.bf16.mxu0 0
    %1230 = vmatpush1.bf16.msra.mxu0 %v1182
    %1231 = vmatprep.mubr.bf16.mxu0 %v1063
    %1232 = vmatmul.mubr.bf16.gmra.mrb[0].mxu0 %v1062
    %v1233 = vpop.f32.mrb[0].mxu0
    %v1234 = vadd.f32 %v1101, %v1233
    %v1235 = vpop.f32.mrb[0].mxu0
    %v1236 = vpop.f32.mrb[0].mxu0
    %v1237 = vpop.f32.mrb[0].mxu0
    %1238 = vdwg.mxu0
    %v1239 = vand.u32 2147483647, %v1234
    %v1240 = vsub.f32 0.0, %v1239
    %v1241 = vmul.f32 %v1240, 1.442695
    %v1242 = vpow.pop %v1241
    %v1243 = vadd.f32 %v1242, 1.0
    %v1244 = vrcp.pop %v1243
    %vm1245 = vcmp.ge.f32.partialorder %v1234, 0.0
    %v1246 = vsub.f32 1.0, %v1244
    %v1247 = vsel %vm1245, %v1244, %v1246
    %v1248 = vpack.c.bf16 %v1247, %v1247
    %v1249 = vld [vmem:[#allocation8] sm:$0xff]
    %v1250 = vld [vmem:[#allocation8 + $0x8] sm:$0xff]
    %v1251 = vld [vmem:[#allocation8 + $0x10] sm:$0xff]
    %v1252 = vld [vmem:[#allocation8 + $0x18] sm:$0xff]
    %v1253 = vld [vmem:[#allocation8 + $0x20] sm:$0xff]
    %v1254 = vld [vmem:[#allocation8 + $0x28] sm:$0xff]
    %v1255 = vld [vmem:[#allocation8 + $0x30] sm:$0xff]
    %v1256 = vld [vmem:[#allocation8 + $0x38] sm:$0xff]
    %v1257 = vld [vmem:[#allocation8 + $0x40] sm:$0xff]
    %v1258 = vld [vmem:[#allocation8 + $0x48] sm:$0xff]
    %v1259 = vld [vmem:[#allocation8 + $0x50] sm:$0xff]
    %v1260 = vld [vmem:[#allocation8 + $0x58] sm:$0xff]
    %v1261 = vld [vmem:[#allocation8 + $0x60] sm:$0xff]
    %v1262 = vld [vmem:[#allocation8 + $0x68] sm:$0xff]
    %v1263 = vld [vmem:[#allocation8 + $0x70] sm:$0xff]
    %v1264 = vld [vmem:[#allocation8 + $0x78] sm:$0xff]
    %v1265 = vld [vmem:[%s6] sm:$0x3]
    %v1267 = vlaneseq
    %v1268 = vshrl.u32 %v1267, 7
    %v1269 = vsub.s32 0, %v1268
    %v1270 = vrot.slane %v1265, %v1269
    %v1271 = vlaneseq
    %v1272 = vshrl.u32 %v1271, 7
    %v1273 = vsub.s32 1, %v1272
    %v1274 = vrot.slane %v1265, %v1273
    %v1293 = vunpack.c.l.b16 %v1249
    %v1294 = vunpack.c.h.b16 %v1249
    %v1295 = vunpack.c.l.b16 %v1250
    %v1296 = vunpack.c.h.b16 %v1250
    %v1297 = vunpack.c.l.b16 %v1251
    %v1298 = vunpack.c.h.b16 %v1251
    %v1299 = vunpack.c.l.b16 %v1252
    %v1300 = vunpack.c.h.b16 %v1252
    %v1301 = vunpack.c.l.b16 %v1253
    %v1302 = vunpack.c.h.b16 %v1253
    %v1303 = vunpack.c.l.b16 %v1254
    %v1304 = vunpack.c.h.b16 %v1254
    %v1305 = vunpack.c.l.b16 %v1255
    %v1306 = vunpack.c.h.b16 %v1255
    %v1307 = vunpack.c.l.b16 %v1256
    %v1308 = vunpack.c.h.b16 %v1256
    %v1309 = vunpack.c.l.b16 %v1257
    %v1310 = vunpack.c.h.b16 %v1257
    %v1311 = vunpack.c.l.b16 %v1258
    %v1312 = vunpack.c.h.b16 %v1258
    %v1313 = vunpack.c.l.b16 %v1259
    %v1314 = vunpack.c.h.b16 %v1259
    %v1315 = vunpack.c.l.b16 %v1260
    %v1316 = vunpack.c.h.b16 %v1260
    %v1317 = vunpack.c.l.b16 %v1261
    %v1318 = vunpack.c.h.b16 %v1261
    %v1319 = vunpack.c.l.b16 %v1262
    %v1320 = vunpack.c.h.b16 %v1262
    %v1321 = vunpack.c.l.b16 %v1263
    %v1322 = vunpack.c.h.b16 %v1263
    %v1323 = vunpack.c.l.b16 %v1264
    %v1324 = vunpack.c.h.b16 %v1264
    %v1325 = vpack.c.b16 %v1295, %v1293
    %v1326 = vpack.c.b16 %v1296, %v1294
    %v1327 = vpack.c.b16 %v1299, %v1297
    %v1328 = vpack.c.b16 %v1300, %v1298
    %v1329 = vpack.c.b16 %v1303, %v1301
    %v1330 = vpack.c.b16 %v1304, %v1302
    %v1331 = vpack.c.b16 %v1307, %v1305
    %v1332 = vpack.c.b16 %v1308, %v1306
    %v1333 = vpack.c.b16 %v1311, %v1309
    %v1334 = vpack.c.b16 %v1312, %v1310
    %v1335 = vpack.c.b16 %v1315, %v1313
    %v1336 = vpack.c.b16 %v1316, %v1314
    %v1337 = vpack.c.b16 %v1319, %v1317
    %v1338 = vpack.c.b16 %v1320, %v1318
    %v1339 = vpack.c.b16 %v1323, %v1321
    %v1340 = vpack.c.b16 %v1324, %v1322
    %1357 = vmatprep.subr.bf16.mxu0 %v1326
    %1358 = vmatpush1.bf16.msra.mxu0 %v1325
    %1359 = vmatprep.subr.bf16.mxu0 %v1328
    %1360 = vmatpush1.bf16.msra.mxu0 %v1327
    %1361 = vmatprep.subr.bf16.mxu0 %v1330
    %1362 = vmatpush1.bf16.msra.mxu0 %v1329
    %1363 = vmatprep.subr.bf16.mxu0 %v1332
    %1364 = vmatpush1.bf16.msra.mxu0 %v1331
    %1365 = vmatprep.subr.bf16.mxu0 %v1334
    %1366 = vmatpush1.bf16.msra.mxu0 %v1333
    %1367 = vmatprep.subr.bf16.mxu0 %v1336
    %1368 = vmatpush1.bf16.msra.mxu0 %v1335
    %1369 = vmatprep.subr.bf16.mxu0 %v1338
    %1370 = vmatpush1.bf16.msra.mxu0 %v1337
    %1371 = vmatprep.subr.bf16.mxu0 %v1340
    %1372 = vmatpush1.bf16.msra.mxu0 %v1339
    %1373 = vmatprep.subr.bf16.mxu0 0
    %1374 = vmatpush1.bf16.msra.mxu0 0
    %1375 = vmatprep.subr.bf16.mxu0 0
    %1376 = vmatpush1.bf16.msra.mxu0 0
    %1377 = vmatprep.subr.bf16.mxu0 0
    %1378 = vmatpush1.bf16.msra.mxu0 0
    %1379 = vmatprep.subr.bf16.mxu0 0
    %1380 = vmatpush1.bf16.msra.mxu0 0
    %1381 = vmatprep.subr.bf16.mxu0 0
    %1382 = vmatpush1.bf16.msra.mxu0 0
    %1383 = vmatprep.subr.bf16.mxu0 0
    %1384 = vmatpush1.bf16.msra.mxu0 0
    %1385 = vmatprep.subr.bf16.mxu0 0
    %1386 = vmatpush1.bf16.msra.mxu0 0
    %1387 = vmatprep.subr.bf16.mxu0 0
    %1388 = vmatpush1.bf16.msra.mxu0 0
    %1389 = vmatprep.mubr.bf16.mxu0 0
    %1390 = vmatmul.mubr.bf16.gmra.mrb[0].mxu0 %v1248
    %v1391 = vpop.f32.mrb[0].mxu0
    %v1392 = vadd.f32 %v1270, %v1391
    %v1393 = vpop.f32.mrb[0].mxu0
    %v1394 = vadd.f32 %v1274, %v1393
    %v1395 = vpop.f32.mrb[0].mxu0
    %v1396 = vpop.f32.mrb[0].mxu0
    %1397 = vdwg.mxu0
    %v1398 = vmax.f32 %v1392, 0.0
    %v1399 = vmax.f32 %v1394, 0.0
    %v1400 = vpack.c.bf16 %v1398, %v1398
    %v1401 = vpack.c.bf16 %v1399, %v1399
    %v1402 = vld [vmem:[#allocation10] sm:$0xff]
    %v1403 = vld [vmem:[#allocation10 + $0x8] sm:$0xff]
    %v1404 = vld [vmem:[#allocation10 + $0x10] sm:$0xff]
    %v1405 = vld [vmem:[#allocation10 + $0x18] sm:$0xff]
    %v1406 = vld [vmem:[#allocation10 + $0x20] sm:$0xff]
    %v1407 = vld [vmem:[#allocation10 + $0x28] sm:$0xff]
    %v1408 = vld [vmem:[#allocation10 + $0x30] sm:$0xff]
    %v1409 = vld [vmem:[#allocation10 + $0x38] sm:$0xff]
    %v1410 = vld [vmem:[#allocation10 + $0x40] sm:$0xff]
    %v1411 = vld [vmem:[#allocation10 + $0x48] sm:$0xff]
    %v1412 = vld [vmem:[#allocation10 + $0x50] sm:$0xff]
    %v1413 = vld [vmem:[#allocation10 + $0x58] sm:$0xff]
    %v1414 = vld [vmem:[#allocation10 + $0x60] sm:$0xff]
    %v1415 = vld [vmem:[#allocation10 + $0x68] sm:$0xff]
    %v1416 = vld [vmem:[#allocation10 + $0x70] sm:$0xff]
    %v1417 = vld [vmem:[#allocation10 + $0x78] sm:$0xff]
    %v1418 = vld [vmem:[#allocation10 + $0x80] sm:$0xff]
    %v1419 = vld [vmem:[#allocation10 + $0x88] sm:$0xff]
    %v1420 = vld [vmem:[#allocation10 + $0x90] sm:$0xff]
    %v1421 = vld [vmem:[#allocation10 + $0x98] sm:$0xff]
    %v1422 = vld [vmem:[#allocation10 + $0xa0] sm:$0xff]
    %v1423 = vld [vmem:[#allocation10 + $0xa8] sm:$0xff]
    %v1424 = vld [vmem:[#allocation10 + $0xb0] sm:$0xff]
    %v1425 = vld [vmem:[#allocation10 + $0xb8] sm:$0xff]
    %v1426 = vld [vmem:[#allocation10 + $0xc0] sm:$0xff]
    %v1427 = vld [vmem:[#allocation10 + $0xc8] sm:$0xff]
    %v1428 = vld [vmem:[#allocation10 + $0xd0] sm:$0xff]
    %v1429 = vld [vmem:[#allocation10 + $0xd8] sm:$0xff]
    %v1430 = vld [vmem:[#allocation10 + $0xe0] sm:$0xff]
    %v1431 = vld [vmem:[#allocation10 + $0xe8] sm:$0xff]
    %v1432 = vld [vmem:[#allocation10 + $0xf0] sm:$0xff]
    %v1433 = vld [vmem:[#allocation10 + $0xf8] sm:$0xff]
    %v1434 = vld [vmem:[#allocation10 + $0x100] sm:$0xff]
    %v1435 = vld [vmem:[#allocation10 + $0x108] sm:$0xff]
    %v1436 = vld [vmem:[#allocation10 + $0x110] sm:$0xff]
    %v1437 = vld [vmem:[#allocation10 + $0x118] sm:$0xff]
    %v1438 = vld [vmem:[#allocation10 + $0x120] sm:$0xff]
    %v1439 = vld [vmem:[#allocation10 + $0x128] sm:$0xff]
    %v1440 = vld [vmem:[#allocation10 + $0x130] sm:$0xff]
    %v1441 = vld [vmem:[#allocation10 + $0x138] sm:$0xff]
    %v1442 = vld [vmem:[#allocation10 + $0x140] sm:$0xff]
    %v1443 = vld [vmem:[#allocation10 + $0x148] sm:$0xff]
    %v1444 = vld [vmem:[#allocation10 + $0x150] sm:$0xff]
    %v1445 = vld [vmem:[#allocation10 + $0x158] sm:$0xff]
    %v1446 = vld [vmem:[#allocation10 + $0x160] sm:$0xff]
    %v1447 = vld [vmem:[#allocation10 + $0x168] sm:$0xff]
    %v1448 = vld [vmem:[#allocation10 + $0x170] sm:$0xff]
    %v1449 = vld [vmem:[#allocation10 + $0x178] sm:$0xff]
    %v1450 = vld [vmem:[#allocation10 + $0x180] sm:$0xff]
    %v1451 = vld [vmem:[#allocation10 + $0x188] sm:$0xff]
    %v1452 = vld [vmem:[#allocation10 + $0x190] sm:$0xff]
    %v1453 = vld [vmem:[#allocation10 + $0x198] sm:$0xff]
    %v1454 = vld [vmem:[#allocation10 + $0x1a0] sm:$0xff]
    %v1455 = vld [vmem:[#allocation10 + $0x1a8] sm:$0xff]
    %v1456 = vld [vmem:[#allocation10 + $0x1b0] sm:$0xff]
    %v1457 = vld [vmem:[#allocation10 + $0x1b8] sm:$0xff]
    %v1458 = vld [vmem:[#allocation10 + $0x1c0] sm:$0xff]
    %v1459 = vld [vmem:[#allocation10 + $0x1c8] sm:$0xff]
    %v1460 = vld [vmem:[#allocation10 + $0x1d0] sm:$0xff]
    %v1461 = vld [vmem:[#allocation10 + $0x1d8] sm:$0xff]
    %v1462 = vld [vmem:[#allocation10 + $0x1e0] sm:$0xff]
    %v1463 = vld [vmem:[#allocation10 + $0x1e8] sm:$0xff]
    %v1464 = vld [vmem:[#allocation10 + $0x1f0] sm:$0xff]
    %v1465 = vld [vmem:[#allocation10 + $0x1f8] sm:$0xff]
    %v1466 = vld [vmem:[#allocation10 + $0x200] sm:$0xff]
    %v1467 = vld [vmem:[#allocation10 + $0x208] sm:$0xff]
    %v1468 = vld [vmem:[#allocation10 + $0x210] sm:$0xff]
    %v1469 = vld [vmem:[#allocation10 + $0x218] sm:$0xff]
    %v1470 = vld [vmem:[#allocation10 + $0x220] sm:$0xff]
    %v1471 = vld [vmem:[#allocation10 + $0x228] sm:$0xff]
    %v1472 = vld [vmem:[#allocation10 + $0x230] sm:$0xff]
    %v1473 = vld [vmem:[#allocation10 + $0x238] sm:$0xff]
    %v1474 = vld [vmem:[#allocation10 + $0x240] sm:$0xff]
    %v1475 = vld [vmem:[#allocation10 + $0x248] sm:$0xff]
    %v1476 = vld [vmem:[#allocation10 + $0x250] sm:$0xff]
    %v1477 = vld [vmem:[#allocation10 + $0x258] sm:$0xff]
    %v1478 = vld [vmem:[#allocation10 + $0x260] sm:$0xff]
    %v1479 = vld [vmem:[#allocation10 + $0x268] sm:$0xff]
    %v1480 = vld [vmem:[#allocation10 + $0x270] sm:$0xff]
    %v1481 = vld [vmem:[#allocation10 + $0x278] sm:$0xff]
    %v1482 = vld [vmem:[#allocation10 + $0x280] sm:$0xff]
    %v1483 = vld [vmem:[#allocation10 + $0x288] sm:$0xff]
    %v1484 = vld [vmem:[#allocation10 + $0x290] sm:$0xff]
    %v1485 = vld [vmem:[#allocation10 + $0x298] sm:$0xff]
    %v1486 = vld [vmem:[#allocation10 + $0x2a0] sm:$0xff]
    %v1487 = vld [vmem:[#allocation10 + $0x2a8] sm:$0xff]
    %v1488 = vld [vmem:[#allocation10 + $0x2b0] sm:$0xff]
    %v1489 = vld [vmem:[#allocation10 + $0x2b8] sm:$0xff]
    %v1490 = vld [vmem:[#allocation10 + $0x2c0] sm:$0xff]
    %v1491 = vld [vmem:[#allocation10 + $0x2c8] sm:$0xff]
    %v1492 = vld [vmem:[#allocation10 + $0x2d0] sm:$0xff]
    %v1493 = vld [vmem:[#allocation10 + $0x2d8] sm:$0xff]
    %v1494 = vld [vmem:[#allocation10 + $0x2e0] sm:$0xff]
    %v1495 = vld [vmem:[#allocation10 + $0x2e8] sm:$0xff]
    %v1496 = vld [vmem:[#allocation10 + $0x2f0] sm:$0xff]
    %v1497 = vld [vmem:[#allocation10 + $0x2f8] sm:$0xff]
    %v1498 = vld [vmem:[#allocation10 + $0x300] sm:$0xff]
    %v1499 = vld [vmem:[#allocation10 + $0x308] sm:$0xff]
    %v1500 = vld [vmem:[#allocation10 + $0x310] sm:$0xff]
    %v1501 = vld [vmem:[#allocation10 + $0x318] sm:$0xff]
    %v1502 = vld [vmem:[#allocation10 + $0x320] sm:$0xff]
    %v1503 = vld [vmem:[#allocation10 + $0x328] sm:$0xff]
    %v1504 = vld [vmem:[#allocation10 + $0x330] sm:$0xff]
    %v1505 = vld [vmem:[#allocation10 + $0x338] sm:$0xff]
    %v1506 = vld [vmem:[#allocation10 + $0x340] sm:$0xff]
    %v1507 = vld [vmem:[#allocation10 + $0x348] sm:$0xff]
    %v1508 = vld [vmem:[#allocation10 + $0x350] sm:$0xff]
    %v1509 = vld [vmem:[#allocation10 + $0x358] sm:$0xff]
    %v1510 = vld [vmem:[#allocation10 + $0x360] sm:$0xff]
    %v1511 = vld [vmem:[#allocation10 + $0x368] sm:$0xff]
    %v1512 = vld [vmem:[#allocation10 + $0x370] sm:$0xff]
    %v1513 = vld [vmem:[#allocation10 + $0x378] sm:$0xff]
    %v1514 = vld [vmem:[#allocation10 + $0x380] sm:$0xff]
    %v1515 = vld [vmem:[#allocation10 + $0x388] sm:$0xff]
    %v1516 = vld [vmem:[#allocation10 + $0x390] sm:$0xff]
    %v1517 = vld [vmem:[#allocation10 + $0x398] sm:$0xff]
    %v1518 = vld [vmem:[#allocation10 + $0x3a0] sm:$0xff]
    %v1519 = vld [vmem:[#allocation10 + $0x3a8] sm:$0xff]
    %v1520 = vld [vmem:[#allocation10 + $0x3b0] sm:$0xff]
    %v1521 = vld [vmem:[#allocation10 + $0x3b8] sm:$0xff]
    %v1522 = vld [vmem:[#allocation10 + $0x3c0] sm:$0xff]
    %v1523 = vld [vmem:[#allocation10 + $0x3c8] sm:$0xff]
    %v1524 = vld [vmem:[#allocation10 + $0x3d0] sm:$0xff]
    %v1525 = vld [vmem:[#allocation10 + $0x3d8] sm:$0xff]
    %v1526 = vld [vmem:[#allocation10 + $0x3e0] sm:$0xff]
    %v1527 = vld [vmem:[#allocation10 + $0x3e8] sm:$0xff]
    %v1528 = vld [vmem:[#allocation10 + $0x3f0] sm:$0xff]
    %v1529 = vld [vmem:[#allocation10 + $0x3f8] sm:$0xff]
    %v1530 = vld [vmem:[%s8] sm:$0xff]
    %v1532 = vlaneseq
    %v1533 = vshrl.u32 %v1532, 7
    %v1534 = vsub.s32 0, %v1533
    %v1535 = vrot.slane %v1530, %v1534
    %v1536 = vlaneseq
    %v1537 = vshrl.u32 %v1536, 7
    %v1538 = vsub.s32 1, %v1537
    %v1539 = vrot.slane %v1530, %v1538
    %v1540 = vlaneseq
    %v1541 = vshrl.u32 %v1540, 7
    %v1542 = vsub.s32 2, %v1541
    %v1543 = vrot.slane %v1530, %v1542
    %v1544 = vlaneseq
    %v1545 = vshrl.u32 %v1544, 7
    %v1546 = vsub.s32 3, %v1545
    %v1547 = vrot.slane %v1530, %v1546
    %v1548 = vlaneseq
    %v1549 = vshrl.u32 %v1548, 7
    %v1550 = vsub.s32 4, %v1549
    %v1551 = vrot.slane %v1530, %v1550
    %v1552 = vlaneseq
    %v1553 = vshrl.u32 %v1552, 7
    %v1554 = vsub.s32 5, %v1553
    %v1555 = vrot.slane %v1530, %v1554
    %v1556 = vlaneseq
    %v1557 = vshrl.u32 %v1556, 7
    %v1558 = vsub.s32 6, %v1557
    %v1559 = vrot.slane %v1530, %v1558
    %v1560 = vlaneseq
    %v1561 = vshrl.u32 %v1560, 7
    %v1562 = vsub.s32 7, %v1561
    %v1563 = vrot.slane %v1530, %v1562
    %v1700 = vunpack.c.l.b16 %v1402
    %v1701 = vunpack.c.h.b16 %v1402
    %v1702 = vunpack.c.l.b16 %v1403
    %v1703 = vunpack.c.h.b16 %v1403
    %v1704 = vunpack.c.l.b16 %v1404
    %v1705 = vunpack.c.h.b16 %v1404
    %v1706 = vunpack.c.l.b16 %v1405
    %v1707 = vunpack.c.h.b16 %v1405
    %v1708 = vunpack.c.l.b16 %v1406
    %v1709 = vunpack.c.h.b16 %v1406
    %v1710 = vunpack.c.l.b16 %v1407
    %v1711 = vunpack.c.h.b16 %v1407
    %v1712 = vunpack.c.l.b16 %v1408
    %v1713 = vunpack.c.h.b16 %v1408
    %v1714 = vunpack.c.l.b16 %v1409
    %v1715 = vunpack.c.h.b16 %v1409
    %v1716 = vunpack.c.l.b16 %v1410
    %v1717 = vunpack.c.h.b16 %v1410
    %v1718 = vunpack.c.l.b16 %v1411
    %v1719 = vunpack.c.h.b16 %v1411
    %v1720 = vunpack.c.l.b16 %v1412
    %v1721 = vunpack.c.h.b16 %v1412
    %v1722 = vunpack.c.l.b16 %v1413
    %v1723 = vunpack.c.h.b16 %v1413
    %v1724 = vunpack.c.l.b16 %v1414
    %v1725 = vunpack.c.h.b16 %v1414
    %v1726 = vunpack.c.l.b16 %v1415
    %v1727 = vunpack.c.h.b16 %v1415
    %v1728 = vunpack.c.l.b16 %v1416
    %v1729 = vunpack.c.h.b16 %v1416
    %v1730 = vunpack.c.l.b16 %v1417
    %v1731 = vunpack.c.h.b16 %v1417
    %v1732 = vunpack.c.l.b16 %v1418
    %v1733 = vunpack.c.h.b16 %v1418
    %v1734 = vunpack.c.l.b16 %v1419
    %v1735 = vunpack.c.h.b16 %v1419
    %v1736 = vunpack.c.l.b16 %v1420
    %v1737 = vunpack.c.h.b16 %v1420
    %v1738 = vunpack.c.l.b16 %v1421
    %v1739 = vunpack.c.h.b16 %v1421
    %v1740 = vunpack.c.l.b16 %v1422
    %v1741 = vunpack.c.h.b16 %v1422
    %v1742 = vunpack.c.l.b16 %v1423
    %v1743 = vunpack.c.h.b16 %v1423
    %v1744 = vunpack.c.l.b16 %v1424
    %v1745 = vunpack.c.h.b16 %v1424
    %v1746 = vunpack.c.l.b16 %v1425
    %v1747 = vunpack.c.h.b16 %v1425
    %v1748 = vunpack.c.l.b16 %v1426
    %v1749 = vunpack.c.h.b16 %v1426
    %v1750 = vunpack.c.l.b16 %v1427
    %v1751 = vunpack.c.h.b16 %v1427
    %v1752 = vunpack.c.l.b16 %v1428
    %v1753 = vunpack.c.h.b16 %v1428
    %v1754 = vunpack.c.l.b16 %v1429
    %v1755 = vunpack.c.h.b16 %v1429
    %v1756 = vunpack.c.l.b16 %v1430
    %v1757 = vunpack.c.h.b16 %v1430
    %v1758 = vunpack.c.l.b16 %v1431
    %v1759 = vunpack.c.h.b16 %v1431
    %v1760 = vunpack.c.l.b16 %v1432
    %v1761 = vunpack.c.h.b16 %v1432
    %v1762 = vunpack.c.l.b16 %v1433
    %v1763 = vunpack.c.h.b16 %v1433
    %v1764 = vunpack.c.l.b16 %v1434
    %v1765 = vunpack.c.h.b16 %v1434
    %v1766 = vunpack.c.l.b16 %v1435
    %v1767 = vunpack.c.h.b16 %v1435
    %v1768 = vunpack.c.l.b16 %v1436
    %v1769 = vunpack.c.h.b16 %v1436
    %v1770 = vunpack.c.l.b16 %v1437
    %v1771 = vunpack.c.h.b16 %v1437
    %v1772 = vunpack.c.l.b16 %v1438
    %v1773 = vunpack.c.h.b16 %v1438
    %v1774 = vunpack.c.l.b16 %v1439
    %v1775 = vunpack.c.h.b16 %v1439
    %v1776 = vunpack.c.l.b16 %v1440
    %v1777 = vunpack.c.h.b16 %v1440
    %v1778 = vunpack.c.l.b16 %v1441
    %v1779 = vunpack.c.h.b16 %v1441
    %v1780 = vunpack.c.l.b16 %v1442
    %v1781 = vunpack.c.h.b16 %v1442
    %v1782 = vunpack.c.l.b16 %v1443
    %v1783 = vunpack.c.h.b16 %v1443
    %v1784 = vunpack.c.l.b16 %v1444
    %v1785 = vunpack.c.h.b16 %v1444
    %v1786 = vunpack.c.l.b16 %v1445
    %v1787 = vunpack.c.h.b16 %v1445
    %v1788 = vunpack.c.l.b16 %v1446
    %v1789 = vunpack.c.h.b16 %v1446
    %v1790 = vunpack.c.l.b16 %v1447
    %v1791 = vunpack.c.h.b16 %v1447
    %v1792 = vunpack.c.l.b16 %v1448
    %v1793 = vunpack.c.h.b16 %v1448
    %v1794 = vunpack.c.l.b16 %v1449
    %v1795 = vunpack.c.h.b16 %v1449
    %v1796 = vunpack.c.l.b16 %v1450
    %v1797 = vunpack.c.h.b16 %v1450
    %v1798 = vunpack.c.l.b16 %v1451
    %v1799 = vunpack.c.h.b16 %v1451
    %v1800 = vunpack.c.l.b16 %v1452
    %v1801 = vunpack.c.h.b16 %v1452
    %v1802 = vunpack.c.l.b16 %v1453
    %v1803 = vunpack.c.h.b16 %v1453
    %v1804 = vunpack.c.l.b16 %v1454
    %v1805 = vunpack.c.h.b16 %v1454
    %v1806 = vunpack.c.l.b16 %v1455
    %v1807 = vunpack.c.h.b16 %v1455
    %v1808 = vunpack.c.l.b16 %v1456
    %v1809 = vunpack.c.h.b16 %v1456
    %v1810 = vunpack.c.l.b16 %v1457
    %v1811 = vunpack.c.h.b16 %v1457
    %v1812 = vunpack.c.l.b16 %v1458
    %v1813 = vunpack.c.h.b16 %v1458
    %v1814 = vunpack.c.l.b16 %v1459
    %v1815 = vunpack.c.h.b16 %v1459
    %v1816 = vunpack.c.l.b16 %v1460
    %v1817 = vunpack.c.h.b16 %v1460
    %v1818 = vunpack.c.l.b16 %v1461
    %v1819 = vunpack.c.h.b16 %v1461
    %v1820 = vunpack.c.l.b16 %v1462
    %v1821 = vunpack.c.h.b16 %v1462
    %v1822 = vunpack.c.l.b16 %v1463
    %v1823 = vunpack.c.h.b16 %v1463
    %v1824 = vunpack.c.l.b16 %v1464
    %v1825 = vunpack.c.h.b16 %v1464
    %v1826 = vunpack.c.l.b16 %v1465
    %v1827 = vunpack.c.h.b16 %v1465
    %v1828 = vunpack.c.l.b16 %v1466
    %v1829 = vunpack.c.h.b16 %v1466
    %v1830 = vunpack.c.l.b16 %v1467
    %v1831 = vunpack.c.h.b16 %v1467
    %v1832 = vunpack.c.l.b16 %v1468
    %v1833 = vunpack.c.h.b16 %v1468
    %v1834 = vunpack.c.l.b16 %v1469
    %v1835 = vunpack.c.h.b16 %v1469
    %v1836 = vunpack.c.l.b16 %v1470
    %v1837 = vunpack.c.h.b16 %v1470
    %v1838 = vunpack.c.l.b16 %v1471
    %v1839 = vunpack.c.h.b16 %v1471
    %v1840 = vunpack.c.l.b16 %v1472
    %v1841 = vunpack.c.h.b16 %v1472
    %v1842 = vunpack.c.l.b16 %v1473
    %v1843 = vunpack.c.h.b16 %v1473
    %v1844 = vunpack.c.l.b16 %v1474
    %v1845 = vunpack.c.h.b16 %v1474
    %v1846 = vunpack.c.l.b16 %v1475
    %v1847 = vunpack.c.h.b16 %v1475
    %v1848 = vunpack.c.l.b16 %v1476
    %v1849 = vunpack.c.h.b16 %v1476
    %v1850 = vunpack.c.l.b16 %v1477
    %v1851 = vunpack.c.h.b16 %v1477
    %v1852 = vunpack.c.l.b16 %v1478
    %v1853 = vunpack.c.h.b16 %v1478
    %v1854 = vunpack.c.l.b16 %v1479
    %v1855 = vunpack.c.h.b16 %v1479
    %v1856 = vunpack.c.l.b16 %v1480
    %v1857 = vunpack.c.h.b16 %v1480
    %v1858 = vunpack.c.l.b16 %v1481
    %v1859 = vunpack.c.h.b16 %v1481
    %v1860 = vunpack.c.l.b16 %v1482
    %v1861 = vunpack.c.h.b16 %v1482
    %v1862 = vunpack.c.l.b16 %v1483
    %v1863 = vunpack.c.h.b16 %v1483
    %v1864 = vunpack.c.l.b16 %v1484
    %v1865 = vunpack.c.h.b16 %v1484
    %v1866 = vunpack.c.l.b16 %v1485
    %v1867 = vunpack.c.h.b16 %v1485
    %v1868 = vunpack.c.l.b16 %v1486
    %v1869 = vunpack.c.h.b16 %v1486
    %v1870 = vunpack.c.l.b16 %v1487
    %v1871 = vunpack.c.h.b16 %v1487
    %v1872 = vunpack.c.l.b16 %v1488
    %v1873 = vunpack.c.h.b16 %v1488
    %v1874 = vunpack.c.l.b16 %v1489
    %v1875 = vunpack.c.h.b16 %v1489
    %v1876 = vunpack.c.l.b16 %v1490
    %v1877 = vunpack.c.h.b16 %v1490
    %v1878 = vunpack.c.l.b16 %v1491
    %v1879 = vunpack.c.h.b16 %v1491
    %v1880 = vunpack.c.l.b16 %v1492
    %v1881 = vunpack.c.h.b16 %v1492
    %v1882 = vunpack.c.l.b16 %v1493
    %v1883 = vunpack.c.h.b16 %v1493
    %v1884 = vunpack.c.l.b16 %v1494
    %v1885 = vunpack.c.h.b16 %v1494
    %v1886 = vunpack.c.l.b16 %v1495
    %v1887 = vunpack.c.h.b16 %v1495
    %v1888 = vunpack.c.l.b16 %v1496
    %v1889 = vunpack.c.h.b16 %v1496
    %v1890 = vunpack.c.l.b16 %v1497
    %v1891 = vunpack.c.h.b16 %v1497
    %v1892 = vunpack.c.l.b16 %v1498
    %v1893 = vunpack.c.h.b16 %v1498
    %v1894 = vunpack.c.l.b16 %v1499
    %v1895 = vunpack.c.h.b16 %v1499
    %v1896 = vunpack.c.l.b16 %v1500
    %v1897 = vunpack.c.h.b16 %v1500
    %v1898 = vunpack.c.l.b16 %v1501
    %v1899 = vunpack.c.h.b16 %v1501
    %v1900 = vunpack.c.l.b16 %v1502
    %v1901 = vunpack.c.h.b16 %v1502
    %v1902 = vunpack.c.l.b16 %v1503
    %v1903 = vunpack.c.h.b16 %v1503
    %v1904 = vunpack.c.l.b16 %v1504
    %v1905 = vunpack.c.h.b16 %v1504
    %v1906 = vunpack.c.l.b16 %v1505
    %v1907 = vunpack.c.h.b16 %v1505
    %v1908 = vunpack.c.l.b16 %v1506
    %v1909 = vunpack.c.h.b16 %v1506
    %v1910 = vunpack.c.l.b16 %v1507
    %v1911 = vunpack.c.h.b16 %v1507
    %v1912 = vunpack.c.l.b16 %v1508
    %v1913 = vunpack.c.h.b16 %v1508
    %v1914 = vunpack.c.l.b16 %v1509
    %v1915 = vunpack.c.h.b16 %v1509
    %v1916 = vunpack.c.l.b16 %v1510
    %v1917 = vunpack.c.h.b16 %v1510
    %v1918 = vunpack.c.l.b16 %v1511
    %v1919 = vunpack.c.h.b16 %v1511
    %v1920 = vunpack.c.l.b16 %v1512
    %v1921 = vunpack.c.h.b16 %v1512
    %v1922 = vunpack.c.l.b16 %v1513
    %v1923 = vunpack.c.h.b16 %v1513
    %v1924 = vunpack.c.l.b16 %v1514
    %v1925 = vunpack.c.h.b16 %v1514
    %v1926 = vunpack.c.l.b16 %v1515
    %v1927 = vunpack.c.h.b16 %v1515
    %v1928 = vunpack.c.l.b16 %v1516
    %v1929 = vunpack.c.h.b16 %v1516
    %v1930 = vunpack.c.l.b16 %v1517
    %v1931 = vunpack.c.h.b16 %v1517
    %v1932 = vunpack.c.l.b16 %v1518
    %v1933 = vunpack.c.h.b16 %v1518
    %v1934 = vunpack.c.l.b16 %v1519
    %v1935 = vunpack.c.h.b16 %v1519
    %v1936 = vunpack.c.l.b16 %v1520
    %v1937 = vunpack.c.h.b16 %v1520
    %v1938 = vunpack.c.l.b16 %v1521
    %v1939 = vunpack.c.h.b16 %v1521
    %v1940 = vunpack.c.l.b16 %v1522
    %v1941 = vunpack.c.h.b16 %v1522
    %v1942 = vunpack.c.l.b16 %v1523
    %v1943 = vunpack.c.h.b16 %v1523
    %v1944 = vunpack.c.l.b16 %v1524
    %v1945 = vunpack.c.h.b16 %v1524
    %v1946 = vunpack.c.l.b16 %v1525
    %v1947 = vunpack.c.h.b16 %v1525
    %v1948 = vunpack.c.l.b16 %v1526
    %v1949 = vunpack.c.h.b16 %v1526
    %v1950 = vunpack.c.l.b16 %v1527
    %v1951 = vunpack.c.h.b16 %v1527
    %v1952 = vunpack.c.l.b16 %v1528
    %v1953 = vunpack.c.h.b16 %v1528
    %v1954 = vunpack.c.l.b16 %v1529
    %v1955 = vunpack.c.h.b16 %v1529
    %v1956 = vpack.c.b16 %v1708, %v1700
    %v1957 = vpack.c.b16 %v1709, %v1701
    %v1958 = vpack.c.b16 %v1710, %v1702
    %v1959 = vpack.c.b16 %v1711, %v1703
    %v1960 = vpack.c.b16 %v1712, %v1704
    %v1961 = vpack.c.b16 %v1713, %v1705
    %v1962 = vpack.c.b16 %v1714, %v1706
    %v1963 = vpack.c.b16 %v1715, %v1707
    %v1964 = vpack.c.b16 %v1724, %v1716
    %v1965 = vpack.c.b16 %v1725, %v1717
    %v1966 = vpack.c.b16 %v1726, %v1718
    %v1967 = vpack.c.b16 %v1727, %v1719
    %v1968 = vpack.c.b16 %v1728, %v1720
    %v1969 = vpack.c.b16 %v1729, %v1721
    %v1970 = vpack.c.b16 %v1730, %v1722
    %v1971 = vpack.c.b16 %v1731, %v1723
    %v1972 = vpack.c.b16 %v1740, %v1732
    %v1973 = vpack.c.b16 %v1741, %v1733
    %v1974 = vpack.c.b16 %v1742, %v1734
    %v1975 = vpack.c.b16 %v1743, %v1735
    %v1976 = vpack.c.b16 %v1744, %v1736
    %v1977 = vpack.c.b16 %v1745, %v1737
    %v1978 = vpack.c.b16 %v1746, %v1738
    %v1979 = vpack.c.b16 %v1747, %v1739
    %v1980 = vpack.c.b16 %v1756, %v1748
    %v1981 = vpack.c.b16 %v1757, %v1749
    %v1982 = vpack.c.b16 %v1758, %v1750
    %v1983 = vpack.c.b16 %v1759, %v1751
    %v1984 = vpack.c.b16 %v1760, %v1752
    %v1985 = vpack.c.b16 %v1761, %v1753
    %v1986 = vpack.c.b16 %v1762, %v1754
    %v1987 = vpack.c.b16 %v1763, %v1755
    %v1988 = vpack.c.b16 %v1772, %v1764
    %v1989 = vpack.c.b16 %v1773, %v1765
    %v1990 = vpack.c.b16 %v1774, %v1766
    %v1991 = vpack.c.b16 %v1775, %v1767
    %v1992 = vpack.c.b16 %v1776, %v1768
    %v1993 = vpack.c.b16 %v1777, %v1769
    %v1994 = vpack.c.b16 %v1778, %v1770
    %v1995 = vpack.c.b16 %v1779, %v1771
    %v1996 = vpack.c.b16 %v1788, %v1780
    %v1997 = vpack.c.b16 %v1789, %v1781
    %v1998 = vpack.c.b16 %v1790, %v1782
    %v1999 = vpack.c.b16 %v1791, %v1783
    %v2000 = vpack.c.b16 %v1792, %v1784
    %v2001 = vpack.c.b16 %v1793, %v1785
    %v2002 = vpack.c.b16 %v1794, %v1786
    %v2003 = vpack.c.b16 %v1795, %v1787
    %v2004 = vpack.c.b16 %v1804, %v1796
    %v2005 = vpack.c.b16 %v1805, %v1797
    %v2006 = vpack.c.b16 %v1806, %v1798
    %v2007 = vpack.c.b16 %v1807, %v1799
    %v2008 = vpack.c.b16 %v1808, %v1800
    %v2009 = vpack.c.b16 %v1809, %v1801
    %v2010 = vpack.c.b16 %v1810, %v1802
    %v2011 = vpack.c.b16 %v1811, %v1803
    %v2012 = vpack.c.b16 %v1820, %v1812
    %v2013 = vpack.c.b16 %v1821, %v1813
    %v2014 = vpack.c.b16 %v1822, %v1814
    %v2015 = vpack.c.b16 %v1823, %v1815
    %v2016 = vpack.c.b16 %v1824, %v1816
    %v2017 = vpack.c.b16 %v1825, %v1817
    %v2018 = vpack.c.b16 %v1826, %v1818
    %v2019 = vpack.c.b16 %v1827, %v1819
    %v2020 = vpack.c.b16 %v1836, %v1828
    %v2021 = vpack.c.b16 %v1837, %v1829
    %v2022 = vpack.c.b16 %v1838, %v1830
    %v2023 = vpack.c.b16 %v1839, %v1831
    %v2024 = vpack.c.b16 %v1840, %v1832
    %v2025 = vpack.c.b16 %v1841, %v1833
    %v2026 = vpack.c.b16 %v1842, %v1834
    %v2027 = vpack.c.b16 %v1843, %v1835
    %v2028 = vpack.c.b16 %v1852, %v1844
    %v2029 = vpack.c.b16 %v1853, %v1845
    %v2030 = vpack.c.b16 %v1854, %v1846
    %v2031 = vpack.c.b16 %v1855, %v1847
    %v2032 = vpack.c.b16 %v1856, %v1848
    %v2033 = vpack.c.b16 %v1857, %v1849
    %v2034 = vpack.c.b16 %v1858, %v1850
    %v2035 = vpack.c.b16 %v1859, %v1851
    %v2036 = vpack.c.b16 %v1868, %v1860
    %v2037 = vpack.c.b16 %v1869, %v1861
    %v2038 = vpack.c.b16 %v1870, %v1862
    %v2039 = vpack.c.b16 %v1871, %v1863
    %v2040 = vpack.c.b16 %v1872, %v1864
    %v2041 = vpack.c.b16 %v1873, %v1865
    %v2042 = vpack.c.b16 %v1874, %v1866
    %v2043 = vpack.c.b16 %v1875, %v1867
    %v2044 = vpack.c.b16 %v1884, %v1876
    %v2045 = vpack.c.b16 %v1885, %v1877
    %v2046 = vpack.c.b16 %v1886, %v1878
    %v2047 = vpack.c.b16 %v1887, %v1879
    %v2048 = vpack.c.b16 %v1888, %v1880
    %v2049 = vpack.c.b16 %v1889, %v1881
    %v2050 = vpack.c.b16 %v1890, %v1882
    %v2051 = vpack.c.b16 %v1891, %v1883
    %v2052 = vpack.c.b16 %v1900, %v1892
    %v2053 = vpack.c.b16 %v1901, %v1893
    %v2054 = vpack.c.b16 %v1902, %v1894
    %v2055 = vpack.c.b16 %v1903, %v1895
    %v2056 = vpack.c.b16 %v1904, %v1896
    %v2057 = vpack.c.b16 %v1905, %v1897
    %v2058 = vpack.c.b16 %v1906, %v1898
    %v2059 = vpack.c.b16 %v1907, %v1899
    %v2060 = vpack.c.b16 %v1916, %v1908
    %v2061 = vpack.c.b16 %v1917, %v1909
    %v2062 = vpack.c.b16 %v1918, %v1910
    %v2063 = vpack.c.b16 %v1919, %v1911
    %v2064 = vpack.c.b16 %v1920, %v1912
    %v2065 = vpack.c.b16 %v1921, %v1913
    %v2066 = vpack.c.b16 %v1922, %v1914
    %v2067 = vpack.c.b16 %v1923, %v1915
    %v2068 = vpack.c.b16 %v1932, %v1924
    %v2069 = vpack.c.b16 %v1933, %v1925
    %v2070 = vpack.c.b16 %v1934, %v1926
    %v2071 = vpack.c.b16 %v1935, %v1927
    %v2072 = vpack.c.b16 %v1936, %v1928
    %v2073 = vpack.c.b16 %v1937, %v1929
    %v2074 = vpack.c.b16 %v1938, %v1930
    %v2075 = vpack.c.b16 %v1939, %v1931
    %v2076 = vpack.c.b16 %v1948, %v1940
    %v2077 = vpack.c.b16 %v1949, %v1941
    %v2078 = vpack.c.b16 %v1950, %v1942
    %v2079 = vpack.c.b16 %v1951, %v1943
    %v2080 = vpack.c.b16 %v1952, %v1944
    %v2081 = vpack.c.b16 %v1953, %v1945
    %v2082 = vpack.c.b16 %v1954, %v1946
    %v2083 = vpack.c.b16 %v1955, %v1947
    %2212 = vmatprep.subr.bf16.mxu0 %v1957
    %2213 = vmatpush1.bf16.msra.mxu0 %v1956
    %2214 = vmatprep.subr.bf16.mxu0 %v1965
    %2215 = vmatpush1.bf16.msra.mxu0 %v1964
    %2216 = vmatprep.subr.bf16.mxu0 %v1973
    %2217 = vmatpush1.bf16.msra.mxu0 %v1972
    %2218 = vmatprep.subr.bf16.mxu0 %v1981
    %2219 = vmatpush1.bf16.msra.mxu0 %v1980
    %2220 = vmatprep.subr.bf16.mxu0 %v1989
    %2221 = vmatpush1.bf16.msra.mxu0 %v1988
    %2222 = vmatprep.subr.bf16.mxu0 %v1997
    %2223 = vmatpush1.bf16.msra.mxu0 %v1996
    %2224 = vmatprep.subr.bf16.mxu0 %v2005
    %2225 = vmatpush1.bf16.msra.mxu0 %v2004
    %2226 = vmatprep.subr.bf16.mxu0 %v2013
    %2227 = vmatpush1.bf16.msra.mxu0 %v2012
    %2228 = vmatprep.subr.bf16.mxu0 %v2021
    %2229 = vmatpush1.bf16.msra.mxu0 %v2020
    %2230 = vmatprep.subr.bf16.mxu0 %v2029
    %2231 = vmatpush1.bf16.msra.mxu0 %v2028
    %2232 = vmatprep.subr.bf16.mxu0 %v2037
    %2233 = vmatpush1.bf16.msra.mxu0 %v2036
    %2234 = vmatprep.subr.bf16.mxu0 %v2045
    %2235 = vmatpush1.bf16.msra.mxu0 %v2044
    %2236 = vmatprep.subr.bf16.mxu0 %v2053
    %2237 = vmatpush1.bf16.msra.mxu0 %v2052
    %2238 = vmatprep.subr.bf16.mxu0 %v2061
    %2239 = vmatpush1.bf16.msra.mxu0 %v2060
    %2240 = vmatprep.subr.bf16.mxu0 %v2069
    %2241 = vmatpush1.bf16.msra.mxu0 %v2068
    %2242 = vmatprep.subr.bf16.mxu0 %v2077
    %2243 = vmatpush1.bf16.msra.mxu0 %v2076
    %2244 = vmatprep.mubr.bf16.mxu0 %v1401
    %2245 = vmatmul.mubr.bf16.gmra.mrb[0].mxu0 %v1400
    %v2246 = vpop.f32.mrb[0].mxu0
    %v2247 = vadd.f32 %v1535, %v2246
    %v2248 = vpop.f32.mrb[0].mxu0
    %v2249 = vadd.f32 %v1539, %v2248
    %v2250 = vpop.f32.mrb[0].mxu0
    %v2251 = vpop.f32.mrb[0].mxu0
    %2252 = vdwg.mxu0
    %2253 = vmatprep.subr.bf16.mxu0 %v1959
    %2254 = vmatpush1.bf16.msra.mxu0 %v1958
    %2255 = vmatprep.subr.bf16.mxu0 %v1967
    %2256 = vmatpush1.bf16.msra.mxu0 %v1966
    %2257 = vmatprep.subr.bf16.mxu0 %v1975
    %2258 = vmatpush1.bf16.msra.mxu0 %v1974
    %2259 = vmatprep.subr.bf16.mxu0 %v1983
    %2260 = vmatpush1.bf16.msra.mxu0 %v1982
    %2261 = vmatprep.subr.bf16.mxu0 %v1991
    %2262 = vmatpush1.bf16.msra.mxu0 %v1990
    %2263 = vmatprep.subr.bf16.mxu0 %v1999
    %2264 = vmatpush1.bf16.msra.mxu0 %v1998
    %2265 = vmatprep.subr.bf16.mxu0 %v2007
    %2266 = vmatpush1.bf16.msra.mxu0 %v2006
    %2267 = vmatprep.subr.bf16.mxu0 %v2015
    %2268 = vmatpush1.bf16.msra.mxu0 %v2014
    %2269 = vmatprep.subr.bf16.mxu0 %v2023
    %2270 = vmatpush1.bf16.msra.mxu0 %v2022
    %2271 = vmatprep.subr.bf16.mxu0 %v2031
    %2272 = vmatpush1.bf16.msra.mxu0 %v2030
    %2273 = vmatprep.subr.bf16.mxu0 %v2039
    %2274 = vmatpush1.bf16.msra.mxu0 %v2038
    %2275 = vmatprep.subr.bf16.mxu0 %v2047
    %2276 = vmatpush1.bf16.msra.mxu0 %v2046
    %2277 = vmatprep.subr.bf16.mxu0 %v2055
    %2278 = vmatpush1.bf16.msra.mxu0 %v2054
    %2279 = vmatprep.subr.bf16.mxu0 %v2063
    %2280 = vmatpush1.bf16.msra.mxu0 %v2062
    %2281 = vmatprep.subr.bf16.mxu0 %v2071
    %2282 = vmatpush1.bf16.msra.mxu0 %v2070
    %2283 = vmatprep.subr.bf16.mxu0 %v2079
    %2284 = vmatpush1.bf16.msra.mxu0 %v2078
    %2285 = vmatprep.mubr.bf16.mxu0 %v1401
    %2286 = vmatmul.mubr.bf16.gmra.mrb[0].mxu0 %v1400
    %v2287 = vpop.f32.mrb[0].mxu0
    %v2288 = vadd.f32 %v1543, %v2287
    %v2289 = vpop.f32.mrb[0].mxu0
    %v2290 = vadd.f32 %v1547, %v2289
    %v2291 = vpop.f32.mrb[0].mxu0
    %v2292 = vpop.f32.mrb[0].mxu0
    %2293 = vdwg.mxu0
    %2294 = vmatprep.subr.bf16.mxu0 %v1961
    %2295 = vmatpush1.bf16.msra.mxu0 %v1960
    %2296 = vmatprep.subr.bf16.mxu0 %v1969
    %2297 = vmatpush1.bf16.msra.mxu0 %v1968
    %2298 = vmatprep.subr.bf16.mxu0 %v1977
    %2299 = vmatpush1.bf16.msra.mxu0 %v1976
    %2300 = vmatprep.subr.bf16.mxu0 %v1985
    %2301 = vmatpush1.bf16.msra.mxu0 %v1984
    %2302 = vmatprep.subr.bf16.mxu0 %v1993
    %2303 = vmatpush1.bf16.msra.mxu0 %v1992
    %2304 = vmatprep.subr.bf16.mxu0 %v2001
    %2305 = vmatpush1.bf16.msra.mxu0 %v2000
    %2306 = vmatprep.subr.bf16.mxu0 %v2009
    %2307 = vmatpush1.bf16.msra.mxu0 %v2008
    %2308 = vmatprep.subr.bf16.mxu0 %v2017
    %2309 = vmatpush1.bf16.msra.mxu0 %v2016
    %2310 = vmatprep.subr.bf16.mxu0 %v2025
    %2311 = vmatpush1.bf16.msra.mxu0 %v2024
    %2312 = vmatprep.subr.bf16.mxu0 %v2033
    %2313 = vmatpush1.bf16.msra.mxu0 %v2032
    %2314 = vmatprep.subr.bf16.mxu0 %v2041
    %2315 = vmatpush1.bf16.msra.mxu0 %v2040
    %2316 = vmatprep.subr.bf16.mxu0 %v2049
    %2317 = vmatpush1.bf16.msra.mxu0 %v2048
    %2318 = vmatprep.subr.bf16.mxu0 %v2057
    %2319 = vmatpush1.bf16.msra.mxu0 %v2056
    %2320 = vmatprep.subr.bf16.mxu0 %v2065
    %2321 = vmatpush1.bf16.msra.mxu0 %v2064
    %2322 = vmatprep.subr.bf16.mxu0 %v2073
    %2323 = vmatpush1.bf16.msra.mxu0 %v2072
    %2324 = vmatprep.subr.bf16.mxu0 %v2081
    %2325 = vmatpush1.bf16.msra.mxu0 %v2080
    %2326 = vmatprep.mubr.bf16.mxu0 %v1401
    %2327 = vmatmul.mubr.bf16.gmra.mrb[0].mxu0 %v1400
    %v2328 = vpop.f32.mrb[0].mxu0
    %v2329 = vadd.f32 %v1551, %v2328
    %v2330 = vpop.f32.mrb[0].mxu0
    %v2331 = vadd.f32 %v1555, %v2330
    %v2332 = vpop.f32.mrb[0].mxu0
    %v2333 = vpop.f32.mrb[0].mxu0
    %2334 = vdwg.mxu0
    %2335 = vmatprep.subr.bf16.mxu0 %v1963
    %2336 = vmatpush1.bf16.msra.mxu0 %v1962
    %2337 = vmatprep.subr.bf16.mxu0 %v1971
    %2338 = vmatpush1.bf16.msra.mxu0 %v1970
    %2339 = vmatprep.subr.bf16.mxu0 %v1979
    %2340 = vmatpush1.bf16.msra.mxu0 %v1978
    %2341 = vmatprep.subr.bf16.mxu0 %v1987
    %2342 = vmatpush1.bf16.msra.mxu0 %v1986
    %2343 = vmatprep.subr.bf16.mxu0 %v1995
    %2344 = vmatpush1.bf16.msra.mxu0 %v1994
    %2345 = vmatprep.subr.bf16.mxu0 %v2003
    %2346 = vmatpush1.bf16.msra.mxu0 %v2002
    %2347 = vmatprep.subr.bf16.mxu0 %v2011
    %2348 = vmatpush1.bf16.msra.mxu0 %v2010
    %2349 = vmatprep.subr.bf16.mxu0 %v2019
    %2350 = vmatpush1.bf16.msra.mxu0 %v2018
    %2351 = vmatprep.subr.bf16.mxu0 %v2027
    %2352 = vmatpush1.bf16.msra.mxu0 %v2026
    %2353 = vmatprep.subr.bf16.mxu0 %v2035
    %2354 = vmatpush1.bf16.msra.mxu0 %v2034
    %2355 = vmatprep.subr.bf16.mxu0 %v2043
    %2356 = vmatpush1.bf16.msra.mxu0 %v2042
    %2357 = vmatprep.subr.bf16.mxu0 %v2051
    %2358 = vmatpush1.bf16.msra.mxu0 %v2050
    %2359 = vmatprep.subr.bf16.mxu0 %v2059
    %2360 = vmatpush1.bf16.msra.mxu0 %v2058
    %2361 = vmatprep.subr.bf16.mxu0 %v2067
    %2362 = vmatpush1.bf16.msra.mxu0 %v2066
    %2363 = vmatprep.subr.bf16.mxu0 %v2075
    %2364 = vmatpush1.bf16.msra.mxu0 %v2074
    %2365 = vmatprep.subr.bf16.mxu0 %v2083
    %2366 = vmatpush1.bf16.msra.mxu0 %v2082
    %2367 = vmatprep.mubr.bf16.mxu0 %v1401
    %2368 = vmatmul.mubr.bf16.gmra.mrb[0].mxu0 %v1400
    %v2369 = vpop.f32.mrb[0].mxu0
    %v2370 = vadd.f32 %v1559, %v2369
    %v2371 = vpop.f32.mrb[0].mxu0
    %v2372 = vadd.f32 %v1563, %v2371
    %v2373 = vpop.f32.mrb[0].mxu0
    %v2374 = vpop.f32.mrb[0].mxu0
    %2375 = vdwg.mxu0
    %v2376 = vand.u32 2147483647, %v2247
    %v2377 = vand.u32 2147483647, %v2249
    %v2378 = vand.u32 2147483647, %v2288
    %v2379 = vand.u32 2147483647, %v2290
    %v2380 = vand.u32 2147483647, %v2329
    %v2381 = vand.u32 2147483647, %v2331
    %v2382 = vand.u32 2147483647, %v2370
    %v2383 = vand.u32 2147483647, %v2372
    %v2384 = vsub.f32 0.0, %v2376
    %v2385 = vsub.f32 0.0, %v2377
    %v2386 = vsub.f32 0.0, %v2378
    %v2387 = vsub.f32 0.0, %v2379
    %v2388 = vsub.f32 0.0, %v2380
    %v2389 = vsub.f32 0.0, %v2381
    %v2390 = vsub.f32 0.0, %v2382
    %v2391 = vsub.f32 0.0, %v2383
    %v2392 = vmul.f32 %v2384, 1.442695
    %v2393 = vpow.pop %v2392
    %v2394 = vmul.f32 %v2385, 1.442695
    %v2395 = vpow.pop %v2394
    %v2396 = vmul.f32 %v2386, 1.442695
    %v2397 = vpow.pop %v2396
    %v2398 = vmul.f32 %v2387, 1.442695
    %v2399 = vpow.pop %v2398
    %v2400 = vmul.f32 %v2388, 1.442695
    %v2401 = vpow.pop %v2400
    %v2402 = vmul.f32 %v2389, 1.442695
    %v2403 = vpow.pop %v2402
    %v2404 = vmul.f32 %v2390, 1.442695
    %v2405 = vpow.pop %v2404
    %v2406 = vmul.f32 %v2391, 1.442695
    %v2407 = vpow.pop %v2406
    %v2408 = vadd.f32 %v2393, 1.0
    %v2409 = vadd.f32 %v2395, 1.0
    %v2410 = vadd.f32 %v2397, 1.0
    %v2411 = vadd.f32 %v2399, 1.0
    %v2412 = vadd.f32 %v2401, 1.0
    %v2413 = vadd.f32 %v2403, 1.0
    %v2414 = vadd.f32 %v2405, 1.0
    %v2415 = vadd.f32 %v2407, 1.0
    %v2416 = vrcp.pop %v2408
    %v2417 = vrcp.pop %v2409
    %v2418 = vrcp.pop %v2410
    %v2419 = vrcp.pop %v2411
    %v2420 = vrcp.pop %v2412
    %v2421 = vrcp.pop %v2413
    %v2422 = vrcp.pop %v2414
    %v2423 = vrcp.pop %v2415
    %vm2424 = vcmp.ge.f32.partialorder %v2247, 0.0
    %vm2425 = vcmp.ge.f32.partialorder %v2249, 0.0
    %vm2426 = vcmp.ge.f32.partialorder %v2288, 0.0
    %vm2427 = vcmp.ge.f32.partialorder %v2290, 0.0
    %vm2428 = vcmp.ge.f32.partialorder %v2329, 0.0
    %vm2429 = vcmp.ge.f32.partialorder %v2331, 0.0
    %vm2430 = vcmp.ge.f32.partialorder %v2370, 0.0
    %vm2431 = vcmp.ge.f32.partialorder %v2372, 0.0
    %v2432 = vsub.f32 1.0, %v2416
    %v2433 = vsub.f32 1.0, %v2417
    %v2434 = vsub.f32 1.0, %v2418
    %v2435 = vsub.f32 1.0, %v2419
    %v2436 = vsub.f32 1.0, %v2420
    %v2437 = vsub.f32 1.0, %v2421
    %v2438 = vsub.f32 1.0, %v2422
    %v2439 = vsub.f32 1.0, %v2423
    %v2440 = vsel %vm2424, %v2416, %v2432
    %v2441 = vsel %vm2425, %v2417, %v2433
    %v2442 = vsel %vm2426, %v2418, %v2434
    %v2443 = vsel %vm2427, %v2419, %v2435
    %v2444 = vsel %vm2428, %v2420, %v2436
    %v2445 = vsel %vm2429, %v2421, %v2437
    %v2446 = vsel %vm2430, %v2422, %v2438
    %v2447 = vsel %vm2431, %v2423, %v2439
    %2448 = vst [vmem:[#allocation11] sm:$0xff] %v2440
    %2449 = vst [vmem:[#allocation11 + $0x8] sm:$0xff] %v2441
    %2450 = vst [vmem:[#allocation11 + $0x10] sm:$0xff] %v2442
    %2451 = vst [vmem:[#allocation11 + $0x18] sm:$0xff] %v2443
    %2452 = vst [vmem:[#allocation11 + $0x20] sm:$0xff] %v2444
    %2453 = vst [vmem:[#allocation11 + $0x28] sm:$0xff] %v2445
    %2454 = vst [vmem:[#allocation11 + $0x30] sm:$0xff] %v2446
    %2455 = vst [vmem:[#allocation11 + $0x38] sm:$0xff] %v2447
    // Predicated region
    $region58: #{tpu_custom_call.1} parent=1 // pred_check
      _
    $region59: #{tpu_custom_call.1} parent=1 // pred_check_branch
      %2457 = sbr.rel (0) target = $region61
    $region60: #{tpu_custom_call.1} parent=1 // pred_region
      %s2459 = ssub.s32 1024, 1024
      %2460 = vsyncadd [#allocation4], %s2459
      %s2462 = sshll.u32 [#allocation11], 4
      %s2463 = int_to_ptr.vmem [resolvable:$true] %s2462
      %2465 = dma.vmem_to_hbm [thread:$0]  %s2463, 1024, %s9, [#allocation4]
    $region61: #{tpu_custom_call.1} parent=1 // pred_fallthru
      _
    // Predicated region
    $region62: #{tpu_custom_call.1} parent=1 // pred_check
      _
    $region63: #{tpu_custom_call.1} parent=1 // pred_check_branch
      %2467 = sbr.rel (0) target = $region65
    $region64: #{tpu_custom_call.1} parent=1 // pred_region
      %2468 = dma.done [#allocation4], 1024
    $region65: #{tpu_custom_call.1} parent=1 // pred_fallthru
      _
    %2469 = vsyncpa [#allocation3], 1
    %2470 = vsyncpa [#allocation6], 1
    %2471 = vsyncpa [#allocation9], 1
    %2472 = vsyncpa [#allocation4], 1

// kernel: tpu_custom_call.1
$region0: #{tpu_custom_call.1}
  #allocation0 [shape = 'u32[]', space=smem, size = 0x4, offset = 0x4, fixed_abs, tag = 'smem constant byte address 0x4 - core index']
  #allocation1 [shape = 'u32[144,128]{1,0:T(1,128)}', space=vmem, size = 0x12000, scoped, tag = 'internal scratch']
  %s0 = inlined_call_operand.hbm [shape: f32[8,1024], index: 0, kind: input, shape index: {}]
  %s1 = inlined_call_operand.hbm [shape: bf16[1024,256], index: 1, kind: input, shape index: {}]
  %s2 = inlined_call_operand.vmem [shape: f32[1,256], index: 2, kind: input, shape index: {}]
  %s3 = inlined_call_operand.hbm [shape: bf16[256,128], index: 3, kind: input, shape index: {}]
  %s4 = inlined_call_operand.vmem [shape: f32[1,128], index: 4, kind: input, shape index: {}]
  %s5 = inlined_call_operand.hbm [shape: bf16[128,256], index: 5, kind: input, shape index: {}]
  %s6 = inlined_call_operand.vmem [shape: f32[1,256], index: 6, kind: input, shape index: {}]
  %s7 = inlined_call_operand.hbm [shape: bf16[256,1024], index: 7, kind: input, shape index: {}]
  %s8 = inlined_call_operand.vmem [shape: f32[1,1024], index: 8, kind: input, shape index: {}]
  %s9 = inlined_call_operand.hbm [shape: f32[8,1024], index: 9, kind: output, shape index: {}]
  %s10 = sld [smem:[#allocation0]]
  $region66: #{tpu_custom_call.1} parent=0
    _
  %s12 = ssub.s32 1, %s10
  %s13 = scalar_select 0, %s12, %s10
  $region1: #{tpu_custom_call.1} parent=0
    #allocation2 [shape = 'u8[32768]{0}', space=vmem, size = 0x8000, scoped, tag = 'input window, operand 0, single buffered']
    #allocation3 [shape = 's32[1]{0}', space=sflag, size = 0x4, scoped, tag = 'scoped memory for tpu_custom_call.1']
    #allocation4 [shape = 's32[1]{0}', space=sflag, size = 0x4, scoped, tag = 'scoped memory for tpu_custom_call.1']
    #allocation5 [shape = 'u8[524288]{0}', space=vmem, size = 0x80000, scoped, tag = 'input window, operand 1, single buffered']
    #allocation6 [shape = 's32[1]{0}', space=sflag, size = 0x4, scoped, tag = 'scoped memory for tpu_custom_call.1']
    #allocation7 [shape = 'u8[65536]{0}', space=vmem, size = 0x10000, scoped, tag = 'input window, operand 3, single buffered']
    #allocation8 [shape = 'u8[65536]{0}', space=vmem, size = 0x10000, scoped, tag = 'input window, operand 5, single buffered']
    #allocation9 [shape = 's32[1]{0}', space=sflag, size = 0x4, scoped, tag = 'scoped memory for tpu_custom_call.1']
    #allocation10 [shape = 'u8[524288]{0}', space=vmem, size = 0x80000, scoped, tag = 'input window, operand 7, single buffered']
    #allocation11 [shape = 'u8[32768]{0}', space=vmem, size = 0x8000, scoped, tag = 'output window, operand 0, single buffered']
    %14 = vsyncpa [#allocation3], 0
    %15 = vsyncpa [#allocation6], 0
    %16 = vsyncpa [#allocation9], 0
    %17 = vsyncpa [#allocation4], 0
    // Predicated region
    $region2: #{tpu_custom_call.1} parent=1 // pred_check
      _
    $region3: #{tpu_custom_call.1} parent=1 // pred_check_branch
      %19 = sbr.rel (0) target = $region5
    $region4: #{tpu_custom_call.1} parent=1 // pred_region
      %s21 = ssub.s32 1024, 1024
      %22 = vsyncadd [#allocation3], %s21
      %s24 = sshll.u32 [#allocation2], 4
      %s25 = int_to_ptr.vmem [resolvable:$true] %s24
      %27 = dma.hbm_to_vmem [thread:$0]  %s0, 1024, %s25, [#allocation3]
    $region5: #{tpu_custom_call.1} parent=1 // pred_fallthru
      _
    // Predicated region
    $region6: #{tpu_custom_call.1} parent=1 // pred_check
      _
    $region7: #{tpu_custom_call.1} parent=1 // pred_check_branch
      %29 = sbr.rel (0) target = $region9
    $region8: #{tpu_custom_call.1} parent=1 // pred_region
      %s31 = ssub.s32 16384, 16384
      %32 = vsyncadd [#allocation6], %s31
      %s33 = sshll.u32 [#allocation5], 4
      %s34 = int_to_ptr.vmem [resolvable:$true] %s33
      %39 = dma.hbm_to_vmem [thread:$0]  %s1, 16384, %s34, [#allocation6], 128, 128, 8
    $region9: #{tpu_custom_call.1} parent=1 // pred_fallthru
      _
    // Predicated region
    $region10: #{tpu_custom_call.1} parent=1 // pred_check
      _
    $region11: #{tpu_custom_call.1} parent=1 // pred_check_branch
      %41 = sbr.rel (0) target = $region13
    $region12: #{tpu_custom_call.1} parent=1 // pred_region
      _
    $region13: #{tpu_custom_call.1} parent=1 // pred_fallthru
      _
    // Predicated region
    $region14: #{tpu_custom_call.1} parent=1 // pred_check
      _
    $region15: #{tpu_custom_call.1} parent=1 // pred_check_branch
      %43 = sbr.rel (0) target = $region17
    $region16: #{tpu_custom_call.1} parent=1 // pred_region
      %s45 = ssub.s32 2048, 2048
      %46 = vsyncadd [#allocation6], %s45
      %s47 = sshll.u32 [#allocation7], 4
      %s48 = int_to_ptr.vmem [resolvable:$true] %s47
      %53 = dma.hbm_to_vmem [thread:$0]  %s3, 2048, %s48, [#allocation6], 64, 64, 4
    $region17: #{tpu_custom_call.1} parent=1 // pred_fallthru
      _
    // Predicated region
    $region18: #{tpu_custom_call.1} parent=1 // pred_check
      _
    $region19: #{tpu_custom_call.1} parent=1 // pred_check_branch
      %55 = sbr.rel (0) target = $region21
    $region20: #{tpu_custom_call.1} parent=1 // pred_region
      _
    $region21: #{tpu_custom_call.1} parent=1 // pred_fallthru
      _
    // Predicated region
    $region22: #{tpu_custom_call.1} parent=1 // pred_check
      _
    $region23: #{tpu_custom_call.1} parent=1 // pred_check_branch
      %57 = sbr.rel (0) target = $region25
    $region24: #{tpu_custom_call.1} parent=1 // pred_region
      %s59 = ssub.s32 2048, 2048
      %60 = vsyncadd [#allocation9], %s59
      %s61 = sshll.u32 [#allocation8], 4
      %s62 = int_to_ptr.vmem [resolvable:$true] %s61
      %67 = dma.hbm_to_vmem [thread:$0]  %s5, 2048, %s62, [#allocation9], 128, 128, 8
    $region25: #{tpu_custom_call.1} parent=1 // pred_fallthru
      _
    // Predicated region
    $region26: #{tpu_custom_call.1} parent=1 // pred_check
      _
    $region27: #{tpu_custom_call.1} parent=1 // pred_check_branch
      %69 = sbr.rel (0) target = $region29
    $region28: #{tpu_custom_call.1} parent=1 // pred_region
      _
    $region29: #{tpu_custom_call.1} parent=1 // pred_fallthru
      _
    // Predicated region
    $region30: #{tpu_custom_call.1} parent=1 // pred_check
      _
    $region31: #{tpu_custom_call.1} parent=1 // pred_check_branch
      %71 = sbr.rel (0) target = $region33
    $region32: #{tpu_custom_call.1} parent=1 // pred_region
      %s73 = ssub.s32 16384, 16384
      %74 = vsyncadd [#allocation9], %s73
      %s75 = sshll.u32 [#allocation10], 4
      %s76 = int_to_ptr.vmem [resolvable:$true] %s75
      %81 = dma.hbm_to_vmem [thread:$0]  %s7, 16384, %s76, [#allocation9], 512, 512, 32
    $region33: #{tpu_custom_call.1} parent=1 // pred_fallthru
      _
    // Predicated region
    $region34: #{tpu_custom_call.1} parent=1 // pred_check
      _
    $region35: #{tpu_custom_call.1} parent=1 // pred_check_branch
      %83 = sbr.rel (0) target = $region37
    $region36: #{tpu_custom_call.1} parent=1 // pred_region
      _
    $region37: #{tpu_custom_call.1} parent=1 // pred_fallthru
      _
    // Predicated region
    $region38: #{tpu_custom_call.1} parent=1 // pred_check
      _
    $region39: #{tpu_custom_call.1} parent=1 // pred_check_branch
      %85 = sbr.rel (0) target = $region41
    $region40: #{tpu_custom_call.1} parent=1 // pred_region
      %86 = dma.done [#allocation3], 1024
    $region41: #{tpu_custom_call.1} parent=1 // pred_fallthru
      _
    // Predicated region
    $region42: #{tpu_custom_call.1} parent=1 // pred_check
      _
    $region43: #{tpu_custom_call.1} parent=1 // pred_check_branch
      %88 = sbr.rel (0) target = $region45
    $region44: #{tpu_custom_call.1} parent=1 // pred_region
      %89 = dma.done [#allocation6], 16384
    $region45: #{tpu_custom_call.1} parent=1 // pred_fallthru
      _
    // Predicated region
    $region46: #{tpu_custom_call.1} parent=1 // pred_check
      _
    $region47: #{tpu_custom_call.1} parent=1 // pred_check_branch
      %91 = sbr.rel (0) target = $region49
    $region48: #{tpu_custom_call.1} parent=1 // pred_region
      %92 = dma.done [#allocation6], 2048
    $region49: #{tpu_custom_call.1} parent=1 // pred_fallthru
      _
    // Predicated region
    $region50: #{tpu_custom_call.1} parent=1 // pred_check
      _
    $region51: #{tpu_custom_call.1} parent=1 // pred_check_branch
      %94 = sbr.rel (0) target = $region53
    $region52: #{tpu_custom_call.1} parent=1 // pred_region
      %95 = dma.done [#allocation9], 2048
    $region53: #{tpu_custom_call.1} parent=1 // pred_fallthru
      _
    // Predicated region
    $region54: #{tpu_custom_call.1} parent=1 // pred_check
      _
    $region55: #{tpu_custom_call.1} parent=1 // pred_check_branch
      %97 = sbr.rel (0) target = $region57
    $region56: #{tpu_custom_call.1} parent=1 // pred_region
      %98 = dma.done [#allocation9], 16384
    $region57: #{tpu_custom_call.1} parent=1 // pred_fallthru
      _
    %v100 = vld [vmem:[#allocation2] sm:$0xff]
    %v101 = vld [vmem:[#allocation2 + $0x8] sm:$0xff]
    %v102 = vld [vmem:[#allocation2 + $0x10] sm:$0xff]
    %v103 = vld [vmem:[#allocation2 + $0x18] sm:$0xff]
    %v104 = vld [vmem:[#allocation2 + $0x20] sm:$0xff]
    %v105 = vld [vmem:[#allocation2 + $0x28] sm:$0xff]
    %v106 = vld [vmem:[#allocation2 + $0x30] sm:$0xff]
    %v107 = vld [vmem:[#allocation2 + $0x38] sm:$0xff]
    %v108 = vpack.c.bf16 %v100, %v100
    %v109 = vpack.c.bf16 %v101, %v101
    %v110 = vpack.c.bf16 %v102, %v102
    %v111 = vpack.c.bf16 %v103, %v103
    %v112 = vpack.c.bf16 %v104, %v104
    %v113 = vpack.c.bf16 %v105, %v105
    %v114 = vpack.c.bf16 %v106, %v106
    %v115 = vpack.c.bf16 %v107, %v107
    %v116 = vld [vmem:[#allocation5] sm:$0xff]
    %v117 = vld [vmem:[#allocation5 + $0x8] sm:$0xff]
    %v118 = vld [vmem:[#allocation5 + $0x10] sm:$0xff]
    %v119 = vld [vmem:[#allocation5 + $0x18] sm:$0xff]
    %v120 = vld [vmem:[#allocation5 + $0x20] sm:$0xff]
    %v121 = vld [vmem:[#allocation5 + $0x28] sm:$0xff]
    %v122 = vld [vmem:[#allocation5 + $0x30] sm:$0xff]
    %v123 = vld [vmem:[#allocation5 + $0x38] sm:$0xff]
    %v124 = vld [vmem:[#allocation5 + $0x40] sm:$0xff]
    %v125 = vld [vmem:[#allocation5 + $0x48] sm:$0xff]
    %v126 = vld [vmem:[#allocation5 + $0x50] sm:$0xff]
    %v127 = vld [vmem:[#allocation5 + $0x58] sm:$0xff]
    %v128 = vld [vmem:[#allocation5 + $0x60] sm:$0xff]
    %v129 = vld [vmem:[#allocation5 + $0x68] sm:$0xff]
    %v130 = vld [vmem:[#allocation5 + $0x70] sm:$0xff]
    %v131 = vld [vmem:[#allocation5 + $0x78] sm:$0xff]
    %v132 = vld [vmem:[#allocation5 + $0x80] sm:$0xff]
    %v133 = vld [vmem:[#allocation5 + $0x88] sm:$0xff]
    %v134 = vld [vmem:[#allocation5 + $0x90] sm:$0xff]
    %v135 = vld [vmem:[#allocation5 + $0x98] sm:$0xff]
    %v136 = vld [vmem:[#allocation5 + $0xa0] sm:$0xff]
    %v137 = vld [vmem:[#allocation5 + $0xa8] sm:$0xff]
    %v138 = vld [vmem:[#allocation5 + $0xb0] sm:$0xff]
    %v139 = vld [vmem:[#allocation5 + $0xb8] sm:$0xff]
    %v140 = vld [vmem:[#allocation5 + $0xc0] sm:$0xff]
    %v141 = vld [vmem:[#allocation5 + $0xc8] sm:$0xff]
    %v142 = vld [vmem:[#allocation5 + $0xd0] sm:$0xff]
    %v143 = vld [vmem:[#allocation5 + $0xd8] sm:$0xff]
    %v144 = vld [vmem:[#allocation5 + $0xe0] sm:$0xff]
    %v145 = vld [vmem:[#allocation5 + $0xe8] sm:$0xff]
    %v146 = vld [vmem:[#allocation5 + $0xf0] sm:$0xff]
    %v147 = vld [vmem:[#allocation5 + $0xf8] sm:$0xff]
    %v148 = vld [vmem:[#allocation5 + $0x100] sm:$0xff]
    %v149 = vld [vmem:[#allocation5 + $0x108] sm:$0xff]
    %v150 = vld [vmem:[#allocation5 + $0x110] sm:$0xff]
    %v151 = vld [vmem:[#allocation5 + $0x118] sm:$0xff]
    %v152 = vld [vmem:[#allocation5 + $0x120] sm:$0xff]
    %v153 = vld [vmem:[#allocation5 + $0x128] sm:$0xff]
    %v154 = vld [vmem:[#allocation5 + $0x130] sm:$0xff]
    %v155 = vld [vmem:[#allocation5 + $0x138] sm:$0xff]
    %v156 = vld [vmem:[#allocation5 + $0x140] sm:$0xff]
    %v157 = vld [vmem:[#allocation5 + $0x148] sm:$0xff]
    %v158 = vld [vmem:[#allocation5 + $0x150] sm:$0xff]
    %v159 = vld [vmem:[#allocation5 + $0x158] sm:$0xff]
    %v160 = vld [vmem:[#allocation5 + $0x160] sm:$0xff]
    %v161 = vld [vmem:[#allocation5 + $0x168] sm:$0xff]
    %v162 = vld [vmem:[#allocation5 + $0x170] sm:$0xff]
    %v163 = vld [vmem:[#allocation5 + $0x178] sm:$0xff]
    %v164 = vld [vmem:[#allocation5 + $0x180] sm:$0xff]
    %v165 = vld [vmem:[#allocation5 + $0x188] sm:$0xff]
    %v166 = vld [vmem:[#allocation5 + $0x190] sm:$0xff]
    %v167 = vld [vmem:[#allocation5 + $0x198] sm:$0xff]
    %v168 = vld [vmem:[#allocation5 + $0x1a0] sm:$0xff]
    %v169 = vld [vmem:[#allocation5 + $0x1a8] sm:$0xff]
    %v170 = vld [vmem:[#allocation5 + $0x1b0] sm:$0xff]
    %v171 = vld [vmem:[#allocation5 + $0x1b8] sm:$0xff]
    %v172 = vld [vmem:[#allocation5 + $0x1c0] sm:$0xff]
    %v173 = vld [vmem:[#allocation5 + $0x1c8] sm:$0xff]
    %v174 = vld [vmem:[#allocation5 + $0x1d0] sm:$0xff]
    %v175 = vld [vmem:[#allocation5 + $0x1d8] sm:$0xff]
    %v176 = vld [vmem:[#allocation5 + $0x1e0] sm:$0xff]
    %v177 = vld [vmem:[#allocation5 + $0x1e8] sm:$0xff]
    %v178 = vld [vmem:[#allocation5 + $0x1f0] sm:$0xff]
    %v179 = vld [vmem:[#allocation5 + $0x1f8] sm:$0xff]
    %v180 = vld [vmem:[#allocation5 + $0x200] sm:$0xff]
    %v181 = vld [vmem:[#allocation5 + $0x208] sm:$0xff]
    %v182 = vld [vmem:[#allocation5 + $0x210] sm:$0xff]
    %v183 = vld [vmem:[#allocation5 + $0x218] sm:$0xff]
    %v184 = vld [vmem:[#allocation5 + $0x220] sm:$0xff]
    %v185 = vld [vmem:[#allocation5 + $0x228] sm:$0xff]
    %v186 = vld [vmem:[#allocation5 + $0x230] sm:$0xff]
    %v187 = vld [vmem:[#allocation5 + $0x238] sm:$0xff]
    %v188 = vld [vmem:[#allocation5 + $0x240] sm:$0xff]
    %v189 = vld [vmem:[#allocation5 + $0x248] sm:$0xff]
    %v190 = vld [vmem:[#allocation5 + $0x250] sm:$0xff]
    %v191 = vld [vmem:[#allocation5 + $0x258] sm:$0xff]
    %v192 = vld [vmem:[#allocation5 + $0x260] sm:$0xff]
    %v193 = vld [vmem:[#allocation5 + $0x268] sm:$0xff]
    %v194 = vld [vmem:[#allocation5 + $0x270] sm:$0xff]
    %v195 = vld [vmem:[#allocation5 + $0x278] sm:$0xff]
    %v196 = vld [vmem:[#allocation5 + $0x280] sm:$0xff]
    %v197 = vld [vmem:[#allocation5 + $0x288] sm:$0xff]
    %v198 = vld [vmem:[#allocation5 + $0x290] sm:$0xff]
    %v199 = vld [vmem:[#allocation5 + $0x298] sm:$0xff]
    %v200 = vld [vmem:[#allocation5 + $0x2a0] sm:$0xff]
    %v201 = vld [vmem:[#allocation5 + $0x2a8] sm:$0xff]
    %v202 = vld [vmem:[#allocation5 + $0x2b0] sm:$0xff]
    %v203 = vld [vmem:[#allocation5 + $0x2b8] sm:$0xff]
    %v204 = vld [vmem:[#allocation5 + $0x2c0] sm:$0xff]
    %v205 = vld [vmem:[#allocation5 + $0x2c8] sm:$0xff]
    %v206 = vld [vmem:[#allocation5 + $0x2d0] sm:$0xff]
    %v207 = vld [vmem:[#allocation5 + $0x2d8] sm:$0xff]
    %v208 = vld [vmem:[#allocation5 + $0x2e0] sm:$0xff]
    %v209 = vld [vmem:[#allocation5 + $0x2e8] sm:$0xff]
    %v210 = vld [vmem:[#allocation5 + $0x2f0] sm:$0xff]
    %v211 = vld [vmem:[#allocation5 + $0x2f8] sm:$0xff]
    %v212 = vld [vmem:[#allocation5 + $0x300] sm:$0xff]
    %v213 = vld [vmem:[#allocation5 + $0x308] sm:$0xff]
    %v214 = vld [vmem:[#allocation5 + $0x310] sm:$0xff]
    %v215 = vld [vmem:[#allocation5 + $0x318] sm:$0xff]
    %v216 = vld [vmem:[#allocation5 + $0x320] sm:$0xff]
    %v217 = vld [vmem:[#allocation5 + $0x328] sm:$0xff]
    %v218 = vld [vmem:[#allocation5 + $0x330] sm:$0xff]
    %v219 = vld [vmem:[#allocation5 + $0x338] sm:$0xff]
    %v220 = vld [vmem:[#allocation5 + $0x340] sm:$0xff]
    %v221 = vld [vmem:[#allocation5 + $0x348] sm:$0xff]
    %v222 = vld [vmem:[#allocation5 + $0x350] sm:$0xff]
    %v223 = vld [vmem:[#allocation5 + $0x358] sm:$0xff]
    %v224 = vld [vmem:[#allocation5 + $0x360] sm:$0xff]
    %v225 = vld [vmem:[#allocation5 + $0x368] sm:$0xff]
    %v226 = vld [vmem:[#allocation5 + $0x370] sm:$0xff]
    %v227 = vld [vmem:[#allocation5 + $0x378] sm:$0xff]
    %v228 = vld [vmem:[#allocation5 + $0x380] sm:$0xff]
    %v229 = vld [vmem:[#allocation5 + $0x388] sm:$0xff]
    %v230 = vld [vmem:[#allocation5 + $0x390] sm:$0xff]
    %v231 = vld [vmem:[#allocation5 + $0x398] sm:$0xff]
    %v232 = vld [vmem:[#allocation5 + $0x3a0] sm:$0xff]
    %v233 = vld [vmem:[#allocation5 + $0x3a8] sm:$0xff]
    %v234 = vld [vmem:[#allocation5 + $0x3b0] sm:$0xff]
    %v235 = vld [vmem:[#allocation5 + $0x3b8] sm:$0xff]
    %v236 = vld [vmem:[#allocation5 + $0x3c0] sm:$0xff]
    %v237 = vld [vmem:[#allocation5 + $0x3c8] sm:$0xff]
    %v238 = vld [vmem:[#allocation5 + $0x3d0] sm:$0xff]
    %v239 = vld [vmem:[#allocation5 + $0x3d8] sm:$0xff]
    %v240 = vld [vmem:[#allocation5 + $0x3e0] sm:$0xff]
    %v241 = vld [vmem:[#allocation5 + $0x3e8] sm:$0xff]
    %v242 = vld [vmem:[#allocation5 + $0x3f0] sm:$0xff]
    %v243 = vld [vmem:[#allocation5 + $0x3f8] sm:$0xff]
    %v244 = vld [vmem:[%s2] sm:$0x3]
    %v246 = vlaneseq
    %v247 = vshrl.u32 %v246, 7
    %v248 = vsub.s32 0, %v247
    %v249 = vrot.slane %v244, %v248
    %v250 = vlaneseq
    %v251 = vshrl.u32 %v250, 7
    %v252 = vsub.s32 1, %v251
    %v253 = vrot.slane %v244, %v252
    %v384 = vunpack.c.l.b16 %v116
    %v385 = vunpack.c.h.b16 %v116
    %v386 = vunpack.c.l.b16 %v117
    %v387 = vunpack.c.h.b16 %v117
    %v388 = vunpack.c.l.b16 %v118
    %v389 = vunpack.c.h.b16 %v118
    %v390 = vunpack.c.l.b16 %v119
    %v391 = vunpack.c.h.b16 %v119
    %v392 = vunpack.c.l.b16 %v120
    %v393 = vunpack.c.h.b16 %v120
    %v394 = vunpack.c.l.b16 %v121
    %v395 = vunpack.c.h.b16 %v121
    %v396 = vunpack.c.l.b16 %v122
    %v397 = vunpack.c.h.b16 %v122
    %v398 = vunpack.c.l.b16 %v123
    %v399 = vunpack.c.h.b16 %v123
    %v400 = vunpack.c.l.b16 %v124
    %v401 = vunpack.c.h.b16 %v124
    %v402 = vunpack.c.l.b16 %v125
    %v403 = vunpack.c.h.b16 %v125
    %v404 = vunpack.c.l.b16 %v126
    %v405 = vunpack.c.h.b16 %v126
    %v406 = vunpack.c.l.b16 %v127
    %v407 = vunpack.c.h.b16 %v127
    %v408 = vunpack.c.l.b16 %v128
    %v409 = vunpack.c.h.b16 %v128
    %v410 = vunpack.c.l.b16 %v129
    %v411 = vunpack.c.h.b16 %v129
    %v412 = vunpack.c.l.b16 %v130
    %v413 = vunpack.c.h.b16 %v130
    %v414 = vunpack.c.l.b16 %v131
    %v415 = vunpack.c.h.b16 %v131
    %v416 = vunpack.c.l.b16 %v132
    %v417 = vunpack.c.h.b16 %v132
    %v418 = vunpack.c.l.b16 %v133
    %v419 = vunpack.c.h.b16 %v133
    %v420 = vunpack.c.l.b16 %v134
    %v421 = vunpack.c.h.b16 %v134
    %v422 = vunpack.c.l.b16 %v135
    %v423 = vunpack.c.h.b16 %v135
    %v424 = vunpack.c.l.b16 %v136
    %v425 = vunpack.c.h.b16 %v136
    %v426 = vunpack.c.l.b16 %v137
    %v427 = vunpack.c.h.b16 %v137
    %v428 = vunpack.c.l.b16 %v138
    %v429 = vunpack.c.h.b16 %v138
    %v430 = vunpack.c.l.b16 %v139
    %v431 = vunpack.c.h.b16 %v139
    %v432 = vunpack.c.l.b16 %v140
    %v433 = vunpack.c.h.b16 %v140
    %v434 = vunpack.c.l.b16 %v141
    %v435 = vunpack.c.h.b16 %v141
    %v436 = vunpack.c.l.b16 %v142
    %v437 = vunpack.c.h.b16 %v142
    %v438 = vunpack.c.l.b16 %v143
    %v439 = vunpack.c.h.b16 %v143
    %v440 = vunpack.c.l.b16 %v144
    %v441 = vunpack.c.h.b16 %v144
    %v442 = vunpack.c.l.b16 %v145
    %v443 = vunpack.c.h.b16 %v145
    %v444 = vunpack.c.l.b16 %v146
    %v445 = vunpack.c.h.b16 %v146
    %v446 = vunpack.c.l.b16 %v147
    %v447 = vunpack.c.h.b16 %v147
    %v448 = vunpack.c.l.b16 %v148
    %v449 = vunpack.c.h.b16 %v148
    %v450 = vunpack.c.l.b16 %v149
    %v451 = vunpack.c.h.b16 %v149
    %v452 = vunpack.c.l.b16 %v150
    %v453 = vunpack.c.h.b16 %v150
    %v454 = vunpack.c.l.b16 %v151
    %v455 = vunpack.c.h.b16 %v151
    %v456 = vunpack.c.l.b16 %v152
    %v457 = vunpack.c.h.b16 %v152
    %v458 = vunpack.c.l.b16 %v153
    %v459 = vunpack.c.h.b16 %v153
    %v460 = vunpack.c.l.b16 %v154
    %v461 = vunpack.c.h.b16 %v154
    %v462 = vunpack.c.l.b16 %v155
    %v463 = vunpack.c.h.b16 %v155
    %v464 = vunpack.c.l.b16 %v156
    %v465 = vunpack.c.h.b16 %v156
    %v466 = vunpack.c.l.b16 %v157
    %v467 = vunpack.c.h.b16 %v157
    %v468 = vunpack.c.l.b16 %v158
    %v469 = vunpack.c.h.b16 %v158
    %v470 = vunpack.c.l.b16 %v159
    %v471 = vunpack.c.h.b16 %v159
    %v472 = vunpack.c.l.b16 %v160
    %v473 = vunpack.c.h.b16 %v160
    %v474 = vunpack.c.l.b16 %v161
    %v475 = vunpack.c.h.b16 %v161
    %v476 = vunpack.c.l.b16 %v162
    %v477 = vunpack.c.h.b16 %v162
    %v478 = vunpack.c.l.b16 %v163
    %v479 = vunpack.c.h.b16 %v163
    %v480 = vunpack.c.l.b16 %v164
    %v481 = vunpack.c.h.b16 %v164
    %v482 = vunpack.c.l.b16 %v165
    %v483 = vunpack.c.h.b16 %v165
    %v484 = vunpack.c.l.b16 %v166
    %v485 = vunpack.c.h.b16 %v166
    %v486 = vunpack.c.l.b16 %v167
    %v487 = vunpack.c.h.b16 %v167
    %v488 = vunpack.c.l.b16 %v168
    %v489 = vunpack.c.h.b16 %v168
    %v490 = vunpack.c.l.b16 %v169
    %v491 = vunpack.c.h.b16 %v169
    %v492 = vunpack.c.l.b16 %v170
    %v493 = vunpack.c.h.b16 %v170
    %v494 = vunpack.c.l.b16 %v171
    %v495 = vunpack.c.h.b16 %v171
    %v496 = vunpack.c.l.b16 %v172
    %v497 = vunpack.c.h.b16 %v172
    %v498 = vunpack.c.l.b16 %v173
    %v499 = vunpack.c.h.b16 %v173
    %v500 = vunpack.c.l.b16 %v174
    %v501 = vunpack.c.h.b16 %v174
    %v502 = vunpack.c.l.b16 %v175
    %v503 = vunpack.c.h.b16 %v175
    %v504 = vunpack.c.l.b16 %v176
    %v505 = vunpack.c.h.b16 %v176
    %v506 = vunpack.c.l.b16 %v177
    %v507 = vunpack.c.h.b16 %v177
    %v508 = vunpack.c.l.b16 %v178
    %v509 = vunpack.c.h.b16 %v178
    %v510 = vunpack.c.l.b16 %v179
    %v511 = vunpack.c.h.b16 %v179
    %v512 = vunpack.c.l.b16 %v180
    %v513 = vunpack.c.h.b16 %v180
    %v514 = vunpack.c.l.b16 %v181
    %v515 = vunpack.c.h.b16 %v181
    %v516 = vunpack.c.l.b16 %v182
    %v517 = vunpack.c.h.b16 %v182
    %v518 = vunpack.c.l.b16 %v183
    %v519 = vunpack.c.h.b16 %v183
    %v520 = vunpack.c.l.b16 %v184
    %v521 = vunpack.c.h.b16 %v184
    %v522 = vunpack.c.l.b16 %v185
    %v523 = vunpack.c.h.b16 %v185
    %v524 = vunpack.c.l.b16 %v186
    %v525 = vunpack.c.h.b16 %v186
    %v526 = vunpack.c.l.b16 %v187
    %v527 = vunpack.c.h.b16 %v187
    %v528 = vunpack.c.l.b16 %v188
    %v529 = vunpack.c.h.b16 %v188
    %v530 = vunpack.c.l.b16 %v189
    %v531 = vunpack.c.h.b16 %v189
    %v532 = vunpack.c.l.b16 %v190
    %v533 = vunpack.c.h.b16 %v190
    %v534 = vunpack.c.l.b16 %v191
    %v535 = vunpack.c.h.b16 %v191
    %v536 = vunpack.c.l.b16 %v192
    %v537 = vunpack.c.h.b16 %v192
    %v538 = vunpack.c.l.b16 %v193
    %v539 = vunpack.c.h.b16 %v193
    %v540 = vunpack.c.l.b16 %v194
    %v541 = vunpack.c.h.b16 %v194
    %v542 = vunpack.c.l.b16 %v195
    %v543 = vunpack.c.h.b16 %v195
    %v544 = vunpack.c.l.b16 %v196
    %v545 = vunpack.c.h.b16 %v196
    %v546 = vunpack.c.l.b16 %v197
    %v547 = vunpack.c.h.b16 %v197
    %v548 = vunpack.c.l.b16 %v198
    %v549 = vunpack.c.h.b16 %v198
    %v550 = vunpack.c.l.b16 %v199
    %v551 = vunpack.c.h.b16 %v199
    %v552 = vunpack.c.l.b16 %v200
    %v553 = vunpack.c.h.b16 %v200
    %v554 = vunpack.c.l.b16 %v201
    %v555 = vunpack.c.h.b16 %v201
    %v556 = vunpack.c.l.b16 %v202
    %v557 = vunpack.c.h.b16 %v202
    %v558 = vunpack.c.l.b16 %v203
    %v559 = vunpack.c.h.b16 %v203
    %v560 = vunpack.c.l.b16 %v204
    %v561 = vunpack.c.h.b16 %v204
    %v562 = vunpack.c.l.b16 %v205
    %v563 = vunpack.c.h.b16 %v205
    %v564 = vunpack.c.l.b16 %v206
    %v565 = vunpack.c.h.b16 %v206
    %v566 = vunpack.c.l.b16 %v207
    %v567 = vunpack.c.h.b16 %v207
    %v568 = vunpack.c.l.b16 %v208
    %v569 = vunpack.c.h.b16 %v208
    %v570 = vunpack.c.l.b16 %v209
    %v571 = vunpack.c.h.b16 %v209
    %v572 = vunpack.c.l.b16 %v210
    %v573 = vunpack.c.h.b16 %v210
    %v574 = vunpack.c.l.b16 %v211
    %v575 = vunpack.c.h.b16 %v211
    %v576 = vunpack.c.l.b16 %v212
    %v577 = vunpack.c.h.b16 %v212
    %v578 = vunpack.c.l.b16 %v213
    %v579 = vunpack.c.h.b16 %v213
    %v580 = vunpack.c.l.b16 %v214
    %v581 = vunpack.c.h.b16 %v214
    %v582 = vunpack.c.l.b16 %v215
    %v583 = vunpack.c.h.b16 %v215
    %v584 = vunpack.c.l.b16 %v216
    %v585 = vunpack.c.h.b16 %v216
    %v586 = vunpack.c.l.b16 %v217
    %v587 = vunpack.c.h.b16 %v217
    %v588 = vunpack.c.l.b16 %v218
    %v589 = vunpack.c.h.b16 %v218
    %v590 = vunpack.c.l.b16 %v219
    %v591 = vunpack.c.h.b16 %v219
    %v592 = vunpack.c.l.b16 %v220
    %v593 = vunpack.c.h.b16 %v220
    %v594 = vunpack.c.l.b16 %v221
    %v595 = vunpack.c.h.b16 %v221
    %v596 = vunpack.c.l.b16 %v222
    %v597 = vunpack.c.h.b16 %v222
    %v598 = vunpack.c.l.b16 %v223
    %v599 = vunpack.c.h.b16 %v223
    %v600 = vunpack.c.l.b16 %v224
    %v601 = vunpack.c.h.b16 %v224
    %v602 = vunpack.c.l.b16 %v225
    %v603 = vunpack.c.h.b16 %v225
    %v604 = vunpack.c.l.b16 %v226
    %v605 = vunpack.c.h.b16 %v226
    %v606 = vunpack.c.l.b16 %v227
    %v607 = vunpack.c.h.b16 %v227
    %v608 = vunpack.c.l.b16 %v228
    %v609 = vunpack.c.h.b16 %v228
    %v610 = vunpack.c.l.b16 %v229
    %v611 = vunpack.c.h.b16 %v229
    %v612 = vunpack.c.l.b16 %v230
    %v613 = vunpack.c.h.b16 %v230
    %v614 = vunpack.c.l.b16 %v231
    %v615 = vunpack.c.h.b16 %v231
    %v616 = vunpack.c.l.b16 %v232
    %v617 = vunpack.c.h.b16 %v232
    %v618 = vunpack.c.l.b16 %v233
    %v619 = vunpack.c.h.b16 %v233
    %v620 = vunpack.c.l.b16 %v234
    %v621 = vunpack.c.h.b16 %v234
    %v622 = vunpack.c.l.b16 %v235
    %v623 = vunpack.c.h.b16 %v235
    %v624 = vunpack.c.l.b16 %v236
    %v625 = vunpack.c.h.b16 %v236
    %v626 = vunpack.c.l.b16 %v237
    %v627 = vunpack.c.h.b16 %v237
    %v628 = vunpack.c.l.b16 %v238
    %v629 = vunpack.c.h.b16 %v238
    %v630 = vunpack.c.l.b16 %v239
    %v631 = vunpack.c.h.b16 %v239
    %v632 = vunpack.c.l.b16 %v240
    %v633 = vunpack.c.h.b16 %v240
    %v634 = vunpack.c.l.b16 %v241
    %v635 = vunpack.c.h.b16 %v241
    %v636 = vunpack.c.l.b16 %v242
    %v637 = vunpack.c.h.b16 %v242
    %v638 = vunpack.c.l.b16 %v243
    %v639 = vunpack.c.h.b16 %v243
    %v640 = vpack.c.b16 %v386, %v384
    %v641 = vpack.c.b16 %v387, %v385
    %v642 = vpack.c.b16 %v390, %v388
    %v643 = vpack.c.b16 %v391, %v389
    %v644 = vpack.c.b16 %v394, %v392
    %v645 = vpack.c.b16 %v395, %v393
    %v646 = vpack.c.b16 %v398, %v396
    %v647 = vpack.c.b16 %v399, %v397
    %v648 = vpack.c.b16 %v402, %v400
    %v649 = vpack.c.b16 %v403, %v401
    %v650 = vpack.c.b16 %v406, %v404
    %v651 = vpack.c.b16 %v407, %v405
    %v652 = vpack.c.b16 %v410, %v408
    %v653 = vpack.c.b16 %v411, %v409
    %v654 = vpack.c.b16 %v414, %v412
    %v655 = vpack.c.b16 %v415, %v413
    %v656 = vpack.c.b16 %v418, %v416
    %v657 = vpack.c.b16 %v419, %v417
    %v658 = vpack.c.b16 %v422, %v420
    %v659 = vpack.c.b16 %v423, %v421
    %v660 = vpack.c.b16 %v426, %v424
    %v661 = vpack.c.b16 %v427, %v425
    %v662 = vpack.c.b16 %v430, %v428
    %v663 = vpack.c.b16 %v431, %v429
    %v664 = vpack.c.b16 %v434, %v432
    %v665 = vpack.c.b16 %v435, %v433
    %v666 = vpack.c.b16 %v438, %v436
    %v667 = vpack.c.b16 %v439, %v437
    %v668 = vpack.c.b16 %v442, %v440
    %v669 = vpack.c.b16 %v443, %v441
    %v670 = vpack.c.b16 %v446, %v444
    %v671 = vpack.c.b16 %v447, %v445
    %v672 = vpack.c.b16 %v450, %v448
    %v673 = vpack.c.b16 %v451, %v449
    %v674 = vpack.c.b16 %v454, %v452
    %v675 = vpack.c.b16 %v455, %v453
    %v676 = vpack.c.b16 %v458, %v456
    %v677 = vpack.c.b16 %v459, %v457
    %v678 = vpack.c.b16 %v462, %v460
    %v679 = vpack.c.b16 %v463, %v461
    %v680 = vpack.c.b16 %v466, %v464
    %v681 = vpack.c.b16 %v467, %v465
    %v682 = vpack.c.b16 %v470, %v468
    %v683 = vpack.c.b16 %v471, %v469
    %v684 = vpack.c.b16 %v474, %v472
    %v685 = vpack.c.b16 %v475, %v473
    %v686 = vpack.c.b16 %v478, %v476
    %v687 = vpack.c.b16 %v479, %v477
    %v688 = vpack.c.b16 %v482, %v480
    %v689 = vpack.c.b16 %v483, %v481
    %v690 = vpack.c.b16 %v486, %v484
    %v691 = vpack.c.b16 %v487, %v485
    %v692 = vpack.c.b16 %v490, %v488
    %v693 = vpack.c.b16 %v491, %v489
    %v694 = vpack.c.b16 %v494, %v492
    %v695 = vpack.c.b16 %v495, %v493
    %v696 = vpack.c.b16 %v498, %v496
    %v697 = vpack.c.b16 %v499, %v497
    %v698 = vpack.c.b16 %v502, %v500
    %v699 = vpack.c.b16 %v503, %v501
    %v700 = vpack.c.b16 %v506, %v504
    %v701 = vpack.c.b16 %v507, %v505
    %v702 = vpack.c.b16 %v510, %v508
    %v703 = vpack.c.b16 %v511, %v509
    %v704 = vpack.c.b16 %v514, %v512
    %v705 = vpack.c.b16 %v515, %v513
    %v706 = vpack.c.b16 %v518, %v516
    %v707 = vpack.c.b16 %v519, %v517
    %v708 = vpack.c.b16 %v522, %v520
    %v709 = vpack.c.b16 %v523, %v521
    %v710 = vpack.c.b16 %v526, %v524
    %v711 = vpack.c.b16 %v527, %v525
    %v712 = vpack.c.b16 %v530, %v528
    %v713 = vpack.c.b16 %v531, %v529
    %v714 = vpack.c.b16 %v534, %v532
    %v715 = vpack.c.b16 %v535, %v533
    %v716 = vpack.c.b16 %v538, %v536
    %v717 = vpack.c.b16 %v539, %v537
    %v718 = vpack.c.b16 %v542, %v540
    %v719 = vpack.c.b16 %v543, %v541
    %v720 = vpack.c.b16 %v546, %v544
    %v721 = vpack.c.b16 %v547, %v545
    %v722 = vpack.c.b16 %v550, %v548
    %v723 = vpack.c.b16 %v551, %v549
    %v724 = vpack.c.b16 %v554, %v552
    %v725 = vpack.c.b16 %v555, %v553
    %v726 = vpack.c.b16 %v558, %v556
    %v727 = vpack.c.b16 %v559, %v557
    %v728 = vpack.c.b16 %v562, %v560
    %v729 = vpack.c.b16 %v563, %v561
    %v730 = vpack.c.b16 %v566, %v564
    %v731 = vpack.c.b16 %v567, %v565
    %v732 = vpack.c.b16 %v570, %v568
    %v733 = vpack.c.b16 %v571, %v569
    %v734 = vpack.c.b16 %v574, %v572
    %v735 = vpack.c.b16 %v575, %v573
    %v736 = vpack.c.b16 %v578, %v576
    %v737 = vpack.c.b16 %v579, %v577
    %v738 = vpack.c.b16 %v582, %v580
    %v739 = vpack.c.b16 %v583, %v581
    %v740 = vpack.c.b16 %v586, %v584
    %v741 = vpack.c.b16 %v587, %v585
    %v742 = vpack.c.b16 %v590, %v588
    %v743 = vpack.c.b16 %v591, %v589
    %v744 = vpack.c.b16 %v594, %v592
    %v745 = vpack.c.b16 %v595, %v593
    %v746 = vpack.c.b16 %v598, %v596
    %v747 = vpack.c.b16 %v599, %v597
    %v748 = vpack.c.b16 %v602, %v600
    %v749 = vpack.c.b16 %v603, %v601
    %v750 = vpack.c.b16 %v606, %v604
    %v751 = vpack.c.b16 %v607, %v605
    %v752 = vpack.c.b16 %v610, %v608
    %v753 = vpack.c.b16 %v611, %v609
    %v754 = vpack.c.b16 %v614, %v612
    %v755 = vpack.c.b16 %v615, %v613
    %v756 = vpack.c.b16 %v618, %v616
    %v757 = vpack.c.b16 %v619, %v617
    %v758 = vpack.c.b16 %v622, %v620
    %v759 = vpack.c.b16 %v623, %v621
    %v760 = vpack.c.b16 %v626, %v624
    %v761 = vpack.c.b16 %v627, %v625
    %v762 = vpack.c.b16 %v630, %v628
    %v763 = vpack.c.b16 %v631, %v629
    %v764 = vpack.c.b16 %v634, %v632
    %v765 = vpack.c.b16 %v635, %v633
    %v766 = vpack.c.b16 %v638, %v636
    %v767 = vpack.c.b16 %v639, %v637
    %896 = vmatprep.subr.bf16.mxu0 %v641
    %897 = vmatpush1.bf16.msra.mxu0 %v640
    %898 = vmatprep.subr.bf16.mxu0 %v643
    %899 = vmatpush1.bf16.msra.mxu0 %v642
    %900 = vmatprep.subr.bf16.mxu0 %v645
    %901 = vmatpush1.bf16.msra.mxu0 %v644
    %902 = vmatprep.subr.bf16.mxu0 %v647
    %903 = vmatpush1.bf16.msra.mxu0 %v646
    %904 = vmatprep.subr.bf16.mxu0 %v649
    %905 = vmatpush1.bf16.msra.mxu0 %v648
    %906 = vmatprep.subr.bf16.mxu0 %v651
    %907 = vmatpush1.bf16.msra.mxu0 %v650
    %908 = vmatprep.subr.bf16.mxu0 %v653
    %909 = vmatpush1.bf16.msra.mxu0 %v652
    %910 = vmatprep.subr.bf16.mxu0 %v655
    %911 = vmatpush1.bf16.msra.mxu0 %v654
    %912 = vmatprep.subr.bf16.mxu0 %v657
    %913 = vmatpush1.bf16.msra.mxu0 %v656
    %914 = vmatprep.subr.bf16.mxu0 %v659
    %915 = vmatpush1.bf16.msra.mxu0 %v658
    %916 = vmatprep.subr.bf16.mxu0 %v661
    %917 = vmatpush1.bf16.msra.mxu0 %v660
    %918 = vmatprep.subr.bf16.mxu0 %v663
    %919 = vmatpush1.bf16.msra.mxu0 %v662
    %920 = vmatprep.subr.bf16.mxu0 %v665
    %921 = vmatpush1.bf16.msra.mxu0 %v664
    %922 = vmatprep.subr.bf16.mxu0 %v667
    %923 = vmatpush1.bf16.msra.mxu0 %v666
    %924 = vmatprep.subr.bf16.mxu0 %v669
    %925 = vmatpush1.bf16.msra.mxu0 %v668
    %926 = vmatprep.subr.bf16.mxu0 %v671
    %927 = vmatpush1.bf16.msra.mxu0 %v670
    %928 = vmatprep.mubr.bf16.mxu0 %v109
    %929 = vmatmul.mubr.bf16.gmra.mrb[0].mxu0 %v108
    %v930 = vpop.f32.mrb[0].mxu0
    %v931 = vadd.f32 %v249, %v930
    %v932 = vpop.f32.mrb[0].mxu0
    %v933 = vadd.f32 %v253, %v932
    %v934 = vpop.f32.mrb[0].mxu0
    %v935 = vpop.f32.mrb[0].mxu0
    %936 = vdwg.mxu0
    %937 = vmatprep.subr.bf16.mxu0 %v673
    %938 = vmatpush1.bf16.msra.mxu0 %v672
    %939 = vmatprep.subr.bf16.mxu0 %v675
    %940 = vmatpush1.bf16.msra.mxu0 %v674
    %941 = vmatprep.subr.bf16.mxu0 %v677
    %942 = vmatpush1.bf16.msra.mxu0 %v676
    %943 = vmatprep.subr.bf16.mxu0 %v679
    %944 = vmatpush1.bf16.msra.mxu0 %v678
    %945 = vmatprep.subr.bf16.mxu0 %v681
    %946 = vmatpush1.bf16.msra.mxu0 %v680
    %947 = vmatprep.subr.bf16.mxu0 %v683
    %948 = vmatpush1.bf16.msra.mxu0 %v682
    %949 = vmatprep.subr.bf16.mxu0 %v685
    %950 = vmatpush1.bf16.msra.mxu0 %v684
    %951 = vmatprep.subr.bf16.mxu0 %v687
    %952 = vmatpush1.bf16.msra.mxu0 %v686
    %953 = vmatprep.subr.bf16.mxu0 %v689
    %954 = vmatpush1.bf16.msra.mxu0 %v688
    %955 = vmatprep.subr.bf16.mxu0 %v691
    %956 = vmatpush1.bf16.msra.mxu0 %v690
    %957 = vmatprep.subr.bf16.mxu0 %v693
    %958 = vmatpush1.bf16.msra.mxu0 %v692
    %959 = vmatprep.subr.bf16.mxu0 %v695
    %960 = vmatpush1.bf16.msra.mxu0 %v694
    %961 = vmatprep.subr.bf16.mxu0 %v697
    %962 = vmatpush1.bf16.msra.mxu0 %v696
    %963 = vmatprep.subr.bf16.mxu0 %v699
    %964 = vmatpush1.bf16.msra.mxu0 %v698
    %965 = vmatprep.subr.bf16.mxu0 %v701
    %966 = vmatpush1.bf16.msra.mxu0 %v700
    %967 = vmatprep.subr.bf16.mxu0 %v703
    %968 = vmatpush1.bf16.msra.mxu0 %v702
    %969 = vmatprep.mubr.bf16.mxu0 %v111
    %970 = vmatmul.mubr.bf16.gmra.mrb[0].mxu0 %v110
    %v971 = vpop.f32.mrb[0].mxu0
    %v972 = vadd.f32 %v931, %v971
    %v973 = vpop.f32.mrb[0].mxu0
    %v974 = vadd.f32 %v933, %v973
    %v975 = vpop.f32.mrb[0].mxu0
    %v976 = vpop.f32.mrb[0].mxu0
    %977 = vdwg.mxu0
    %978 = vmatprep.subr.bf16.mxu0 %v705
    %979 = vmatpush1.bf16.msra.mxu0 %v704
    %980 = vmatprep.subr.bf16.mxu0 %v707
    %981 = vmatpush1.bf16.msra.mxu0 %v706
    %982 = vmatprep.subr.bf16.mxu0 %v709
    %983 = vmatpush1.bf16.msra.mxu0 %v708
    %984 = vmatprep.subr.bf16.mxu0 %v711
    %985 = vmatpush1.bf16.msra.mxu0 %v710
    %986 = vmatprep.subr.bf16.mxu0 %v713
    %987 = vmatpush1.bf16.msra.mxu0 %v712
    %988 = vmatprep.subr.bf16.mxu0 %v715
    %989 = vmatpush1.bf16.msra.mxu0 %v714
    %990 = vmatprep.subr.bf16.mxu0 %v717
    %991 = vmatpush1.bf16.msra.mxu0 %v716
    %992 = vmatprep.subr.bf16.mxu0 %v719
    %993 = vmatpush1.bf16.msra.mxu0 %v718
    %994 = vmatprep.subr.bf16.mxu0 %v721
    %995 = vmatpush1.bf16.msra.mxu0 %v720
    %996 = vmatprep.subr.bf16.mxu0 %v723
    %997 = vmatpush1.bf16.msra.mxu0 %v722
    %998 = vmatprep.subr.bf16.mxu0 %v725
    %999 = vmatpush1.bf16.msra.mxu0 %v724
    %1000 = vmatprep.subr.bf16.mxu0 %v727
    %1001 = vmatpush1.bf16.msra.mxu0 %v726
    %1002 = vmatprep.subr.bf16.mxu0 %v729
    %1003 = vmatpush1.bf16.msra.mxu0 %v728
    %1004 = vmatprep.subr.bf16.mxu0 %v731
    %1005 = vmatpush1.bf16.msra.mxu0 %v730
    %1006 = vmatprep.subr.bf16.mxu0 %v733
    %1007 = vmatpush1.bf16.msra.mxu0 %v732
    %1008 = vmatprep.subr.bf16.mxu0 %v735
    %1009 = vmatpush1.bf16.msra.mxu0 %v734
    %1010 = vmatprep.mubr.bf16.mxu0 %v113
    %1011 = vmatmul.mubr.bf16.gmra.mrb[0].mxu0 %v112
    %v1012 = vpop.f32.mrb[0].mxu0
    %v1013 = vadd.f32 %v972, %v1012
    %v1014 = vpop.f32.mrb[0].mxu0
    %v1015 = vadd.f32 %v974, %v1014
    %v1016 = vpop.f32.mrb[0].mxu0
    %v1017 = vpop.f32.mrb[0].mxu0
    %1018 = vdwg.mxu0
    %1019 = vmatprep.subr.bf16.mxu0 %v737
    %1020 = vmatpush1.bf16.msra.mxu0 %v736
    %1021 = vmatprep.subr.bf16.mxu0 %v739
    %1022 = vmatpush1.bf16.msra.mxu0 %v738
    %1023 = vmatprep.subr.bf16.mxu0 %v741
    %1024 = vmatpush1.bf16.msra.mxu0 %v740
    %1025 = vmatprep.subr.bf16.mxu0 %v743
    %1026 = vmatpush1.bf16.msra.mxu0 %v742
    %1027 = vmatprep.subr.bf16.mxu0 %v745
    %1028 = vmatpush1.bf16.msra.mxu0 %v744
    %1029 = vmatprep.subr.bf16.mxu0 %v747
    %1030 = vmatpush1.bf16.msra.mxu0 %v746
    %1031 = vmatprep.subr.bf16.mxu0 %v749
    %1032 = vmatpush1.bf16.msra.mxu0 %v748
    %1033 = vmatprep.subr.bf16.mxu0 %v751
    %1034 = vmatpush1.bf16.msra.mxu0 %v750
    %1035 = vmatprep.subr.bf16.mxu0 %v753
    %1036 = vmatpush1.bf16.msra.mxu0 %v752
    %1037 = vmatprep.subr.bf16.mxu0 %v755
    %1038 = vmatpush1.bf16.msra.mxu0 %v754
    %1039 = vmatprep.subr.bf16.mxu0 %v757
    %1040 = vmatpush1.bf16.msra.mxu0 %v756
    %1041 = vmatprep.subr.bf16.mxu0 %v759
    %1042 = vmatpush1.bf16.msra.mxu0 %v758
    %1043 = vmatprep.subr.bf16.mxu0 %v761
    %1044 = vmatpush1.bf16.msra.mxu0 %v760
    %1045 = vmatprep.subr.bf16.mxu0 %v763
    %1046 = vmatpush1.bf16.msra.mxu0 %v762
    %1047 = vmatprep.subr.bf16.mxu0 %v765
    %1048 = vmatpush1.bf16.msra.mxu0 %v764
    %1049 = vmatprep.subr.bf16.mxu0 %v767
    %1050 = vmatpush1.bf16.msra.mxu0 %v766
    %1051 = vmatprep.mubr.bf16.mxu0 %v115
    %1052 = vmatmul.mubr.bf16.gmra.mrb[0].mxu0 %v114
    %v1053 = vpop.f32.mrb[0].mxu0
    %v1054 = vadd.f32 %v1013, %v1053
    %v1055 = vpop.f32.mrb[0].mxu0
    %v1056 = vadd.f32 %v1015, %v1055
    %v1057 = vpop.f32.mrb[0].mxu0
    %v1058 = vpop.f32.mrb[0].mxu0
    %1059 = vdwg.mxu0
    %v1060 = vmax.f32 %v1054, 0.0
    %v1061 = vmax.f32 %v1056, 0.0
    %v1062 = vpack.c.bf16 %v1060, %v1060
    %v1063 = vpack.c.bf16 %v1061, %v1061
    %v1064 = vld [vmem:[#allocation7] sm:$0xf]
    %v1065 = vld [vmem:[#allocation7 + $0x4] sm:$0xf]
    %v1066 = vld [vmem:[#allocation7 + $0x8] sm:$0xf]
    %v1067 = vld [vmem:[#allocation7 + $0xc] sm:$0xf]
    %v1068 = vld [vmem:[#allocation7 + $0x10] sm:$0xf]
    %v1069 = vld [vmem:[#allocation7 + $0x14] sm:$0xf]
    %v1070 = vld [vmem:[#allocation7 + $0x18] sm:$0xf]
    %v1071 = vld [vmem:[#allocation7 + $0x1c] sm:$0xf]
    %v1072 = vld [vmem:[#allocation7 + $0x20] sm:$0xf]
    %v1073 = vld [vmem:[#allocation7 + $0x24] sm:$0xf]
    %v1074 = vld [vmem:[#allocation7 + $0x28] sm:$0xf]
    %v1075 = vld [vmem:[#allocation7 + $0x2c] sm:$0xf]
    %v1076 = vld [vmem:[#allocation7 + $0x30] sm:$0xf]
    %v1077 = vld [vmem:[#allocation7 + $0x34] sm:$0xf]
    %v1078 = vld [vmem:[#allocation7 + $0x38] sm:$0xf]
    %v1079 = vld [vmem:[#allocation7 + $0x3c] sm:$0xf]
    %v1080 = vld [vmem:[#allocation7 + $0x40] sm:$0xf]
    %v1081 = vld [vmem:[#allocation7 + $0x44] sm:$0xf]
    %v1082 = vld [vmem:[#allocation7 + $0x48] sm:$0xf]
    %v1083 = vld [vmem:[#allocation7 + $0x4c] sm:$0xf]
    %v1084 = vld [vmem:[#allocation7 + $0x50] sm:$0xf]
    %v1085 = vld [vmem:[#allocation7 + $0x54] sm:$0xf]
    %v1086 = vld [vmem:[#allocation7 + $0x58] sm:$0xf]
    %v1087 = vld [vmem:[#allocation7 + $0x5c] sm:$0xf]
    %v1088 = vld [vmem:[#allocation7 + $0x60] sm:$0xf]
    %v1089 = vld [vmem:[#allocation7 + $0x64] sm:$0xf]
    %v1090 = vld [vmem:[#allocation7 + $0x68] sm:$0xf]
    %v1091 = vld [vmem:[#allocation7 + $0x6c] sm:$0xf]
    %v1092 = vld [vmem:[#allocation7 + $0x70] sm:$0xf]
    %v1093 = vld [vmem:[#allocation7 + $0x74] sm:$0xf]
    %v1094 = vld [vmem:[#allocation7 + $0x78] sm:$0xf]
    %v1095 = vld [vmem:[#allocation7 + $0x7c] sm:$0xf]
    %v1096 = vld [vmem:[%s4] sm:$0x1]
    %v1098 = vlaneseq
    %v1099 = vshrl.u32 %v1098, 7
    %v1100 = vsub.s32 0, %v1099
    %v1101 = vrot.slane %v1096, %v1100
    %v1135 = vunpack.c.l.b16 %v1064
    %v1136 = vunpack.c.l.b16 %v1065
    %v1137 = vunpack.c.l.b16 %v1066
    %v1138 = vunpack.c.l.b16 %v1067
    %v1139 = vunpack.c.l.b16 %v1068
    %v1140 = vunpack.c.l.b16 %v1069
    %v1141 = vunpack.c.l.b16 %v1070
    %v1142 = vunpack.c.l.b16 %v1071
    %v1143 = vunpack.c.l.b16 %v1072
    %v1144 = vunpack.c.l.b16 %v1073
    %v1145 = vunpack.c.l.b16 %v1074
    %v1146 = vunpack.c.l.b16 %v1075
    %v1147 = vunpack.c.l.b16 %v1076
    %v1148 = vunpack.c.l.b16 %v1077
    %v1149 = vunpack.c.l.b16 %v1078
    %v1150 = vunpack.c.l.b16 %v1079
    %v1151 = vunpack.c.l.b16 %v1080
    %v1152 = vunpack.c.l.b16 %v1081
    %v1153 = vunpack.c.l.b16 %v1082
    %v1154 = vunpack.c.l.b16 %v1083
    %v1155 = vunpack.c.l.b16 %v1084
    %v1156 = vunpack.c.l.b16 %v1085
    %v1157 = vunpack.c.l.b16 %v1086
    %v1158 = vunpack.c.l.b16 %v1087
    %v1159 = vunpack.c.l.b16 %v1088
    %v1160 = vunpack.c.l.b16 %v1089
    %v1161 = vunpack.c.l.b16 %v1090
    %v1162 = vunpack.c.l.b16 %v1091
    %v1163 = vunpack.c.l.b16 %v1092
    %v1164 = vunpack.c.l.b16 %v1093
    %v1165 = vunpack.c.l.b16 %v1094
    %v1166 = vunpack.c.l.b16 %v1095
    %v1167 = vpack.c.b16 %v1136, %v1135
    %v1168 = vpack.c.b16 %v1138, %v1137
    %v1169 = vpack.c.b16 %v1140, %v1139
    %v1170 = vpack.c.b16 %v1142, %v1141
    %v1171 = vpack.c.b16 %v1144, %v1143
    %v1172 = vpack.c.b16 %v1146, %v1145
    %v1173 = vpack.c.b16 %v1148, %v1147
    %v1174 = vpack.c.b16 %v1150, %v1149
    %v1175 = vpack.c.b16 %v1152, %v1151
    %v1176 = vpack.c.b16 %v1154, %v1153
    %v1177 = vpack.c.b16 %v1156, %v1155
    %v1178 = vpack.c.b16 %v1158, %v1157
    %v1179 = vpack.c.b16 %v1160, %v1159
    %v1180 = vpack.c.b16 %v1162, %v1161
    %v1181 = vpack.c.b16 %v1164, %v1163
    %v1182 = vpack.c.b16 %v1166, %v1165
    %1199 = vmatprep.subr.bf16.mxu0 0
    %1200 = vmatpush1.bf16.msra.mxu0 %v1167
    %1201 = vmatprep.subr.bf16.mxu0 0
    %1202 = vmatpush1.bf16.msra.mxu0 %v1168
    %1203 = vmatprep.subr.bf16.mxu0 0
    %1204 = vmatpush1.bf16.msra.mxu0 %v1169
    %1205 = vmatprep.subr.bf16.mxu0 0
    %1206 = vmatpush1.bf16.msra.mxu0 %v1170
    %1207 = vmatprep.subr.bf16.mxu0 0
    %1208 = vmatpush1.bf16.msra.mxu0 %v1171
    %1209 = vmatprep.subr.bf16.mxu0 0
    %1210 = vmatpush1.bf16.msra.mxu0 %v1172
    %1211 = vmatprep.subr.bf16.mxu0 0
    %1212 = vmatpush1.bf16.msra.mxu0 %v1173
    %1213 = vmatprep.subr.bf16.mxu0 0
    %1214 = vmatpush1.bf16.msra.mxu0 %v1174
    %1215 = vmatprep.subr.bf16.mxu0 0
    %1216 = vmatpush1.bf16.msra.mxu0 %v1175
    %1217 = vmatprep.subr.bf16.mxu0 0
    %1218 = vmatpush1.bf16.msra.mxu0 %v1176
    %1219 = vmatprep.subr.bf16.mxu0 0
    %1220 = vmatpush1.bf16.msra.mxu0 %v1177
    %1221 = vmatprep.subr.bf16.mxu0 0
    %1222 = vmatpush1.bf16.msra.mxu0 %v1178
    %1223 = vmatprep.subr.bf16.mxu0 0
    %1224 = vmatpush1.bf16.msra.mxu0 %v1179
    %1225 = vmatprep.subr.bf16.mxu0 0
    %1226 = vmatpush1.bf16.msra.mxu0 %v1180
    %1227 = vmatprep.subr.bf16.mxu0 0
    %1228 = vmatpush1.bf16.msra.mxu0 %v1181
    %1229 = vmatprep.subr.bf16.mxu0 0
    %1230 = vmatpush1.bf16.msra.mxu0 %v1182
    %1231 = vmatprep.mubr.bf16.mxu0 %v1063
    %1232 = vmatmul.mubr.bf16.gmra.mrb[0].mxu0 %v1062
    %v1233 = vpop.f32.mrb[0].mxu0
    %v1234 = vadd.f32 %v1101, %v1233
    %v1235 = vpop.f32.mrb[0].mxu0
    %v1236 = vpop.f32.mrb[0].mxu0
    %v1237 = vpop.f32.mrb[0].mxu0
    %1238 = vdwg.mxu0
    %v1239 = vand.u32 2147483647, %v1234
    %v1240 = vsub.f32 0.0, %v1239
    %v1241 = vmul.f32 %v1240, 1.442695
    %v1242 = vpow.pop %v1241
    %v1243 = vadd.f32 %v1242, 1.0
    %v1244 = vrcp.pop %v1243
    %vm1245 = vcmp.ge.f32.partialorder %v1234, 0.0
    %v1246 = vsub.f32 1.0, %v1244
    %v1247 = vsel %vm1245, %v1244, %v1246
    %v1248 = vpack.c.bf16 %v1247, %v1247
    %v1249 = vld [vmem:[#allocation8] sm:$0xff]
    %v1250 = vld [vmem:[#allocation8 + $0x8] sm:$0xff]
    %v1251 = vld [vmem:[#allocation8 + $0x10] sm:$0xff]
    %v1252 = vld [vmem:[#allocation8 + $0x18] sm:$0xff]
    %v1253 = vld [vmem:[#allocation8 + $0x20] sm:$0xff]
    %v1254 = vld [vmem:[#allocation8 + $0x28] sm:$0xff]
    %v1255 = vld [vmem:[#allocation8 + $0x30] sm:$0xff]
    %v1256 = vld [vmem:[#allocation8 + $0x38] sm:$0xff]
    %v1257 = vld [vmem:[#allocation8 + $0x40] sm:$0xff]
    %v1258 = vld [vmem:[#allocation8 + $0x48] sm:$0xff]
    %v1259 = vld [vmem:[#allocation8 + $0x50] sm:$0xff]
    %v1260 = vld [vmem:[#allocation8 + $0x58] sm:$0xff]
    %v1261 = vld [vmem:[#allocation8 + $0x60] sm:$0xff]
    %v1262 = vld [vmem:[#allocation8 + $0x68] sm:$0xff]
    %v1263 = vld [vmem:[#allocation8 + $0x70] sm:$0xff]
    %v1264 = vld [vmem:[#allocation8 + $0x78] sm:$0xff]
    %v1265 = vld [vmem:[%s6] sm:$0x3]
    %v1267 = vlaneseq
    %v1268 = vshrl.u32 %v1267, 7
    %v1269 = vsub.s32 0, %v1268
    %v1270 = vrot.slane %v1265, %v1269
    %v1271 = vlaneseq
    %v1272 = vshrl.u32 %v1271, 7
    %v1273 = vsub.s32 1, %v1272
    %v1274 = vrot.slane %v1265, %v1273
    %v1293 = vunpack.c.l.b16 %v1249
    %v1294 = vunpack.c.h.b16 %v1249
    %v1295 = vunpack.c.l.b16 %v1250
    %v1296 = vunpack.c.h.b16 %v1250
    %v1297 = vunpack.c.l.b16 %v1251
    %v1298 = vunpack.c.h.b16 %v1251
    %v1299 = vunpack.c.l.b16 %v1252
    %v1300 = vunpack.c.h.b16 %v1252
    %v1301 = vunpack.c.l.b16 %v1253
    %v1302 = vunpack.c.h.b16 %v1253
    %v1303 = vunpack.c.l.b16 %v1254
    %v1304 = vunpack.c.h.b16 %v1254
    %v1305 = vunpack.c.l.b16 %v1255
    %v1306 = vunpack.c.h.b16 %v1255
    %v1307 = vunpack.c.l.b16 %v1256
    %v1308 = vunpack.c.h.b16 %v1256
    %v1309 = vunpack.c.l.b16 %v1257
    %v1310 = vunpack.c.h.b16 %v1257
    %v1311 = vunpack.c.l.b16 %v1258
    %v1312 = vunpack.c.h.b16 %v1258
    %v1313 = vunpack.c.l.b16 %v1259
    %v1314 = vunpack.c.h.b16 %v1259
    %v1315 = vunpack.c.l.b16 %v1260
    %v1316 = vunpack.c.h.b16 %v1260
    %v1317 = vunpack.c.l.b16 %v1261
    %v1318 = vunpack.c.h.b16 %v1261
    %v1319 = vunpack.c.l.b16 %v1262
    %v1320 = vunpack.c.h.b16 %v1262
    %v1321 = vunpack.c.l.b16 %v1263
    %v1322 = vunpack.c.h.b16 %v1263
    %v1323 = vunpack.c.l.b16 %v1264
    %v1324 = vunpack.c.h.b16 %v1264
    %v1325 = vpack.c.b16 %v1295, %v1293
    %v1326 = vpack.c.b16 %v1296, %v1294
    %v1327 = vpack.c.b16 %v1299, %v1297
    %v1328 = vpack.c.b16 %v1300, %v1298
    %v1329 = vpack.c.b16 %v1303, %v1301
    %v1330 = vpack.c.b16 %v1304, %v1302
    %v1331 = vpack.c.b16 %v1307, %v1305
    %v1332 = vpack.c.b16 %v1308, %v1306
    %v1333 = vpack.c.b16 %v1311, %v1309
    %v1334 = vpack.c.b16 %v1312, %v1310
    %v1335 = vpack.c.b16 %v1315, %v1313
    %v1336 = vpack.c.b16 %v1316, %v1314
    %v1337 = vpack.c.b16 %v1319, %v1317
    %v1338 = vpack.c.b16 %v1320, %v1318
    %v1339 = vpack.c.b16 %v1323, %v1321
    %v1340 = vpack.c.b16 %v1324, %v1322
    %1357 = vmatprep.subr.bf16.mxu0 %v1326
    %1358 = vmatpush1.bf16.msra.mxu0 %v1325
    %1359 = vmatprep.subr.bf16.mxu0 %v1328
    %1360 = vmatpush1.bf16.msra.mxu0 %v1327
    %1361 = vmatprep.subr.bf16.mxu0 %v1330
    %1362 = vmatpush1.bf16.msra.mxu0 %v1329
    %1363 = vmatprep.subr.bf16.mxu0 %v1332
    %1364 = vmatpush1.bf16.msra.mxu0 %v1331
    %1365 = vmatprep.subr.bf16.mxu0 %v1334
    %1366 = vmatpush1.bf16.msra.mxu0 %v1333
    %1367 = vmatprep.subr.bf16.mxu0 %v1336
    %1368 = vmatpush1.bf16.msra.mxu0 %v1335
    %1369 = vmatprep.subr.bf16.mxu0 %v1338
    %1370 = vmatpush1.bf16.msra.mxu0 %v1337
    %1371 = vmatprep.subr.bf16.mxu0 %v1340
    %1372 = vmatpush1.bf16.msra.mxu0 %v1339
    %1373 = vmatprep.subr.bf16.mxu0 0
    %1374 = vmatpush1.bf16.msra.mxu0 0
    %1375 = vmatprep.subr.bf16.mxu0 0
    %1376 = vmatpush1.bf16.msra.mxu0 0
    %1377 = vmatprep.subr.bf16.mxu0 0
    %1378 = vmatpush1.bf16.msra.mxu0 0
    %1379 = vmatprep.subr.bf16.mxu0 0
    %1380 = vmatpush1.bf16.msra.mxu0 0
    %1381 = vmatprep.subr.bf16.mxu0 0
    %1382 = vmatpush1.bf16.msra.mxu0 0
    %1383 = vmatprep.subr.bf16.mxu0 0
    %1384 = vmatpush1.bf16.msra.mxu0 0
    %1385 = vmatprep.subr.bf16.mxu0 0
    %1386 = vmatpush1.bf16.msra.mxu0 0
    %1387 = vmatprep.subr.bf16.mxu0 0
    %1388 = vmatpush1.bf16.msra.mxu0 0
    %1389 = vmatprep.mubr.bf16.mxu0 0
    %1390 = vmatmul.mubr.bf16.gmra.mrb[0].mxu0 %v1248
    %v1391 = vpop.f32.mrb[0].mxu0
    %v1392 = vadd.f32 %v1270, %v1391
    %v1393 = vpop.f32.mrb[0].mxu0
    %v1394 = vadd.f32 %v1274, %v1393
    %v1395 = vpop.f32.mrb[0].mxu0
    %v1396 = vpop.f32.mrb[0].mxu0
    %1397 = vdwg.mxu0
    %v1398 = vmax.f32 %v1392, 0.0
    %v1399 = vmax.f32 %v1394, 0.0
    %v1400 = vpack.c.bf16 %v1398, %v1398
    %v1401 = vpack.c.bf16 %v1399, %v1399
    %v1402 = vld [vmem:[#allocation10] sm:$0xff]
    %v1403 = vld [vmem:[#allocation10 + $0x8] sm:$0xff]
    %v1404 = vld [vmem:[#allocation10 + $0x10] sm:$0xff]
    %v1405 = vld [vmem:[#allocation10 + $0x18] sm:$0xff]
    %v1406 = vld [vmem:[#allocation10 + $0x20] sm:$0xff]
    %v1407 = vld [vmem:[#allocation10 + $0x28] sm:$0xff]
    %v1408 = vld [vmem:[#allocation10 + $0x30] sm:$0xff]
    %v1409 = vld [vmem:[#allocation10 + $0x38] sm:$0xff]
    %v1410 = vld [vmem:[#allocation10 + $0x40] sm:$0xff]
    %v1411 = vld [vmem:[#allocation10 + $0x48] sm:$0xff]
    %v1412 = vld [vmem:[#allocation10 + $0x50] sm:$0xff]
    %v1413 = vld [vmem:[#allocation10 + $0x58] sm:$0xff]
    %v1414 = vld [vmem:[#allocation10 + $0x60] sm:$0xff]
    %v1415 = vld [vmem:[#allocation10 + $0x68] sm:$0xff]
    %v1416 = vld [vmem:[#allocation10 + $0x70] sm:$0xff]
    %v1417 = vld [vmem:[#allocation10 + $0x78] sm:$0xff]
    %v1418 = vld [vmem:[#allocation10 + $0x80] sm:$0xff]
    %v1419 = vld [vmem:[#allocation10 + $0x88] sm:$0xff]
    %v1420 = vld [vmem:[#allocation10 + $0x90] sm:$0xff]
    %v1421 = vld [vmem:[#allocation10 + $0x98] sm:$0xff]
    %v1422 = vld [vmem:[#allocation10 + $0xa0] sm:$0xff]
    %v1423 = vld [vmem:[#allocation10 + $0xa8] sm:$0xff]
    %v1424 = vld [vmem:[#allocation10 + $0xb0] sm:$0xff]
    %v1425 = vld [vmem:[#allocation10 + $0xb8] sm:$0xff]
    %v1426 = vld [vmem:[#allocation10 + $0xc0] sm:$0xff]
    %v1427 = vld [vmem:[#allocation10 + $0xc8] sm:$0xff]
    %v1428 = vld [vmem:[#allocation10 + $0xd0] sm:$0xff]
    %v1429 = vld [vmem:[#allocation10 + $0xd8] sm:$0xff]
    %v1430 = vld [vmem:[#allocation10 + $0xe0] sm:$0xff]
    %v1431 = vld [vmem:[#allocation10 + $0xe8] sm:$0xff]
    %v1432 = vld [vmem:[#allocation10 + $0xf0] sm:$0xff]
    %v1433 = vld [vmem:[#allocation10 + $0xf8] sm:$0xff]
    %v1434 = vld [vmem:[#allocation10 + $0x100] sm:$0xff]
    %v1435 = vld [vmem:[#allocation10 + $0x108] sm:$0xff]
    %v1436 = vld [vmem:[#allocation10 + $0x110] sm:$0xff]
    %v1437 = vld [vmem:[#allocation10 + $0x118] sm:$0xff]
    %v1438 = vld [vmem:[#allocation10 + $0x120] sm:$0xff]
    %v1439 = vld [vmem:[#allocation10 + $0x128] sm:$0xff]
    %v1440 = vld [vmem:[#allocation10 + $0x130] sm:$0xff]
    %v1441 = vld [vmem:[#allocation10 + $0x138] sm:$0xff]
    %v1442 = vld [vmem:[#allocation10 + $0x140] sm:$0xff]
    %v1443 = vld [vmem:[#allocation10 + $0x148] sm:$0xff]
    %v1444 = vld [vmem:[#allocation10 + $0x150] sm:$0xff]
    %v1445 = vld [vmem:[#allocation10 + $0x158] sm:$0xff]
    %v1446 = vld [vmem:[#allocation10 + $0x160] sm:$0xff]
    %v1447 = vld [vmem:[#allocation10 + $0x168] sm:$0xff]
    %v1448 = vld [vmem:[#allocation10 + $0x170] sm:$0xff]
    %v1449 = vld [vmem:[#allocation10 + $0x178] sm:$0xff]
    %v1450 = vld [vmem:[#allocation10 + $0x180] sm:$0xff]
    %v1451 = vld [vmem:[#allocation10 + $0x188] sm:$0xff]
    %v1452 = vld [vmem:[#allocation10 + $0x190] sm:$0xff]
    %v1453 = vld [vmem:[#allocation10 + $0x198] sm:$0xff]
    %v1454 = vld [vmem:[#allocation10 + $0x1a0] sm:$0xff]
    %v1455 = vld [vmem:[#allocation10 + $0x1a8] sm:$0xff]
    %v1456 = vld [vmem:[#allocation10 + $0x1b0] sm:$0xff]
    %v1457 = vld [vmem:[#allocation10 + $0x1b8] sm:$0xff]
    %v1458 = vld [vmem:[#allocation10 + $0x1c0] sm:$0xff]
    %v1459 = vld [vmem:[#allocation10 + $0x1c8] sm:$0xff]
    %v1460 = vld [vmem:[#allocation10 + $0x1d0] sm:$0xff]
    %v1461 = vld [vmem:[#allocation10 + $0x1d8] sm:$0xff]
    %v1462 = vld [vmem:[#allocation10 + $0x1e0] sm:$0xff]
    %v1463 = vld [vmem:[#allocation10 + $0x1e8] sm:$0xff]
    %v1464 = vld [vmem:[#allocation10 + $0x1f0] sm:$0xff]
    %v1465 = vld [vmem:[#allocation10 + $0x1f8] sm:$0xff]
    %v1466 = vld [vmem:[#allocation10 + $0x200] sm:$0xff]
    %v1467 = vld [vmem:[#allocation10 + $0x208] sm:$0xff]
    %v1468 = vld [vmem:[#allocation10 + $0x210] sm:$0xff]
    %v1469 = vld [vmem:[#allocation10 + $0x218] sm:$0xff]
    %v1470 = vld [vmem:[#allocation10 + $0x220] sm:$0xff]
    %v1471 = vld [vmem:[#allocation10 + $0x228] sm:$0xff]
    %v1472 = vld [vmem:[#allocation10 + $0x230] sm:$0xff]
    %v1473 = vld [vmem:[#allocation10 + $0x238] sm:$0xff]
    %v1474 = vld [vmem:[#allocation10 + $0x240] sm:$0xff]
    %v1475 = vld [vmem:[#allocation10 + $0x248] sm:$0xff]
    %v1476 = vld [vmem:[#allocation10 + $0x250] sm:$0xff]
    %v1477 = vld [vmem:[#allocation10 + $0x258] sm:$0xff]
    %v1478 = vld [vmem:[#allocation10 + $0x260] sm:$0xff]
    %v1479 = vld [vmem:[#allocation10 + $0x268] sm:$0xff]
    %v1480 = vld [vmem:[#allocation10 + $0x270] sm:$0xff]
    %v1481 = vld [vmem:[#allocation10 + $0x278] sm:$0xff]
    %v1482 = vld [vmem:[#allocation10 + $0x280] sm:$0xff]
    %v1483 = vld [vmem:[#allocation10 + $0x288] sm:$0xff]
    %v1484 = vld [vmem:[#allocation10 + $0x290] sm:$0xff]
    %v1485 = vld [vmem:[#allocation10 + $0x298] sm:$0xff]
    %v1486 = vld [vmem:[#allocation10 + $0x2a0] sm:$0xff]
    %v1487 = vld [vmem:[#allocation10 + $0x2a8] sm:$0xff]
    %v1488 = vld [vmem:[#allocation10 + $0x2b0] sm:$0xff]
    %v1489 = vld [vmem:[#allocation10 + $0x2b8] sm:$0xff]
    %v1490 = vld [vmem:[#allocation10 + $0x2c0] sm:$0xff]
    %v1491 = vld [vmem:[#allocation10 + $0x2c8] sm:$0xff]
    %v1492 = vld [vmem:[#allocation10 + $0x2d0] sm:$0xff]
    %v1493 = vld [vmem:[#allocation10 + $0x2d8] sm:$0xff]
    %v1494 = vld [vmem:[#allocation10 + $0x2e0] sm:$0xff]
    %v1495 = vld [vmem:[#allocation10 + $0x2e8] sm:$0xff]
    %v1496 = vld [vmem:[#allocation10 + $0x2f0] sm:$0xff]
    %v1497 = vld [vmem:[#allocation10 + $0x2f8] sm:$0xff]
    %v1498 = vld [vmem:[#allocation10 + $0x300] sm:$0xff]
    %v1499 = vld [vmem:[#allocation10 + $0x308] sm:$0xff]
    %v1500 = vld [vmem:[#allocation10 + $0x310] sm:$0xff]
    %v1501 = vld [vmem:[#allocation10 + $0x318] sm:$0xff]
    %v1502 = vld [vmem:[#allocation10 + $0x320] sm:$0xff]
    %v1503 = vld [vmem:[#allocation10 + $0x328] sm:$0xff]
    %v1504 = vld [vmem:[#allocation10 + $0x330] sm:$0xff]
    %v1505 = vld [vmem:[#allocation10 + $0x338] sm:$0xff]
    %v1506 = vld [vmem:[#allocation10 + $0x340] sm:$0xff]
    %v1507 = vld [vmem:[#allocation10 + $0x348] sm:$0xff]
    %v1508 = vld [vmem:[#allocation10 + $0x350] sm:$0xff]
    %v1509 = vld [vmem:[#allocation10 + $0x358] sm:$0xff]
    %v1510 = vld [vmem:[#allocation10 + $0x360] sm:$0xff]
    %v1511 = vld [vmem:[#allocation10 + $0x368] sm:$0xff]
    %v1512 = vld [vmem:[#allocation10 + $0x370] sm:$0xff]
    %v1513 = vld [vmem:[#allocation10 + $0x378] sm:$0xff]
    %v1514 = vld [vmem:[#allocation10 + $0x380] sm:$0xff]
    %v1515 = vld [vmem:[#allocation10 + $0x388] sm:$0xff]
    %v1516 = vld [vmem:[#allocation10 + $0x390] sm:$0xff]
    %v1517 = vld [vmem:[#allocation10 + $0x398] sm:$0xff]
    %v1518 = vld [vmem:[#allocation10 + $0x3a0] sm:$0xff]
    %v1519 = vld [vmem:[#allocation10 + $0x3a8] sm:$0xff]
    %v1520 = vld [vmem:[#allocation10 + $0x3b0] sm:$0xff]
    %v1521 = vld [vmem:[#allocation10 + $0x3b8] sm:$0xff]
    %v1522 = vld [vmem:[#allocation10 + $0x3c0] sm:$0xff]
    %v1523 = vld [vmem:[#allocation10 + $0x3c8] sm:$0xff]
    %v1524 = vld [vmem:[#allocation10 + $0x3d0] sm:$0xff]
    %v1525 = vld [vmem:[#allocation10 + $0x3d8] sm:$0xff]
    %v1526 = vld [vmem:[#allocation10 + $0x3e0] sm:$0xff]
    %v1527 = vld [vmem:[#allocation10 + $0x3e8] sm:$0xff]
    %v1528 = vld [vmem:[#allocation10 + $0x3f0] sm:$0xff]
    %v1529 = vld [vmem:[#allocation10 + $0x3f8] sm:$0xff]
    %v1530 = vld [vmem:[%s8] sm:$0xff]
    %v1532 = vlaneseq
    %v1533 = vshrl.u32 %v1532, 7
    %v1534 = vsub.s32 0, %v1533
    %v1535 = vrot.slane %v1530, %v1534
    %v1536 = vlaneseq
    %v1537 = vshrl.u32 %v1536, 7
    %v1538 = vsub.s32 1, %v1537
    %v1539 = vrot.slane %v1530, %v1538
    %v1540 = vlaneseq
    %v1541 = vshrl.u32 %v1540, 7
    %v1542 = vsub.s32 2, %v1541
    %v1543 = vrot.slane %v1530, %v1542
    %v1544 = vlaneseq
    %v1545 = vshrl.u32 %v1544, 7
    %v1546 = vsub.s32 3, %v1545
    %v1547 = vrot.slane %v1530, %v1546
    %v1548 = vlaneseq
    %v1549 = vshrl.u32 %v1548, 7
    %v1550 = vsub.s32 4, %v1549
    %v1551 = vrot.slane %v1530, %v1550
    %v1552 = vlaneseq
    %v1553 = vshrl.u32 %v1552, 7
    %v1554 = vsub.s32 5, %v1553
    %v1555 = vrot.slane %v1530, %v1554
    %v1556 = vlaneseq
    %v1557 = vshrl.u32 %v1556, 7
    %v1558 = vsub.s32 6, %v1557
    %v1559 = vrot.slane %v1530, %v1558
    %v1560 = vlaneseq
    %v1561 = vshrl.u32 %v1560, 7
    %v1562 = vsub.s32 7, %v1561
    %v1563 = vrot.slane %v1530, %v1562
    %v1700 = vunpack.c.l.b16 %v1402
    %v1701 = vunpack.c.h.b16 %v1402
    %v1702 = vunpack.c.l.b16 %v1403
    %v1703 = vunpack.c.h.b16 %v1403
    %v1704 = vunpack.c.l.b16 %v1404
    %v1705 = vunpack.c.h.b16 %v1404
    %v1706 = vunpack.c.l.b16 %v1405
    %v1707 = vunpack.c.h.b16 %v1405
    %v1708 = vunpack.c.l.b16 %v1406
    %v1709 = vunpack.c.h.b16 %v1406
    %v1710 = vunpack.c.l.b16 %v1407
    %v1711 = vunpack.c.h.b16 %v1407
    %v1712 = vunpack.c.l.b16 %v1408
    %v1713 = vunpack.c.h.b16 %v1408
    %v1714 = vunpack.c.l.b16 %v1409
    %v1715 = vunpack.c.h.b16 %v1409
    %v1716 = vunpack.c.l.b16 %v1410
    %v1717 = vunpack.c.h.b16 %v1410
    %v1718 = vunpack.c.l.b16 %v1411
    %v1719 = vunpack.c.h.b16 %v1411
    %v1720 = vunpack.c.l.b16 %v1412
    %v1721 = vunpack.c.h.b16 %v1412
    %v1722 = vunpack.c.l.b16 %v1413
    %v1723 = vunpack.c.h.b16 %v1413
    %v1724 = vunpack.c.l.b16 %v1414
    %v1725 = vunpack.c.h.b16 %v1414
    %v1726 = vunpack.c.l.b16 %v1415
    %v1727 = vunpack.c.h.b16 %v1415
    %v1728 = vunpack.c.l.b16 %v1416
    %v1729 = vunpack.c.h.b16 %v1416
    %v1730 = vunpack.c.l.b16 %v1417
    %v1731 = vunpack.c.h.b16 %v1417
    %v1732 = vunpack.c.l.b16 %v1418
    %v1733 = vunpack.c.h.b16 %v1418
    %v1734 = vunpack.c.l.b16 %v1419
    %v1735 = vunpack.c.h.b16 %v1419
    %v1736 = vunpack.c.l.b16 %v1420
    %v1737 = vunpack.c.h.b16 %v1420
    %v1738 = vunpack.c.l.b16 %v1421
    %v1739 = vunpack.c.h.b16 %v1421
    %v1740 = vunpack.c.l.b16 %v1422
    %v1741 = vunpack.c.h.b16 %v1422
    %v1742 = vunpack.c.l.b16 %v1423
    %v1743 = vunpack.c.h.b16 %v1423
    %v1744 = vunpack.c.l.b16 %v1424
    %v1745 = vunpack.c.h.b16 %v1424
    %v1746 = vunpack.c.l.b16 %v1425
    %v1747 = vunpack.c.h.b16 %v1425
    %v1748 = vunpack.c.l.b16 %v1426
    %v1749 = vunpack.c.h.b16 %v1426
    %v1750 = vunpack.c.l.b16 %v1427
    %v1751 = vunpack.c.h.b16 %v1427
    %v1752 = vunpack.c.l.b16 %v1428
    %v1753 = vunpack.c.h.b16 %v1428
    %v1754 = vunpack.c.l.b16 %v1429
    %v1755 = vunpack.c.h.b16 %v1429
    %v1756 = vunpack.c.l.b16 %v1430
    %v1757 = vunpack.c.h.b16 %v1430
    %v1758 = vunpack.c.l.b16 %v1431
    %v1759 = vunpack.c.h.b16 %v1431
    %v1760 = vunpack.c.l.b16 %v1432
    %v1761 = vunpack.c.h.b16 %v1432
    %v1762 = vunpack.c.l.b16 %v1433
    %v1763 = vunpack.c.h.b16 %v1433
    %v1764 = vunpack.c.l.b16 %v1434
    %v1765 = vunpack.c.h.b16 %v1434
    %v1766 = vunpack.c.l.b16 %v1435
    %v1767 = vunpack.c.h.b16 %v1435
    %v1768 = vunpack.c.l.b16 %v1436
    %v1769 = vunpack.c.h.b16 %v1436
    %v1770 = vunpack.c.l.b16 %v1437
    %v1771 = vunpack.c.h.b16 %v1437
    %v1772 = vunpack.c.l.b16 %v1438
    %v1773 = vunpack.c.h.b16 %v1438
    %v1774 = vunpack.c.l.b16 %v1439
    %v1775 = vunpack.c.h.b16 %v1439
    %v1776 = vunpack.c.l.b16 %v1440
    %v1777 = vunpack.c.h.b16 %v1440
    %v1778 = vunpack.c.l.b16 %v1441
    %v1779 = vunpack.c.h.b16 %v1441
    %v1780 = vunpack.c.l.b16 %v1442
    %v1781 = vunpack.c.h.b16 %v1442
    %v1782 = vunpack.c.l.b16 %v1443
    %v1783 = vunpack.c.h.b16 %v1443
    %v1784 = vunpack.c.l.b16 %v1444
    %v1785 = vunpack.c.h.b16 %v1444
    %v1786 = vunpack.c.l.b16 %v1445
    %v1787 = vunpack.c.h.b16 %v1445
    %v1788 = vunpack.c.l.b16 %v1446
    %v1789 = vunpack.c.h.b16 %v1446
    %v1790 = vunpack.c.l.b16 %v1447
    %v1791 = vunpack.c.h.b16 %v1447
    %v1792 = vunpack.c.l.b16 %v1448
    %v1793 = vunpack.c.h.b16 %v1448
    %v1794 = vunpack.c.l.b16 %v1449
    %v1795 = vunpack.c.h.b16 %v1449
    %v1796 = vunpack.c.l.b16 %v1450
    %v1797 = vunpack.c.h.b16 %v1450
    %v1798 = vunpack.c.l.b16 %v1451
    %v1799 = vunpack.c.h.b16 %v1451
    %v1800 = vunpack.c.l.b16 %v1452
    %v1801 = vunpack.c.h.b16 %v1452
    %v1802 = vunpack.c.l.b16 %v1453
    %v1803 = vunpack.c.h.b16 %v1453
    %v1804 = vunpack.c.l.b16 %v1454
    %v1805 = vunpack.c.h.b16 %v1454
    %v1806 = vunpack.c.l.b16 %v1455
    %v1807 = vunpack.c.h.b16 %v1455
    %v1808 = vunpack.c.l.b16 %v1456
    %v1809 = vunpack.c.h.b16 %v1456
    %v1810 = vunpack.c.l.b16 %v1457
    %v1811 = vunpack.c.h.b16 %v1457
    %v1812 = vunpack.c.l.b16 %v1458
    %v1813 = vunpack.c.h.b16 %v1458
    %v1814 = vunpack.c.l.b16 %v1459
    %v1815 = vunpack.c.h.b16 %v1459
    %v1816 = vunpack.c.l.b16 %v1460
    %v1817 = vunpack.c.h.b16 %v1460
    %v1818 = vunpack.c.l.b16 %v1461
    %v1819 = vunpack.c.h.b16 %v1461
    %v1820 = vunpack.c.l.b16 %v1462
    %v1821 = vunpack.c.h.b16 %v1462
    %v1822 = vunpack.c.l.b16 %v1463
    %v1823 = vunpack.c.h.b16 %v1463
    %v1824 = vunpack.c.l.b16 %v1464
    %v1825 = vunpack.c.h.b16 %v1464
    %v1826 = vunpack.c.l.b16 %v1465
    %v1827 = vunpack.c.h.b16 %v1465
    %v1828 = vunpack.c.l.b16 %v1466
    %v1829 = vunpack.c.h.b16 %v1466
    %v1830 = vunpack.c.l.b16 %v1467
    %v1831 = vunpack.c.h.b16 %v1467
    %v1832 = vunpack.c.l.b16 %v1468
    %v1833 = vunpack.c.h.b16 %v1468
    %v1834 = vunpack.c.l.b16 %v1469
    %v1835 = vunpack.c.h.b16 %v1469
    %v1836 = vunpack.c.l.b16 %v1470
    %v1837 = vunpack.c.h.b16 %v1470
    %v1838 = vunpack.c.l.b16 %v1471
    %v1839 = vunpack.c.h.b16 %v1471
    %v1840 = vunpack.c.l.b16 %v1472
    %v1841 = vunpack.c.h.b16 %v1472
    %v1842 = vunpack.c.l.b16 %v1473
    %v1843 = vunpack.c.h.b16 %v1473
    %v1844 = vunpack.c.l.b16 %v1474
    %v1845 = vunpack.c.h.b16 %v1474
    %v1846 = vunpack.c.l.b16 %v1475
    %v1847 = vunpack.c.h.b16 %v1475
    %v1848 = vunpack.c.l.b16 %v1476
    %v1849 = vunpack.c.h.b16 %v1476
    %v1850 = vunpack.c.l.b16 %v1477
    %v1851 = vunpack.c.h.b16 %v1477
    %v1852 = vunpack.c.l.b16 %v1478
    %v1853 = vunpack.c.h.b16 %v1478
    %v1854 = vunpack.c.l.b16 %v1479
    %v1855 = vunpack.c.h.b16 %v1479
    %v1856 = vunpack.c.l.b16 %v1480
    %v1857 = vunpack.c.h.b16 %v1480
    %v1858 = vunpack.c.l.b16 %v1481
    %v1859 = vunpack.c.h.b16 %v1481
    %v1860 = vunpack.c.l.b16 %v1482
    %v1861 = vunpack.c.h.b16 %v1482
    %v1862 = vunpack.c.l.b16 %v1483
    %v1863 = vunpack.c.h.b16 %v1483
    %v1864 = vunpack.c.l.b16 %v1484
    %v1865 = vunpack.c.h.b16 %v1484
    %v1866 = vunpack.c.l.b16 %v1485
    %v1867 = vunpack.c.h.b16 %v1485
    %v1868 = vunpack.c.l.b16 %v1486
    %v1869 = vunpack.c.h.b16 %v1486
    %v1870 = vunpack.c.l.b16 %v1487
    %v1871 = vunpack.c.h.b16 %v1487
    %v1872 = vunpack.c.l.b16 %v1488
    %v1873 = vunpack.c.h.b16 %v1488
    %v1874 = vunpack.c.l.b16 %v1489
    %v1875 = vunpack.c.h.b16 %v1489
    %v1876 = vunpack.c.l.b16 %v1490
    %v1877 = vunpack.c.h.b16 %v1490
    %v1878 = vunpack.c.l.b16 %v1491
    %v1879 = vunpack.c.h.b16 %v1491
    %v1880 = vunpack.c.l.b16 %v1492
    %v1881 = vunpack.c.h.b16 %v1492
    %v1882 = vunpack.c.l.b16 %v1493
    %v1883 = vunpack.c.h.b16 %v1493
    %v1884 = vunpack.c.l.b16 %v1494
    %v1885 = vunpack.c.h.b16 %v1494
    %v1886 = vunpack.c.l.b16 %v1495
    %v1887 = vunpack.c.h.b16 %v1495
    %v1888 = vunpack.c.l.b16 %v1496
    %v1889 = vunpack.c.h.b16 %v1496
    %v1890 = vunpack.c.l.b16 %v1497
    %v1891 = vunpack.c.h.b16 %v1497
    %v1892 = vunpack.c.l.b16 %v1498
    %v1893 = vunpack.c.h.b16 %v1498
    %v1894 = vunpack.c.l.b16 %v1499
    %v1895 = vunpack.c.h.b16 %v1499
    %v1896 = vunpack.c.l.b16 %v1500
    %v1897 = vunpack.c.h.b16 %v1500
    %v1898 = vunpack.c.l.b16 %v1501
    %v1899 = vunpack.c.h.b16 %v1501
    %v1900 = vunpack.c.l.b16 %v1502
    %v1901 = vunpack.c.h.b16 %v1502
    %v1902 = vunpack.c.l.b16 %v1503
    %v1903 = vunpack.c.h.b16 %v1503
    %v1904 = vunpack.c.l.b16 %v1504
    %v1905 = vunpack.c.h.b16 %v1504
    %v1906 = vunpack.c.l.b16 %v1505
    %v1907 = vunpack.c.h.b16 %v1505
    %v1908 = vunpack.c.l.b16 %v1506
    %v1909 = vunpack.c.h.b16 %v1506
    %v1910 = vunpack.c.l.b16 %v1507
    %v1911 = vunpack.c.h.b16 %v1507
    %v1912 = vunpack.c.l.b16 %v1508
    %v1913 = vunpack.c.h.b16 %v1508
    %v1914 = vunpack.c.l.b16 %v1509
    %v1915 = vunpack.c.h.b16 %v1509
    %v1916 = vunpack.c.l.b16 %v1510
    %v1917 = vunpack.c.h.b16 %v1510
    %v1918 = vunpack.c.l.b16 %v1511
    %v1919 = vunpack.c.h.b16 %v1511
    %v1920 = vunpack.c.l.b16 %v1512
    %v1921 = vunpack.c.h.b16 %v1512
    %v1922 = vunpack.c.l.b16 %v1513
    %v1923 = vunpack.c.h.b16 %v1513
    %v1924 = vunpack.c.l.b16 %v1514
    %v1925 = vunpack.c.h.b16 %v1514
    %v1926 = vunpack.c.l.b16 %v1515
    %v1927 = vunpack.c.h.b16 %v1515
    %v1928 = vunpack.c.l.b16 %v1516
    %v1929 = vunpack.c.h.b16 %v1516
    %v1930 = vunpack.c.l.b16 %v1517
    %v1931 = vunpack.c.h.b16 %v1517
    %v1932 = vunpack.c.l.b16 %v1518
    %v1933 = vunpack.c.h.b16 %v1518
    %v1934 = vunpack.c.l.b16 %v1519
    %v1935 = vunpack.c.h.b16 %v1519
    %v1936 = vunpack.c.l.b16 %v1520
    %v1937 = vunpack.c.h.b16 %v1520
    %v1938 = vunpack.c.l.b16 %v1521
    %v1939 = vunpack.c.h.b16 %v1521
    %v1940 = vunpack.c.l.b16 %v1522
    %v1941 = vunpack.c.h.b16 %v1522
    %v1942 = vunpack.c.l.b16 %v1523
    %v1943 = vunpack.c.h.b16 %v1523
    %v1944 = vunpack.c.l.b16 %v1524
    %v1945 = vunpack.c.h.b16 %v1524
    %v1946 = vunpack.c.l.b16 %v1525
    %v1947 = vunpack.c.h.b16 %v1525
    %v1948 = vunpack.c.l.b16 %v1526
    %v1949 = vunpack.c.h.b16 %v1526
    %v1950 = vunpack.c.l.b16 %v1527
    %v1951 = vunpack.c.h.b16 %v1527
    %v1952 = vunpack.c.l.b16 %v1528
    %v1953 = vunpack.c.h.b16 %v1528
    %v1954 = vunpack.c.l.b16 %v1529
    %v1955 = vunpack.c.h.b16 %v1529
    %v1956 = vpack.c.b16 %v1708, %v1700
    %v1957 = vpack.c.b16 %v1709, %v1701
    %v1958 = vpack.c.b16 %v1710, %v1702
    %v1959 = vpack.c.b16 %v1711, %v1703
    %v1960 = vpack.c.b16 %v1712, %v1704
    %v1961 = vpack.c.b16 %v1713, %v1705
    %v1962 = vpack.c.b16 %v1714, %v1706
    %v1963 = vpack.c.b16 %v1715, %v1707
    %v1964 = vpack.c.b16 %v1724, %v1716
    %v1965 = vpack.c.b16 %v1725, %v1717
    %v1966 = vpack.c.b16 %v1726, %v1718
    %v1967 = vpack.c.b16 %v1727, %v1719
    %v1968 = vpack.c.b16 %v1728, %v1720
    %v1969 = vpack.c.b16 %v1729, %v1721
    %v1970 = vpack.c.b16 %v1730, %v1722
    %v1971 = vpack.c.b16 %v1731, %v1723
    %v1972 = vpack.c.b16 %v1740, %v1732
    %v1973 = vpack.c.b16 %v1741, %v1733
    %v1974 = vpack.c.b16 %v1742, %v1734
    %v1975 = vpack.c.b16 %v1743, %v1735
    %v1976 = vpack.c.b16 %v1744, %v1736
    %v1977 = vpack.c.b16 %v1745, %v1737
    %v1978 = vpack.c.b16 %v1746, %v1738
    %v1979 = vpack.c.b16 %v1747, %v1739
    %v1980 = vpack.c.b16 %v1756, %v1748
    %v1981 = vpack.c.b16 %v1757, %v1749
    %v1982 = vpack.c.b16 %v1758, %v1750
    %v1983 = vpack.c.b16 %v1759, %v1751
    %v1984 = vpack.c.b16 %v1760, %v1752
    %v1985 = vpack.c.b16 %v1761, %v1753
    %v1986 = vpack.c.b16 %v1762, %v1754
    %v1987 = vpack.c.b16 %v1763, %v1755
    %v1988 = vpack.c.b16 %v1772, %v1764
    %v1989 = vpack.c.b16 %v1773, %v1765
    %v1990 = vpack.c.b16 %v1774, %v1766
    %v1991 = vpack.c.b16 %v1775, %v1767
    %v1992 = vpack.c.b16 %v1776, %v1768
    %v1993 = vpack.c.b16 %v1777, %v1769
    %v1994 = vpack.c.b16 %v1778, %v1770
    %v1995 = vpack.c.b16 %v1779, %v1771
    %v1996 = vpack.c.b16 %v1788, %v1780
    %v1997 = vpack.c.b16 %v1789, %v1781
    %v1998 = vpack.c.b16 %v1790, %v1782
    %v1999 = vpack.c.b16 %v1791, %v1783
    %v2000 = vpack.c.b16 %v1792, %v1784
    %v2001 = vpack.c.b16 %v1793, %v1785
    %v2002 = vpack.c.b16 %v1794, %v1786
    %v2003 = vpack.c.b16 %v1795, %v1787
    %v2004 = vpack.c.b16 %v1804, %v1796
    %v2005 = vpack.c.b16 %v1805, %v1797
    %v2006 = vpack.c.b16 %v1806, %v1798
    %v2007 = vpack.c.b16 %v1807, %v1799
    %v2008 = vpack.c.b16 %v1808, %v1800
    %v2009 = vpack.c.b16 %v1809, %v1801
    %v2010 = vpack.c.b16 %v1810, %v1802
    %v2011 = vpack.c.b16 %v1811, %v1803
    %v2012 = vpack.c.b16 %v1820, %v1812
    %v2013 = vpack.c.b16 %v1821, %v1813
    %v2014 = vpack.c.b16 %v1822, %v1814
    %v2015 = vpack.c.b16 %v1823, %v1815
    %v2016 = vpack.c.b16 %v1824, %v1816
    %v2017 = vpack.c.b16 %v1825, %v1817
    %v2018 = vpack.c.b16 %v1826, %v1818
    %v2019 = vpack.c.b16 %v1827, %v1819
    %v2020 = vpack.c.b16 %v1836, %v1828
    %v2021 = vpack.c.b16 %v1837, %v1829
    %v2022 = vpack.c.b16 %v1838, %v1830
    %v2023 = vpack.c.b16 %v1839, %v1831
    %v2024 = vpack.c.b16 %v1840, %v1832
    %v2025 = vpack.c.b16 %v1841, %v1833
    %v2026 = vpack.c.b16 %v1842, %v1834
    %v2027 = vpack.c.b16 %v1843, %v1835
    %v2028 = vpack.c.b16 %v1852, %v1844
    %v2029 = vpack.c.b16 %v1853, %v1845
    %v2030 = vpack.c.b16 %v1854, %v1846
    %v2031 = vpack.c.b16 %v1855, %v1847
    %v2032 = vpack.c.b16 %v1856, %v1848
    %v2033 = vpack.c.b16 %v1857, %v1849
    %v2034 = vpack.c.b16 %v1858, %v1850
    %v2035 = vpack.c.b16 %v1859, %v1851
    %v2036 = vpack.c.b16 %v1868, %v1860
    %v2037 = vpack.c.b16 %v1869, %v1861
    %v2038 = vpack.c.b16 %v1870, %v1862
    %v2039 = vpack.c.b16 %v1871, %v1863
    %v2040 = vpack.c.b16 %v1872, %v1864
    %v2041 = vpack.c.b16 %v1873, %v1865
    %v2042 = vpack.c.b16 %v1874, %v1866
    %v2043 = vpack.c.b16 %v1875, %v1867
    %v2044 = vpack.c.b16 %v1884, %v1876
    %v2045 = vpack.c.b16 %v1885, %v1877
    %v2046 = vpack.c.b16 %v1886, %v1878
    %v2047 = vpack.c.b16 %v1887, %v1879
    %v2048 = vpack.c.b16 %v1888, %v1880
    %v2049 = vpack.c.b16 %v1889, %v1881
    %v2050 = vpack.c.b16 %v1890, %v1882
    %v2051 = vpack.c.b16 %v1891, %v1883
    %v2052 = vpack.c.b16 %v1900, %v1892
    %v2053 = vpack.c.b16 %v1901, %v1893
    %v2054 = vpack.c.b16 %v1902, %v1894
    %v2055 = vpack.c.b16 %v1903, %v1895
    %v2056 = vpack.c.b16 %v1904, %v1896
    %v2057 = vpack.c.b16 %v1905, %v1897
    %v2058 = vpack.c.b16 %v1906, %v1898
    %v2059 = vpack.c.b16 %v1907, %v1899
    %v2060 = vpack.c.b16 %v1916, %v1908
    %v2061 = vpack.c.b16 %v1917, %v1909
    %v2062 = vpack.c.b16 %v1918, %v1910
    %v2063 = vpack.c.b16 %v1919, %v1911
    %v2064 = vpack.c.b16 %v1920, %v1912
    %v2065 = vpack.c.b16 %v1921, %v1913
    %v2066 = vpack.c.b16 %v1922, %v1914
    %v2067 = vpack.c.b16 %v1923, %v1915
    %v2068 = vpack.c.b16 %v1932, %v1924
    %v2069 = vpack.c.b16 %v1933, %v1925
    %v2070 = vpack.c.b16 %v1934, %v1926
    %v2071 = vpack.c.b16 %v1935, %v1927
    %v2072 = vpack.c.b16 %v1936, %v1928
    %v2073 = vpack.c.b16 %v1937, %v1929
    %v2074 = vpack.c.b16 %v1938, %v1930
    %v2075 = vpack.c.b16 %v1939, %v1931
    %v2076 = vpack.c.b16 %v1948, %v1940
    %v2077 = vpack.c.b16 %v1949, %v1941
    %v2078 = vpack.c.b16 %v1950, %v1942
    %v2079 = vpack.c.b16 %v1951, %v1943
    %v2080 = vpack.c.b16 %v1952, %v1944
    %v2081 = vpack.c.b16 %v1953, %v1945
    %v2082 = vpack.c.b16 %v1954, %v1946
    %v2083 = vpack.c.b16 %v1955, %v1947
    %2212 = vmatprep.subr.bf16.mxu0 %v1957
    %2213 = vmatpush1.bf16.msra.mxu0 %v1956
    %2214 = vmatprep.subr.bf16.mxu0 %v1965
    %2215 = vmatpush1.bf16.msra.mxu0 %v1964
    %2216 = vmatprep.subr.bf16.mxu0 %v1973
    %2217 = vmatpush1.bf16.msra.mxu0 %v1972
    %2218 = vmatprep.subr.bf16.mxu0 %v1981
    %2219 = vmatpush1.bf16.msra.mxu0 %v1980
    %2220 = vmatprep.subr.bf16.mxu0 %v1989
    %2221 = vmatpush1.bf16.msra.mxu0 %v1988
    %2222 = vmatprep.subr.bf16.mxu0 %v1997
    %2223 = vmatpush1.bf16.msra.mxu0 %v1996
    %2224 = vmatprep.subr.bf16.mxu0 %v2005
    %2225 = vmatpush1.bf16.msra.mxu0 %v2004
    %2226 = vmatprep.subr.bf16.mxu0 %v2013
    %2227 = vmatpush1.bf16.msra.mxu0 %v2012
    %2228 = vmatprep.subr.bf16.mxu0 %v2021
    %2229 = vmatpush1.bf16.msra.mxu0 %v2020
    %2230 = vmatprep.subr.bf16.mxu0 %v2029
    %2231 = vmatpush1.bf16.msra.mxu0 %v2028
    %2232 = vmatprep.subr.bf16.mxu0 %v2037
    %2233 = vmatpush1.bf16.msra.mxu0 %v2036
    %2234 = vmatprep.subr.bf16.mxu0 %v2045
    %2235 = vmatpush1.bf16.msra.mxu0 %v2044
    %2236 = vmatprep.subr.bf16.mxu0 %v2053
    %2237 = vmatpush1.bf16.msra.mxu0 %v2052
    %2238 = vmatprep.subr.bf16.mxu0 %v2061
    %2239 = vmatpush1.bf16.msra.mxu0 %v2060
    %2240 = vmatprep.subr.bf16.mxu0 %v2069
    %2241 = vmatpush1.bf16.msra.mxu0 %v2068
    %2242 = vmatprep.subr.bf16.mxu0 %v2077
    %2243 = vmatpush1.bf16.msra.mxu0 %v2076
    %2244 = vmatprep.mubr.bf16.mxu0 %v1401
    %2245 = vmatmul.mubr.bf16.gmra.mrb[0].mxu0 %v1400
    %v2246 = vpop.f32.mrb[0].mxu0
    %v2247 = vadd.f32 %v1535, %v2246
    %v2248 = vpop.f32.mrb[0].mxu0
    %v2249 = vadd.f32 %v1539, %v2248
    %v2250 = vpop.f32.mrb[0].mxu0
    %v2251 = vpop.f32.mrb[0].mxu0
    %2252 = vdwg.mxu0
    %2253 = vmatprep.subr.bf16.mxu0 %v1959
    %2254 = vmatpush1.bf16.msra.mxu0 %v1958
    %2255 = vmatprep.subr.bf16.mxu0 %v1967
    %2256 = vmatpush1.bf16.msra.mxu0 %v1966
    %2257 = vmatprep.subr.bf16.mxu0 %v1975
    %2258 = vmatpush1.bf16.msra.mxu0 %v1974
    %2259 = vmatprep.subr.bf16.mxu0 %v1983
    %2260 = vmatpush1.bf16.msra.mxu0 %v1982
    %2261 = vmatprep.subr.bf16.mxu0 %v1991
    %2262 = vmatpush1.bf16.msra.mxu0 %v1990
    %2263 = vmatprep.subr.bf16.mxu0 %v1999
    %2264 = vmatpush1.bf16.msra.mxu0 %v1998
    %2265 = vmatprep.subr.bf16.mxu0 %v2007
    %2266 = vmatpush1.bf16.msra.mxu0 %v2006
    %2267 = vmatprep.subr.bf16.mxu0 %v2015
    %2268 = vmatpush1.bf16.msra.mxu0 %v2014
    %2269 = vmatprep.subr.bf16.mxu0 %v2023
    %2270 = vmatpush1.bf16.msra.mxu0 %v2022
    %2271 = vmatprep.subr.bf16.mxu0 %v2031
    %2272 = vmatpush1.bf16.msra.mxu0 %v2030
    %2273 = vmatprep.subr.bf16.mxu0 %v2039
    %2274 = vmatpush1.bf16.msra.mxu0 %v2038
    %2275 = vmatprep.subr.bf16.mxu0 %v2047
    %2276 = vmatpush1.bf16.msra.mxu0 %v2046
    %2277 = vmatprep.subr.bf16.mxu0 %v2055
    %2278 = vmatpush1.bf16.msra.mxu0 %v2054
    %2279 = vmatprep.subr.bf16.mxu0 %v2063
    %2280 = vmatpush1.bf16.msra.mxu0 %v2062
    %2281 = vmatprep.subr.bf16.mxu0 %v2071
    %2282 = vmatpush1.bf16.msra.mxu0 %v2070
    %2283 = vmatprep.subr.bf16.mxu0 %v2079
    %2284 = vmatpush1.bf16.msra.mxu0 %v2078
    %2285 = vmatprep.mubr.bf16.mxu0 %v1401
    %2286 = vmatmul.mubr.bf16.gmra.mrb[0].mxu0 %v1400
    %v2287 = vpop.f32.mrb[0].mxu0
    %v2288 = vadd.f32 %v1543, %v2287
    %v2289 = vpop.f32.mrb[0].mxu0
    %v2290 = vadd.f32 %v1547, %v2289
    %v2291 = vpop.f32.mrb[0].mxu0
    %v2292 = vpop.f32.mrb[0].mxu0
    %2293 = vdwg.mxu0
    %2294 = vmatprep.subr.bf16.mxu0 %v1961
    %2295 = vmatpush1.bf16.msra.mxu0 %v1960
    %2296 = vmatprep.subr.bf16.mxu0 %v1969
    %2297 = vmatpush1.bf16.msra.mxu0 %v1968
    %2298 = vmatprep.subr.bf16.mxu0 %v1977
    %2299 = vmatpush1.bf16.msra.mxu0 %v1976
    %2300 = vmatprep.subr.bf16.mxu0 %v1985
    %2301 = vmatpush1.bf16.msra.mxu0 %v1984
    %2302 = vmatprep.subr.bf16.mxu0 %v1993
    %2303 = vmatpush1.bf16.msra.mxu0 %v1992
    %2304 = vmatprep.subr.bf16.mxu0 %v2001
    %2305 = vmatpush1.bf16.msra.mxu0 %v2000
    %2306 = vmatprep.subr.bf16.mxu0 %v2009
    %2307 = vmatpush1.bf16.msra.mxu0 %v2008
    %2308 = vmatprep.subr.bf16.mxu0 %v2017
    %2309 = vmatpush1.bf16.msra.mxu0 %v2016
    %2310 = vmatprep.subr.bf16.mxu0 %v2025
    %2311 = vmatpush1.bf16.msra.mxu0 %v2024
    %2312 = vmatprep.subr.bf16.mxu0 %v2033
    %2313 = vmatpush1.bf16.msra.mxu0 %v2032
    %2314 = vmatprep.subr.bf16.mxu0 %v2041
    %2315 = vmatpush1.bf16.msra.mxu0 %v2040
    %2316 = vmatprep.subr.bf16.mxu0 %v2049
    %2317 = vmatpush1.bf16.msra.mxu0 %v2048
    %2318 = vmatprep.subr.bf16.mxu0 %v2057
    %2319 = vmatpush1.bf16.msra.mxu0 %v2056
    %2320 = vmatprep.subr.bf16.mxu0 %v2065
    %2321 = vmatpush1.bf16.msra.mxu0 %v2064
    %2322 = vmatprep.subr.bf16.mxu0 %v2073
    %2323 = vmatpush1.bf16.msra.mxu0 %v2072
    %2324 = vmatprep.subr.bf16.mxu0 %v2081
    %2325 = vmatpush1.bf16.msra.mxu0 %v2080
    %2326 = vmatprep.mubr.bf16.mxu0 %v1401
    %2327 = vmatmul.mubr.bf16.gmra.mrb[0].mxu0 %v1400
    %v2328 = vpop.f32.mrb[0].mxu0
    %v2329 = vadd.f32 %v1551, %v2328
    %v2330 = vpop.f32.mrb[0].mxu0
    %v2331 = vadd.f32 %v1555, %v2330
    %v2332 = vpop.f32.mrb[0].mxu0
    %v2333 = vpop.f32.mrb[0].mxu0
    %2334 = vdwg.mxu0
    %2335 = vmatprep.subr.bf16.mxu0 %v1963
    %2336 = vmatpush1.bf16.msra.mxu0 %v1962
    %2337 = vmatprep.subr.bf16.mxu0 %v1971
    %2338 = vmatpush1.bf16.msra.mxu0 %v1970
    %2339 = vmatprep.subr.bf16.mxu0 %v1979
    %2340 = vmatpush1.bf16.msra.mxu0 %v1978
    %2341 = vmatprep.subr.bf16.mxu0 %v1987
    %2342 = vmatpush1.bf16.msra.mxu0 %v1986
    %2343 = vmatprep.subr.bf16.mxu0 %v1995
    %2344 = vmatpush1.bf16.msra.mxu0 %v1994
    %2345 = vmatprep.subr.bf16.mxu0 %v2003
    %2346 = vmatpush1.bf16.msra.mxu0 %v2002
    %2347 = vmatprep.subr.bf16.mxu0 %v2011
    %2348 = vmatpush1.bf16.msra.mxu0 %v2010
    %2349 = vmatprep.subr.bf16.mxu0 %v2019
    %2350 = vmatpush1.bf16.msra.mxu0 %v2018
    %2351 = vmatprep.subr.bf16.mxu0 %v2027
    %2352 = vmatpush1.bf16.msra.mxu0 %v2026
    %2353 = vmatprep.subr.bf16.mxu0 %v2035
    %2354 = vmatpush1.bf16.msra.mxu0 %v2034
    %2355 = vmatprep.subr.bf16.mxu0 %v2043
    %2356 = vmatpush1.bf16.msra.mxu0 %v2042
    %2357 = vmatprep.subr.bf16.mxu0 %v2051
    %2358 = vmatpush1.bf16.msra.mxu0 %v2050
    %2359 = vmatprep.subr.bf16.mxu0 %v2059
    %2360 = vmatpush1.bf16.msra.mxu0 %v2058
    %2361 = vmatprep.subr.bf16.mxu0 %v2067
    %2362 = vmatpush1.bf16.msra.mxu0 %v2066
    %2363 = vmatprep.subr.bf16.mxu0 %v2075
    %2364 = vmatpush1.bf16.msra.mxu0 %v2074
    %2365 = vmatprep.subr.bf16.mxu0 %v2083
    %2366 = vmatpush1.bf16.msra.mxu0 %v2082
    %2367 = vmatprep.mubr.bf16.mxu0 %v1401
    %2368 = vmatmul.mubr.bf16.gmra.mrb[0].mxu0 %v1400
    %v2369 = vpop.f32.mrb[0].mxu0
    %v2370 = vadd.f32 %v1559, %v2369
    %v2371 = vpop.f32.mrb[0].mxu0
    %v2372 = vadd.f32 %v1563, %v2371
    %v2373 = vpop.f32.mrb[0].mxu0
    %v2374 = vpop.f32.mrb[0].mxu0
    %2375 = vdwg.mxu0
    %v2376 = vand.u32 2147483647, %v2247
    %v2377 = vand.u32 2147483647, %v2249
    %v2378 = vand.u32 2147483647, %v2288
    %v2379 = vand.u32 2147483647, %v2290
    %v2380 = vand.u32 2147483647, %v2329
    %v2381 = vand.u32 2147483647, %v2331
    %v2382 = vand.u32 2147483647, %v2370
    %v2383 = vand.u32 2147483647, %v2372
    %v2384 = vsub.f32 0.0, %v2376
    %v2385 = vsub.f32 0.0, %v2377
    %v2386 = vsub.f32 0.0, %v2378
    %v2387 = vsub.f32 0.0, %v2379
    %v2388 = vsub.f32 0.0, %v2380
    %v2389 = vsub.f32 0.0, %v2381
    %v2390 = vsub.f32 0.0, %v2382
    %v2391 = vsub.f32 0.0, %v2383
    %v2392 = vmul.f32 %v2384, 1.442695
    %v2393 = vpow.pop %v2392
    %v2394 = vmul.f32 %v2385, 1.442695
    %v2395 = vpow.pop %v2394
    %v2396 = vmul.f32 %v2386, 1.442695
    %v2397 = vpow.pop %v2396
    %v2398 = vmul.f32 %v2387, 1.442695
    %v2399 = vpow.pop %v2398
    %v2400 = vmul.f32 %v2388, 1.442695
    %v2401 = vpow.pop %v2400
    %v2402 = vmul.f32 %v2389, 1.442695
    %v2403 = vpow.pop %v2402
    %v2404 = vmul.f32 %v2390, 1.442695
    %v2405 = vpow.pop %v2404
    %v2406 = vmul.f32 %v2391, 1.442695
    %v2407 = vpow.pop %v2406
    %v2408 = vadd.f32 %v2393, 1.0
    %v2409 = vadd.f32 %v2395, 1.0
    %v2410 = vadd.f32 %v2397, 1.0
    %v2411 = vadd.f32 %v2399, 1.0
    %v2412 = vadd.f32 %v2401, 1.0
    %v2413 = vadd.f32 %v2403, 1.0
    %v2414 = vadd.f32 %v2405, 1.0
    %v2415 = vadd.f32 %v2407, 1.0
    %v2416 = vrcp.pop %v2408
    %v2417 = vrcp.pop %v2409
    %v2418 = vrcp.pop %v2410
    %v2419 = vrcp.pop %v2411
    %v2420 = vrcp.pop %v2412
    %v2421 = vrcp.pop %v2413
    %v2422 = vrcp.pop %v2414
    %v2423 = vrcp.pop %v2415
    %vm2424 = vcmp.ge.f32.partialorder %v2247, 0.0
    %vm2425 = vcmp.ge.f32.partialorder %v2249, 0.0
    %vm2426 = vcmp.ge.f32.partialorder %v2288, 0.0
    %vm2427 = vcmp.ge.f32.partialorder %v2290, 0.0
    %vm2428 = vcmp.ge.f32.partialorder %v2329, 0.0
    %vm2429 = vcmp.ge.f32.partialorder %v2331, 0.0
    %vm2430 = vcmp.ge.f32.partialorder %v2370, 0.0
    %vm2431 = vcmp.ge.f32.partialorder %v2372, 0.0
    %v2432 = vsub.f32 1.0, %v2416
    %v2433 = vsub.f32 1.0, %v2417
    %v2434 = vsub.f32 1.0, %v2418
    %v2435 = vsub.f32 1.0, %v2419
    %v2436 = vsub.f32 1.0, %v2420
    %v2437 = vsub.f32 1.0, %v2421
    %v2438 = vsub.f32 1.0, %v2422
    %v2439 = vsub.f32 1.0, %v2423
    %v2440 = vsel %vm2424, %v2416, %v2432
    %v2441 = vsel %vm2425, %v2417, %v2433
    %v2442 = vsel %vm2426, %v2418, %v2434
    %v2443 = vsel %vm2427, %v2419, %v2435
    %v2444 = vsel %vm2428, %v2420, %v2436
    %v2445 = vsel %vm2429, %v2421, %v2437
    %v2446 = vsel %vm2430, %v2422, %v2438
    %v2447 = vsel %vm2431, %v2423, %v2439
    %2448 = vst [vmem:[#allocation11] sm:$0xff] %v2440
    %2449 = vst [vmem:[#allocation11 + $0x8] sm:$0xff] %v2441
    %2450 = vst [vmem:[#allocation11 + $0x10] sm:$0xff] %v2442
    %2451 = vst [vmem:[#allocation11 + $0x18] sm:$0xff] %v2443
    %2452 = vst [vmem:[#allocation11 + $0x20] sm:$0xff] %v2444
    %2453 = vst [vmem:[#allocation11 + $0x28] sm:$0xff] %v2445
    %2454 = vst [vmem:[#allocation11 + $0x30] sm:$0xff] %v2446
    %2455 = vst [vmem:[#allocation11 + $0x38] sm:$0xff] %v2447
    // Predicated region
    $region58: #{tpu_custom_call.1} parent=1 // pred_check
      _
    $region59: #{tpu_custom_call.1} parent=1 // pred_check_branch
      %2457 = sbr.rel (0) target = $region61
    $region60: #{tpu_custom_call.1} parent=1 // pred_region
      %s2459 = ssub.s32 1024, 1024
      %2460 = vsyncadd [#allocation4], %s2459
      %s2462 = sshll.u32 [#allocation11], 4
      %s2463 = int_to_ptr.vmem [resolvable:$true] %s2462
      %2465 = dma.vmem_to_hbm [thread:$0]  %s2463, 1024, %s9, [#allocation4]
    $region61: #{tpu_custom_call.1} parent=1 // pred_fallthru
      _
    // Predicated region
    $region62: #{tpu_custom_call.1} parent=1 // pred_check
      _
    $region63: #{tpu_custom_call.1} parent=1 // pred_check_branch
      %2467 = sbr.rel (0) target = $region65
    $region64: #{tpu_custom_call.1} parent=1 // pred_region
      %2468 = dma.done [#allocation4], 1024
    $region65: #{tpu_custom_call.1} parent=1 // pred_fallthru
      _
    %2469 = vsyncpa [#allocation3], 1
    %2470 = vsyncpa [#allocation6], 1
    %2471 = vsyncpa [#allocation9], 1
    %2472 = vsyncpa [#allocation4], 1

</llo_original>
